<compile_context>
chip_gen: v6e
topology: v6e:2x2x1
jax: 0.10.0
libtpu: 0.0.40
codegen_flags: <defaults>
</compile_context>

<pallas_src>
import jax
import jax.numpy as jnp
from jax.experimental import pallas as pl
from jax.experimental.pallas import tpu as pltpu


# ---------------------------------------------------------------------------
# Kernels
# ---------------------------------------------------------------------------
def _pos_only_kernel(user_ref, pos_ref, bu_ref, bip_ref, gb_ref, out_ref):
    """out = -((u . i_pos) + b_u + b_i + global_bias) for one batch tile.

    user_ref / pos_ref : (TB, K)        bu_ref / bip_ref : (1, TB) lane-dense
    gb_ref             : (1, 1) SMEM    out_ref          : (1, TB) lane-dense
    """
    ue = user_ref[...]
    pe = pos_ref[...]
    pos_col = jnp.sum(ue * pe, axis=1, keepdims=True)          # (TB, 1)
    # one tiny XLU transpose to the lane-dense row layout, then unmasked store
    out_ref[...] = -(pos_col.T + bu_ref[...] + bip_ref[...] + gb_ref[0, 0])


def _pos_neg_kernel(neg_idx_ref,                               # scalar prefetch: (B*N,) SMEM
                    user_ref, pos_ref, item_hbm_ref, bu_ref, bip_ref,
                    bineg_ref, gb_ref,                         # inputs
                    pos_out_ref, neg_out_ref,                  # outputs
                    gather_buf, gather_sem):                   # scratch
    """Positive + negative scores for one batch tile.

    user_ref/pos_ref : (TB, K)   item_hbm_ref : (n_item, K) in HBM (pl.ANY)
    bu_ref/bip_ref   : (1, TB)   bineg_ref    : (TB, N)     gb_ref : (1,1) SMEM
    pos_out_ref      : (1, TB)   neg_out_ref  : (TB, N)
    gather_buf       : (TB*N, K) VMEM scratch, gather_sem: DMA semaphore
    """
    tb, k = user_ref.shape
    n = bineg_ref.shape[-1]
    base = pl.program_id(0) * (tb * n)

    # 1) issue one row-gather DMA per (row, negative) pair of this batch tile.
    @pl.loop(0, tb * n)
    def _issue(j):
        row = neg_idx_ref[base + j]                            # SMEM scalar read
        pltpu.make_async_copy(item_hbm_ref.at[row], gather_buf.at[j],
                              gather_sem).start()

    # 2) positive scores while the gather DMAs are in flight.
    ue = user_ref[...]
    pos_col = jnp.sum(ue * pos_ref[...], axis=1, keepdims=True)   # (TB, 1)
    pos_out_ref[...] = pos_col.T + bu_ref[...] + bip_ref[...] + gb_ref[0, 0]

    # 3) drain the gather: every copy has identical (K,) size, so TB*N
    #    same-shaped waits consume exactly the TB*N completions.
    @pl.loop(0, tb * n)
    def _drain(j):
        pltpu.make_async_copy(item_hbm_ref.at[0], gather_buf.at[0],
                              gather_sem).wait()

    # 4) negative scores: batched row-dot over K (VPU/XLU, not MXU), negated.
    ne = gather_buf[...].reshape(tb, n, k)                     # free leading split
    neg = jnp.sum(ne * ue[:, None, :], axis=-1)                # (TB, N)
    neg_out_ref[...] = -(neg + bu_ref[...].T + bineg_ref[...])


# ---------------------------------------------------------------------------
# Tile selection
# ---------------------------------------------------------------------------
def _pick_batch_tile(batch, per_row_bytes, max_tb=512,
                     vmem_budget=40 * 1024 * 1024):
    """Largest batch tile that (a) keeps the lane-dense (1, B) blocks legal
    (tile multiple of 128, or the full batch), (b) divides B exactly and
    (c) fits a VMEM budget sized for v7x's 64 MiB physical VMEM."""
    if batch <= 128 or batch % 128 != 0:
        # TODO(synk): pad the batch to a multiple of 128 instead of falling
        # back to one whole-batch tile for large, oddly-sized batches.
        return batch
    tb = min(batch, max(128, max_tb - max_tb % 128))
    tb -= tb % 128
    while tb > 128 and (batch % tb != 0 or tb * per_row_bytes > vmem_budget):
        tb -= 128
    return tb if batch % tb == 0 else batch


# ---------------------------------------------------------------------------
# Wrapper (parameter setup + small B-row gathers are plain-JAX glue)
# ---------------------------------------------------------------------------
def init_params(key, n_user, n_item, k_dim, global_bias=3.5):
    k1, k2, k3, k4 = jax.random.split(key, 4)
    return {
        # nn.Embedding weights, .uniform_(0, 2)
        "emb_user": jax.random.uniform(k1, (n_user, k_dim), jnp.float32, 0.0, 2.0),
        "emb_item": jax.random.uniform(k2, (n_item, k_dim), jnp.float32, 0.0, 2.0),
        # bias_user / bias_item come from dicts in the original module;
        # synthesize deterministic values here.
        "bias_user": 0.1 * jax.random.normal(k3, (n_user,), jnp.float32),
        "bias_item": 0.1 * jax.random.normal(k4, (n_item,), jnp.float32),
        "global_bias": jnp.asarray([global_bias], jnp.float32),
    }


def biased_funk_svd_forward(params, user, pos_item, neg_item=None,
                            negative_sampling=True, max_batch_tile=512):
    emb_item = params["emb_item"]                        # (n_item, K) stays in HBM
    user_emb = params["emb_user"][user]                  # (B, K)  small gather (glue)
    pos_emb = emb_item[pos_item]                         # (B, K)  small gather (glue)
    bu_row = params["bias_user"][user][None, :]          # (1, B)  lane-dense
    bip_row = params["bias_item"][pos_item][None, :]     # (1, B)  lane-dense
    gb = params["global_bias"].reshape(1, 1)             # (1, 1)  SMEM scalar
    B, K = user_emb.shape
    cp = dict(dimension_semantics=("parallel",),         # megacore-shard the batch grid
              vmem_limit_bytes=48 * 1024 * 1024)         # > 16/32 MiB defaults, < 64 MiB (v7x)

    # ---------------- positive-only path ----------------
    if not negative_sampling or neg_item is None:
        TB = _pick_batch_tile(B, 4 * (4 * K + 16), max_batch_tile)
        pos = pl.pallas_call(
            _pos_only_kernel,
            out_shape=jax.ShapeDtypeStruct((1, B), jnp.float32),
            grid=(B // TB,),
            in_specs=[
                pl.BlockSpec((TB, K), lambda i: (i, 0)),
                pl.BlockSpec((TB, K), lambda i: (i, 0)),
                pl.BlockSpec((1, TB), lambda i: (0, i)),
                pl.BlockSpec((1, TB), lambda i: (0, i)),
                pl.BlockSpec(memory_space=pltpu.MemorySpace.SMEM),
            ],
            out_specs=pl.BlockSpec((1, TB), lambda i: (0, i)),
            compiler_params=pltpu.CompilerParams(**cp),
        )(user_emb, pos_emb, bu_row, bip_row, gb)
        return pos.reshape(-1)                           # already negated in-kernel

    # ---------------- positive + negative path ----------------
    N = neg_item.shape[1]
    bi_neg = params["bias_item"][neg_item]               # (B, N)  small gather (glue)
    neg_idx = neg_item.reshape(-1).astype(jnp.int32)     # (B*N,)  scalar-prefetch indices

    # VMEM per batch row: gather scratch + 2x-buffered user/pos + bi_neg/neg_out + rows
    per_row = 4 * (N * K + 4 * K + 4 * N + 16)
    TB = _pick_batch_tile(B, per_row, max_batch_tile)

    grid_spec = pltpu.PrefetchScalarGridSpec(
        num_scalar_prefetch=1,
        grid=(B // TB,),
        in_specs=[
            pl.BlockSpec((TB, K), lambda i, ni: (i, 0)),        # user_emb
            pl.BlockSpec((TB, K), lambda i, ni: (i, 0)),        # pos_emb
            pl.BlockSpec(memory_space=pl.ANY),                  # item table (HBM)
            pl.BlockSpec((1, TB), lambda i, ni: (0, i)),        # bias_user
            pl.BlockSpec((1, TB), lambda i, ni: (0, i)),        # bias_item[pos]
            pl.BlockSpec((TB, N), lambda i, ni: (i, 0)),        # bias_item[neg]
            pl.BlockSpec(memory_space=pltpu.MemorySpace.SMEM),  # global bias
        ],
        out_specs=[
            pl.BlockSpec((1, TB), lambda i, ni: (0, i)),        # positive scores
            pl.BlockSpec((TB, N), lambda i, ni: (i, 0)),        # negative scores
        ],
        scratch_shapes=[
            pltpu.VMEM((TB * N, K), jnp.float32),               # gathered neg rows
            pltpu.SemaphoreType.DMA(()),
        ],
    )
    pos, neg = pl.pallas_call(
        _pos_neg_kernel,
        out_shape=(jax.ShapeDtypeStruct((1, B), jnp.float32),
                   jax.ShapeDtypeStruct((B, N), jnp.float32)),
        grid_spec=grid_spec,
        compiler_params=pltpu.CompilerParams(**cp),
    )(neg_idx, user_emb, pos_emb, emb_item, bu_row, bip_row, bi_neg, gb)

    # torch.cat((pos_rat, neg_rat.view(-1)), 0) -> (B + B*N,)
    return jnp.concatenate([pos.reshape(-1), neg.reshape(-1)], axis=0)


# ---------------------------------------------------------------------------
# Pure-JAX reference for validation
# ---------------------------------------------------------------------------
def _reference(params, user, pos_item, neg_item, negative_sampling=True):
    ue = params["emb_user"][user]
    pe = params["emb_item"][pos_item]
    pos = (ue * pe).sum(1) + params["bias_user"][user] + \
        params["bias_item"][pos_item] + params["global_bias"][0]
    if not negative_sampling:
        return -pos
    ne = params["emb_item"][neg_item]
    neg = jnp.einsum("bnk,bk->bn", ne, ue) + \
        params["bias_user"][user][:, None] + params["bias_item"][neg_item]
    return jnp.concatenate([pos, (-neg).reshape(-1)], axis=0)


if __name__ == "__main__":
    n_user, n_item, k_dim = 64, 512, 64
    B, N = 256, 8

    key = jax.random.PRNGKey(0)
    kp, ku, kpi, kni = jax.random.split(key, 4)
    params = init_params(kp, n_user, n_item, k_dim)

    user = jax.random.randint(ku, (B,), 0, n_user, dtype=jnp.int32)
    pos_item = jax.random.randint(kpi, (B,), 0, n_item, dtype=jnp.int32)
    neg_item = jax.random.randint(kni, (B, N), 0, n_item, dtype=jnp.int32)

    # max_batch_tile=128 -> TB=128, grid=(2,): exercises the pipelined grid.
    out = biased_funk_svd_forward(params, user, pos_item, neg_item,
                                  negative_sampling=True, max_batch_tile=128)
    out = jax.block_until_ready(out)
    ref = _reference(params, user, pos_item, neg_item, negative_sampling=True)
    assert out.shape == (B + B * N,), out.shape
    assert jnp.allclose(out, ref, atol=1e-3, rtol=1e-5), \
        f"max err {float(jnp.max(jnp.abs(out - ref)))}"

    # also exercise the negative_sampling=False path
    out2 = biased_funk_svd_forward(params, user, pos_item,
                                   negative_sampling=False, max_batch_tile=128)
    out2 = jax.block_until_ready(out2)
    ref2 = _reference(params, user, pos_item, None, negative_sampling=False)
    assert jnp.allclose(out2, ref2, atol=1e-3, rtol=1e-5)

    print("KERNEL_OK")
</pallas_src>

<mosaic_0001>
module attributes {stable_mosaic.version = 11 : i64} {
  func.func @_pos_neg_kernel(%arg0: i32, %arg1: memref<2048xi32, #tpu.memory_space<smem>>, %arg2: memref<128x64xf32, #tpu.memory_space<vmem>>, %arg3: memref<128x64xf32, #tpu.memory_space<vmem>>, %arg4: memref<512x64xf32, #tpu.memory_space<any>>, %arg5: memref<1x128xf32, #tpu.memory_space<vmem>>, %arg6: memref<1x128xf32, #tpu.memory_space<vmem>>, %arg7: memref<128x8xf32, #tpu.memory_space<vmem>>, %arg8: memref<1x1xf32, #tpu.memory_space<smem>>, %arg9: memref<1x128xf32, #tpu.memory_space<vmem>>, %arg10: memref<128x8xf32, #tpu.memory_space<vmem>>, %arg11: memref<1024x64xf32, #tpu.memory_space<vmem>>, %arg12: memref<!tpu.dma_semaphore, #tpu.memory_space<semaphore_mem>>) attributes {dimension_semantics = [#tpu.dimension_semantics<parallel>], iteration_bounds = array<i64: 2>, scalar_prefetch = 1 : i64, scratch_operands = 2 : i64, tpu.core_type = #tpu.core_type<tc>, window_params = [{transform_indices = @transform_0, window_bounds = array<i64: 128, 64>}, {transform_indices = @transform_1, window_bounds = array<i64: 128, 64>}, {}, {transform_indices = @transform_3, window_bounds = array<i64: 1, 128>}, {transform_indices = @transform_4, window_bounds = array<i64: 1, 128>}, {transform_indices = @transform_5, window_bounds = array<i64: 128, 8>}, {transform_indices = @transform_6, window_bounds = array<i64: 1, 1>}, {transform_indices = @transform_7, window_bounds = array<i64: 1, 128>}, {transform_indices = @transform_8, window_bounds = array<i64: 128, 8>}]} {
    %c1024_i32 = arith.constant 1024 : i32
    %0 = arith.muli %arg0, %c1024_i32 : i32
    %c0_i32 = arith.constant 0 : i32
    %c1024_i32_0 = arith.constant 1024 : i32
    %1 = arith.addi %c0_i32, %c1024_i32_0 : i32
    %c1_i32 = arith.constant 1 : i32
    scf.for %arg13 = %c0_i32 to %1 step %c1_i32  : i32 {
      %c1_i32_26 = arith.constant 1 : i32
      %32 = arith.muli %arg13, %c1_i32_26 : i32
      %c0_i32_27 = arith.constant 0 : i32
      %33 = arith.addi %c0_i32_27, %32 : i32
      %34 = arith.addi %0, %33 : i32
      %35 = arith.index_cast %34 : i32 to index
      %36 = memref.load %arg1[%35] : memref<2048xi32, #tpu.memory_space<smem>>
      %c0_i32_28 = arith.constant 0 : i32
      %37 = tpu.memref_slice %arg4[%36, %c0_i32_28] : memref<512x64xf32, #tpu.memory_space<any>> -> memref<1x64xf32, #tpu.memory_space<any>>
      %38 = tpu.memref_squeeze %37 : memref<1x64xf32, #tpu.memory_space<any>> -> memref<64xf32, #tpu.memory_space<any>>
      %c0_i32_29 = arith.constant 0 : i32
      %39 = tpu.memref_slice %arg11[%33, %c0_i32_29] : memref<1024x64xf32, #tpu.memory_space<vmem>> -> memref<1x64xf32, #tpu.memory_space<vmem>>
      %40 = tpu.memref_squeeze %39 : memref<1x64xf32, #tpu.memory_space<vmem>> -> memref<64xf32, #tpu.memory_space<vmem>>
      tpu.enqueue_dma source(%38 : memref<64xf32, #tpu.memory_space<any>>) target(%40 : memref<64xf32, #tpu.memory_space<vmem>>) target_semaphore(%arg12 : memref<!tpu.dma_semaphore, #tpu.memory_space<semaphore_mem>>)
    }
    %c1024_i32_1 = arith.constant 1024 : i32
    %c0 = arith.constant 0 : index
    %c0_2 = arith.constant 0 : index
    %2 = vector.load %arg2[%c0, %c0_2] : memref<128x64xf32, #tpu.memory_space<vmem>>, vector<128x64xf32>
    %c0_3 = arith.constant 0 : index
    %c0_4 = arith.constant 0 : index
    %3 = vector.load %arg3[%c0_3, %c0_4] : memref<128x64xf32, #tpu.memory_space<vmem>>, vector<128x64xf32>
    %4 = arith.mulf %2, %3 : vector<128x64xf32>
    %cst = arith.constant dense<0.000000e+00> : vector<128xf32>
    %5 = vector.multi_reduction <add>, %4, %cst [1] : vector<128x64xf32> to vector<128xf32>
    %6 = vector.shape_cast %5 : vector<128xf32> to vector<128x1xf32>
    %7 = tpu.transpose %6, [1, 0] : vector<128x1xf32> -> vector<1x128xf32>
    %c0_5 = arith.constant 0 : index
    %c0_6 = arith.constant 0 : index
    %8 = vector.load %arg5[%c0_5, %c0_6] : memref<1x128xf32, #tpu.memory_space<vmem>>, vector<1x128xf32>
    %9 = arith.addf %7, %8 : vector<1x128xf32>
    %c0_7 = arith.constant 0 : index
    %c0_8 = arith.constant 0 : index
    %10 = vector.load %arg6[%c0_7, %c0_8] : memref<1x128xf32, #tpu.memory_space<vmem>>, vector<1x128xf32>
    %11 = arith.addf %9, %10 : vector<1x128xf32>
    %c0_9 = arith.constant 0 : index
    %c0_10 = arith.constant 0 : index
    %12 = memref.load %arg8[%c0_9, %c0_10] : memref<1x1xf32, #tpu.memory_space<smem>>
    %13 = vector.broadcast %12 : f32 to vector<1x128xf32>
    %14 = arith.addf %11, %13 : vector<1x128xf32>
    %c0_11 = arith.constant 0 : index
    %c0_12 = arith.constant 0 : index
    %15 = vector.load %arg9[%c0_11, %c0_12] : memref<1x128xf32, #tpu.memory_space<vmem>>, vector<1x128xf32>
    tpu.vector_store %arg9[%c0_11, %c0_12], %14 {strides = array<i32>} : memref<1x128xf32, #tpu.memory_space<vmem>>, vector<1x128xf32>,
    %c0_i32_13 = arith.constant 0 : i32
    %c1024_i32_14 = arith.constant 1024 : i32
    %16 = arith.addi %c0_i32_13, %c1024_i32_14 : i32
    %c1_i32_15 = arith.constant 1 : i32
    scf.for %arg13 = %c0_i32_13 to %16 step %c1_i32_15  : i32 {
      %c0_i32_26 = arith.constant 0 : i32
      %c0_i32_27 = arith.constant 0 : i32
      %c0_i32_28 = arith.constant 0 : i32
      %32 = tpu.memref_slice %arg4[%c0_i32_26, %c0_i32_28] : memref<512x64xf32, #tpu.memory_space<any>> -> memref<1x64xf32, #tpu.memory_space<any>>
      %33 = tpu.memref_squeeze %32 : memref<1x64xf32, #tpu.memory_space<any>> -> memref<64xf32, #tpu.memory_space<any>>
      %c0_i32_29 = arith.constant 0 : i32
      %34 = tpu.memref_slice %arg11[%c0_i32_27, %c0_i32_29] : memref<1024x64xf32, #tpu.memory_space<vmem>> -> memref<1x64xf32, #tpu.memory_space<vmem>>
      %35 = tpu.memref_squeeze %34 : memref<1x64xf32, #tpu.memory_space<vmem>> -> memref<64xf32, #tpu.memory_space<vmem>>
      tpu.wait_dma2 semaphore(%arg12 : memref<!tpu.dma_semaphore, #tpu.memory_space<semaphore_mem>>) src(%33 : memref<64xf32, #tpu.memory_space<any>>) dst(%35 : memref<64xf32, #tpu.memory_space<vmem>>)
    }
    %c0_16 = arith.constant 0 : index
    %c0_17 = arith.constant 0 : index
    %17 = vector.load %arg11[%c0_16, %c0_17] : memref<1024x64xf32, #tpu.memory_space<vmem>>, vector<1024x64xf32>
    %18 = vector.shape_cast %17 : vector<1024x64xf32> to vector<128x8x64xf32>
    %19 = vector.shape_cast %2 : vector<128x64xf32> to vector<128x1x64xf32>
    %20 = vector.broadcast %19 : vector<128x1x64xf32> to vector<128x8x64xf32>
    %21 = arith.mulf %18, %20 : vector<128x8x64xf32>
    %cst_18 = arith.constant dense<0.000000e+00> : vector<128x8xf32>
    %22 = vector.multi_reduction <add>, %21, %cst_18 [2] : vector<128x8x64xf32> to vector<128x8xf32>
    %c0_19 = arith.constant 0 : index
    %c0_20 = arith.constant 0 : index
    %23 = vector.load %arg5[%c0_19, %c0_20] : memref<1x128xf32, #tpu.memory_space<vmem>>, vector<1x128xf32>
    %24 = tpu.transpose %23, [1, 0] : vector<1x128xf32> -> vector<128x1xf32>
    %25 = vector.broadcast %24 : vector<128x1xf32> to vector<128x8xf32>
    %26 = arith.addf %22, %25 : vector<128x8xf32>
    %c0_21 = arith.constant 0 : index
    %c0_22 = arith.constant 0 : index
    %27 = vector.load %arg7[%c0_21, %c0_22] : memref<128x8xf32, #tpu.memory_space<vmem>>, vector<128x8xf32>
    %28 = arith.addf %26, %27 : vector<128x8xf32>
    %cst_23 = arith.constant 0.000000e+00 : f32
    %29 = vector.broadcast %cst_23 : f32 to vector<128x8xf32>
    %30 = arith.subf %29, %28 : vector<128x8xf32>
    %c0_24 = arith.constant 0 : index
    %c0_25 = arith.constant 0 : index
    %31 = vector.load %arg10[%c0_24, %c0_25] : memref<128x8xf32, #tpu.memory_space<vmem>>, vector<128x8xf32>
    tpu.vector_store %arg10[%c0_24, %c0_25], %30 {strides = array<i32>} : memref<128x8xf32, #tpu.memory_space<vmem>>, vector<128x8xf32>,
    return
  }
  func.func @transform_0(%arg0: i32, %arg1: memref<2048xi32, #tpu.memory_space<smem>>) -> (i32, i32) {
    %c0_i32 = arith.constant 0 : i32
    %c0_i32_0 = arith.constant 0 : i32
    return %arg0, %c0_i32 : i32, i32
  }
  func.func @transform_1(%arg0: i32, %arg1: memref<2048xi32, #tpu.memory_space<smem>>) -> (i32, i32) {
    %c0_i32 = arith.constant 0 : i32
    %c0_i32_0 = arith.constant 0 : i32
    return %arg0, %c0_i32 : i32, i32
  }
  func.func @transform_3(%arg0: i32, %arg1: memref<2048xi32, #tpu.memory_space<smem>>) -> (i32, i32) {
    %c0_i32 = arith.constant 0 : i32
    %c0_i32_0 = arith.constant 0 : i32
    return %c0_i32, %arg0 : i32, i32
  }
  func.func @transform_4(%arg0: i32, %arg1: memref<2048xi32, #tpu.memory_space<smem>>) -> (i32, i32) {
    %c0_i32 = arith.constant 0 : i32
    %c0_i32_0 = arith.constant 0 : i32
    return %c0_i32, %arg0 : i32, i32
  }
  func.func @transform_5(%arg0: i32, %arg1: memref<2048xi32, #tpu.memory_space<smem>>) -> (i32, i32) {
    %c0_i32 = arith.constant 0 : i32
    %c0_i32_0 = arith.constant 0 : i32
    return %arg0, %c0_i32 : i32, i32
  }
  func.func @transform_6(%arg0: i32, %arg1: memref<2048xi32, #tpu.memory_space<smem>>) -> (i32, i32) {
    %c0_i32 = arith.constant 0 : i32
    %c0_i32_0 = arith.constant 0 : i32
    %c0_i32_1 = arith.constant 0 : i32
    return %c0_i32, %c0_i32_0 : i32, i32
  }
  func.func @transform_7(%arg0: i32, %arg1: memref<2048xi32, #tpu.memory_space<smem>>) -> (i32, i32) {
    %c0_i32 = arith.constant 0 : i32
    %c0_i32_0 = arith.constant 0 : i32
    return %c0_i32, %arg0 : i32, i32
  }
  func.func @transform_8(%arg0: i32, %arg1: memref<2048xi32, #tpu.memory_space<smem>>) -> (i32, i32) {
    %c0_i32 = arith.constant 0 : i32
    %c0_i32_0 = arith.constant 0 : i32
    return %arg0, %c0_i32 : i32, i32
  }
}

</mosaic_0001>

<llo_original>
// kernel: tpu_custom_call.1
$region0: #{tpu_custom_call.1}
  #allocation0 [shape = 'u32[]', space=smem, size = 0x4, offset = 0x4, fixed_abs, tag = 'smem constant byte address 0x4 - core index']
  #allocation1 [shape = 'u32[144,128]{1,0:T(1,128)}', space=vmem, size = 0x12000, scoped, tag = 'internal scratch']
  #allocation2 [shape = 'f32[1024,64]{1,0:T(8,128)}', space=vmem, size = 0x80000, scoped, tag = 'scratch operand']
  #allocation3 [shape = 's32[1]{0}', space=sflag, size = 0x4, scoped, tag = 'scratch operand']
  #allocation4 [shape = 's32[1]{0}', space=sflag, size = 0x4, scoped, tag = 'scoped memory for tpu_custom_call.1']
  #allocation5 [shape = 'u8[8192]{0}', space=smem, size = 0x2000, scoped, tag = 'prefetched SMEM operand 0']
  #allocation6 [shape = 'f32[1,1]{1,0:T(1,128)S(6)}', space=smem, size = 0x200, scoped, tag = 'scoped memory for tpu_custom_call.1']
  #allocation9 [shape = 's32[]', space=sflag, size = 0x4, offset = 0, fixed_abs, tag = 'sflag constant byte address 0x0 - dummy sync flag']
  %s0 = inlined_call_operand.vmem [shape: s32[2048], index: 0, kind: input, shape index: {}]
  %s1 = inlined_call_operand.vmem [shape: f32[256,64], index: 1, kind: input, shape index: {}]
  %s2 = inlined_call_operand.vmem [shape: f32[256,64], index: 2, kind: input, shape index: {}]
  %s3 = inlined_call_operand.vmem [shape: f32[512,64], index: 3, kind: input, shape index: {}]
  %s4 = inlined_call_operand.vmem [shape: f32[1,256], index: 4, kind: input, shape index: {}]
  %s5 = inlined_call_operand.vmem [shape: f32[1,256], index: 5, kind: input, shape index: {}]
  %s6 = inlined_call_operand.vmem [shape: f32[256,8], index: 6, kind: input, shape index: {}]
  %s7 = inlined_call_operand.<no memory space> [shape: f32[1,1], index: 7, kind: input, shape index: {}]
  %s8 = inlined_call_operand.hbm [shape: f32[1,256], index: 8, kind: output, shape index: {0}]
  %s9 = inlined_call_operand.vmem [shape: f32[256,8], index: 9, kind: output, shape index: {1}]
  %10 = xla_tuple %s8, %s9
  %s11 = sld [smem:[#allocation0]]
  $region109: #{tpu_custom_call.1} parent=0
    _
  %s13 = ssub.s32 1, %s11
  %s14 = scalar_select 0, %s13, %s11
  %s15 = sshll.u32 %s0, 4
  %s16 = int_to_ptr.vmem [resolvable:$true] %s15
  %18 = dma.vmem_to_smem %s16, 256, [#allocation5], [#allocation4]
  %19 = sst [smem:[#allocation6]] %s7
  %20 = dma.done [#allocation4], 256
  %21 = sfence
  $region1: #{tpu_custom_call.1} parent=0
    #allocation7 [shape = 'u8[1024]{0}', space=vmem, size = 0x400, scoped, tag = 'output window, operand 0']
    #allocation8 [shape = 's32[2]{0}', space=sflag, size = 0x8, scoped, tag = 'scoped memory for tpu_custom_call.1']
    %22 = vsyncpa [#allocation8], 0
    %s23 = scalar_lea.sflag [#allocation8], 1
    %24 = vsyncpa %s23, 0
    loop: start=0, step=1, limit=4
    $region2: #{tpu_custom_call.1} parent=1 // loop_pre_header
      _
    $region3: #{tpu_custom_call.1} parent=1 // loop_header
      %s26 = sphi 0, %s30
      %p27 = scmp.ge.s32.totalorder %s26, 4
      %s36 = sphi 0, %s38
      %s39 = sphi 0, %s36
      %s40 = sphi 0, %s39
      %s56 = sphi 0, %s40
      %s62 = sphi 0, %s64
      %s65 = sphi 0, %s62
      %s66 = sphi 0, %s65
      %s82 = sphi 0, %s66
      %s88 = sphi 0, %s90
      %s91 = sphi 0, %s88
      %s92 = sphi 0, %s91
      %s108 = sphi 0, %s92
      %s114 = sphi 0, %s116
      %s117 = sphi 0, %s114
      %s118 = sphi 0, %s117
      %s134 = sphi 0, %s118
      %s140 = sphi 0, %s142
      %s143 = sphi 0, %s140
      %s144 = sphi 0, %s143
      %s160 = sphi 0, %s144
      %s164 = sphi 0, %s164
      %s166 = sphi 0, %s164
      %s167 = sphi 0, %s166
      %s181 = sphi 0, %s167
      %s187 = sphi 0, %s189
      %s190 = sphi 0, %s187
      %s191 = sphi 0, %s190
      %s207 = sphi 0, %s191
      %s213 = sphi 0, %s215
      %s216 = sphi 0, %s213
      %s217 = sphi 0, %s216
      %s233 = sphi 0, %s217
    $region4: #{tpu_custom_call.1} parent=1 // loop_header_branch
      %29 = sbr.rel (%p27) target = $region8
    $region5: #{tpu_custom_call.1} parent=1 // loop_body
      %s31 = ssub.s32 %s26, 1
      %s32 = ssub.s32 %s26, 2
      %s33 = sadd.s32 %s26, 1
      %s34 = ssub.s32 %s26, %s33
      %p35 = scmp.eq.s32.totalorder %s34, 0
      %s37 = sadd.s32 %s36, 1
      %s38 = scalar_select %p35, %s36, %s37
      %p41 = pneg %p35
      %p42 = scmp.eq.s32.totalorder %s26, 1
      %p43 = por %p41, %p42
      %p44 = scmp.ne.s32.totalorder %s36, %s39
      %p45 = scmp.eq.s32.totalorder %s26, 0
      %p46 = por %p44, %p45
      %p47 = scmp.ne.s32.totalorder %s36, %s39
      %p48 = scmp.eq.s32.totalorder %s31, 1
      %p49 = por %p47, %p48
      %p50 = scmp.ne.s32.totalorder %s39, %s40
      %p51 = scmp.eq.s32.totalorder %s31, 0
      %p52 = por %p50, %p51
      %p53 = scmp.ne.s32.totalorder %s39, %s40
      %p54 = scmp.eq.s32.totalorder %s32, 1
      %p55 = por %p53, %p54
      %p57 = scmp.ne.s32.totalorder %s40, %s56
      %p58 = scmp.eq.s32.totalorder %s32, 0
      %p59 = por %p57, %p58
      %s60 = ssub.s32 %s26, %s33
      %p61 = scmp.eq.s32.totalorder %s60, 0
      %s63 = sadd.s32 %s62, 1
      %s64 = scalar_select %p61, %s62, %s63
      %p67 = pneg %p61
      %p68 = scmp.eq.s32.totalorder %s26, 1
      %p69 = por %p67, %p68
      %p70 = scmp.ne.s32.totalorder %s62, %s65
      %p71 = scmp.eq.s32.totalorder %s26, 0
      %p72 = por %p70, %p71
      %p73 = scmp.ne.s32.totalorder %s62, %s65
      %p74 = scmp.eq.s32.totalorder %s31, 1
      %p75 = por %p73, %p74
      %p76 = scmp.ne.s32.totalorder %s65, %s66
      %p77 = scmp.eq.s32.totalorder %s31, 0
      %p78 = por %p76, %p77
      %p79 = scmp.ne.s32.totalorder %s65, %s66
      %p80 = scmp.eq.s32.totalorder %s32, 1
      %p81 = por %p79, %p80
      %p83 = scmp.ne.s32.totalorder %s66, %s82
      %p84 = scmp.eq.s32.totalorder %s32, 0
      %p85 = por %p83, %p84
      %s86 = ssub.s32 %s26, %s33
      %p87 = scmp.eq.s32.totalorder %s86, 0
      %s89 = sadd.s32 %s88, 1
      %s90 = scalar_select %p87, %s88, %s89
      %p93 = pneg %p87
      %p94 = scmp.eq.s32.totalorder %s26, 1
      %p95 = por %p93, %p94
      %p96 = scmp.ne.s32.totalorder %s88, %s91
      %p97 = scmp.eq.s32.totalorder %s26, 0
      %p98 = por %p96, %p97
      %p99 = scmp.ne.s32.totalorder %s88, %s91
      %p100 = scmp.eq.s32.totalorder %s31, 1
      %p101 = por %p99, %p100
      %p102 = scmp.ne.s32.totalorder %s91, %s92
      %p103 = scmp.eq.s32.totalorder %s31, 0
      %p104 = por %p102, %p103
      %p105 = scmp.ne.s32.totalorder %s91, %s92
      %p106 = scmp.eq.s32.totalorder %s32, 1
      %p107 = por %p105, %p106
      %p109 = scmp.ne.s32.totalorder %s92, %s108
      %p110 = scmp.eq.s32.totalorder %s32, 0
      %p111 = por %p109, %p110
      %s112 = ssub.s32 %s26, %s33
      %p113 = scmp.eq.s32.totalorder %s112, 0
      %s115 = sadd.s32 %s114, 1
      %s116 = scalar_select %p113, %s114, %s115
      %p119 = pneg %p113
      %p120 = scmp.eq.s32.totalorder %s26, 1
      %p121 = por %p119, %p120
      %p122 = scmp.ne.s32.totalorder %s114, %s117
      %p123 = scmp.eq.s32.totalorder %s26, 0
      %p124 = por %p122, %p123
      %p125 = scmp.ne.s32.totalorder %s114, %s117
      %p126 = scmp.eq.s32.totalorder %s31, 1
      %p127 = por %p125, %p126
      %p128 = scmp.ne.s32.totalorder %s117, %s118
      %p129 = scmp.eq.s32.totalorder %s31, 0
      %p130 = por %p128, %p129
      %p131 = scmp.ne.s32.totalorder %s117, %s118
      %p132 = scmp.eq.s32.totalorder %s32, 1
      %p133 = por %p131, %p132
      %p135 = scmp.ne.s32.totalorder %s118, %s134
      %p136 = scmp.eq.s32.totalorder %s32, 0
      %p137 = por %p135, %p136
      %s138 = ssub.s32 %s26, %s33
      %p139 = scmp.eq.s32.totalorder %s138, 0
      %s141 = sadd.s32 %s140, 1
      %s142 = scalar_select %p139, %s140, %s141
      %p145 = pneg %p139
      %p146 = scmp.eq.s32.totalorder %s26, 1
      %p147 = por %p145, %p146
      %p148 = scmp.ne.s32.totalorder %s140, %s143
      %p149 = scmp.eq.s32.totalorder %s26, 0
      %p150 = por %p148, %p149
      %p151 = scmp.ne.s32.totalorder %s140, %s143
      %p152 = scmp.eq.s32.totalorder %s31, 1
      %p153 = por %p151, %p152
      %p154 = scmp.ne.s32.totalorder %s143, %s144
      %p155 = scmp.eq.s32.totalorder %s31, 0
      %p156 = por %p154, %p155
      %p157 = scmp.ne.s32.totalorder %s143, %s144
      %p158 = scmp.eq.s32.totalorder %s32, 1
      %p159 = por %p157, %p158
      %p161 = scmp.ne.s32.totalorder %s144, %s160
      %p162 = scmp.eq.s32.totalorder %s32, 0
      %p163 = por %p161, %p162
      %s165 = sadd.s32 %s164, 1
      %p168 = scmp.eq.s32.totalorder %s26, 1
      %p169 = scmp.ne.s32.totalorder %s164, %s166
      %p170 = scmp.eq.s32.totalorder %s26, 0
      %p171 = por %p169, %p170
      %p172 = scmp.ne.s32.totalorder %s164, %s166
      %p173 = scmp.eq.s32.totalorder %s31, 1
      %p174 = por %p172, %p173
      %p175 = scmp.ne.s32.totalorder %s166, %s167
      %p176 = scmp.eq.s32.totalorder %s31, 0
      %p177 = por %p175, %p176
      %p178 = scmp.ne.s32.totalorder %s166, %s167
      %p179 = scmp.eq.s32.totalorder %s32, 1
      %p180 = por %p178, %p179
      %p182 = scmp.ne.s32.totalorder %s167, %s181
      %p183 = scmp.eq.s32.totalorder %s32, 0
      %p184 = por %p182, %p183
      %s185 = ssub.s32 %s26, %s33
      %p186 = scmp.eq.s32.totalorder %s185, 0
      %s188 = sadd.s32 %s187, 1
      %s189 = scalar_select %p186, %s187, %s188
      %p192 = pneg %p186
      %p193 = scmp.eq.s32.totalorder %s26, 1
      %p194 = por %p192, %p193
      %p195 = scmp.ne.s32.totalorder %s187, %s190
      %p196 = scmp.eq.s32.totalorder %s26, 0
      %p197 = por %p195, %p196
      %p198 = scmp.ne.s32.totalorder %s187, %s190
      %p199 = scmp.eq.s32.totalorder %s31, 1
      %p200 = por %p198, %p199
      %p201 = scmp.ne.s32.totalorder %s190, %s191
      %p202 = scmp.eq.s32.totalorder %s31, 0
      %p203 = por %p201, %p202
      %p204 = scmp.ne.s32.totalorder %s190, %s191
      %p205 = scmp.eq.s32.totalorder %s32, 1
      %p206 = por %p204, %p205
      %p208 = scmp.ne.s32.totalorder %s191, %s207
      %p209 = scmp.eq.s32.totalorder %s32, 0
      %p210 = por %p208, %p209
      %s211 = ssub.s32 %s26, %s33
      %p212 = scmp.eq.s32.totalorder %s211, 0
      %s214 = sadd.s32 %s213, 1
      %s215 = scalar_select %p212, %s213, %s214
      %p218 = pneg %p212
      %p219 = scmp.eq.s32.totalorder %s26, 1
      %p220 = por %p218, %p219
      %p221 = scmp.ne.s32.totalorder %s213, %s216
      %p222 = scmp.eq.s32.totalorder %s26, 0
      %p223 = por %p221, %p222
      %p224 = scmp.ne.s32.totalorder %s213, %s216
      %p225 = scmp.eq.s32.totalorder %s31, 1
      %p226 = por %p224, %p225
      %p227 = scmp.ne.s32.totalorder %s216, %s217
      %p228 = scmp.eq.s32.totalorder %s31, 0
      %p229 = por %p227, %p228
      %p230 = scmp.ne.s32.totalorder %s216, %s217
      %p231 = scmp.eq.s32.totalorder %s32, 1
      %p232 = por %p230, %p231
      %p234 = scmp.ne.s32.totalorder %s217, %s233
      %p235 = scmp.eq.s32.totalorder %s32, 0
      %p236 = por %p234, %p235
      %p237 = scmp.le.s32.totalorder 1, %s26
      %p238 = scmp.lt.s32.totalorder %s26, 3
      %p239 = pnand %p237, %p238
      %p240 = pneg %p239
      // Predicated region
      $region9: #{tpu_custom_call.1} parent=5 // pred_check
        _
      $region10: #{tpu_custom_call.1} parent=5 // pred_check_branch
        %242 = sbr.rel (%p239) target = $region12
      $region11: #{tpu_custom_call.1} parent=5 // pred_region
        %s243 = ssub.s32 %s26, 1
        // Predicated region
        $region13: #{tpu_custom_call.1} parent=11 // pred_check
          %p244 = pneg %p177
        $region14: #{tpu_custom_call.1} parent=11 // pred_check_branch
          %246 = sbr.rel (%p244) target = $region16
        $region15: #{tpu_custom_call.1} parent=11 // pred_region
          _
        $region16: #{tpu_custom_call.1} parent=11 // pred_fallthru
          _
      $region12: #{tpu_custom_call.1} parent=5 // pred_fallthru
        _
      %p247 = scmp.lt.s32.totalorder %s26, 2
      // Predicated region
      $region17: #{tpu_custom_call.1} parent=5 // pred_check
        %p248 = pneg %p247
      $region18: #{tpu_custom_call.1} parent=5 // pred_check_branch
        %250 = sbr.rel (%p248) target = $region20
      $region19: #{tpu_custom_call.1} parent=5 // pred_region
        // Predicated region
        $region21: #{tpu_custom_call.1} parent=19 // pred_check
          %p251 = pneg %p46
        $region22: #{tpu_custom_call.1} parent=19 // pred_check_branch
          %253 = sbr.rel (%p251) target = $region24
        $region23: #{tpu_custom_call.1} parent=19 // pred_region
          %s254 = smul.u32 16, %s26
          %p255 = scmp.lt.s32.totalorder %s254, 31
          %s256 = scalar_select %p255, %s254, 31
          %s257 = smul.addr %s256, 8
          %s258 = scalar_lea.vmem %s1, %s257
          %s259 = smul.u32 16, %s26
        $region24: #{tpu_custom_call.1} parent=19 // pred_fallthru
          _
        // Predicated region
        $region25: #{tpu_custom_call.1} parent=19 // pred_check
          %p260 = pneg %p72
        $region26: #{tpu_custom_call.1} parent=19 // pred_check_branch
          %262 = sbr.rel (%p260) target = $region28
        $region27: #{tpu_custom_call.1} parent=19 // pred_region
          %s263 = smul.u32 16, %s26
          %p264 = scmp.lt.s32.totalorder %s263, 31
          %s265 = scalar_select %p264, %s263, 31
          %s266 = smul.addr %s265, 8
          %s267 = scalar_lea.vmem %s2, %s266
          %s268 = smul.u32 16, %s26
        $region28: #{tpu_custom_call.1} parent=19 // pred_fallthru
          _
        // Predicated region
        $region29: #{tpu_custom_call.1} parent=19 // pred_check
          %p269 = pneg %p98
        $region30: #{tpu_custom_call.1} parent=19 // pred_check_branch
          %271 = sbr.rel (%p269) target = $region32
        $region31: #{tpu_custom_call.1} parent=19 // pred_region
          %p272 = scmp.lt.s32.totalorder %s26, 1
          %s273 = scalar_select %p272, %s26, 1
          %s274 = scalar_lea.vmem %s4, %s273
        $region32: #{tpu_custom_call.1} parent=19 // pred_fallthru
          _
        // Predicated region
        $region33: #{tpu_custom_call.1} parent=19 // pred_check
          %p275 = pneg %p124
        $region34: #{tpu_custom_call.1} parent=19 // pred_check_branch
          %277 = sbr.rel (%p275) target = $region36
        $region35: #{tpu_custom_call.1} parent=19 // pred_region
          %p278 = scmp.lt.s32.totalorder %s26, 1
          %s279 = scalar_select %p278, %s26, 1
          %s280 = scalar_lea.vmem %s5, %s279
        $region36: #{tpu_custom_call.1} parent=19 // pred_fallthru
          _
        // Predicated region
        $region37: #{tpu_custom_call.1} parent=19 // pred_check
          %p281 = pneg %p150
        $region38: #{tpu_custom_call.1} parent=19 // pred_check_branch
          %283 = sbr.rel (%p281) target = $region40
        $region39: #{tpu_custom_call.1} parent=19 // pred_region
          %s284 = smul.u32 16, %s26
          %p285 = scmp.lt.s32.totalorder %s284, 31
          %s286 = scalar_select %p285, %s284, 31
          %s287 = smul.addr %s286, 8
          %s288 = scalar_lea.vmem %s6, %s287
          %s289 = smul.u32 16, %s26
        $region40: #{tpu_custom_call.1} parent=19 // pred_fallthru
          _
      $region20: #{tpu_custom_call.1} parent=5 // pred_fallthru
        _
      %p290 = scmp.le.s32.totalorder 1, %s26
      %p291 = scmp.lt.s32.totalorder %s26, 3
      %p292 = pnand %p290, %p291
      %p293 = pneg %p292
      // Predicated region
      $region41: #{tpu_custom_call.1} parent=5 // pred_check
        _
      $region42: #{tpu_custom_call.1} parent=5 // pred_check_branch
        %295 = sbr.rel (%p292) target = $region44
      $region43: #{tpu_custom_call.1} parent=5 // pred_region
        %s296 = ssub.s32 %s26, 1
        %s297 = smul.u32 16, %s31
        %p298 = scmp.lt.s32.totalorder %s297, 31
        %s299 = scalar_select %p298, %s297, 31
        %s300 = smul.addr %s299, 8
        %s301 = scalar_lea.vmem %s1, %s300
        %p302 = pneg %p52
        %p303 = pneg %p49
        %s304 = smul.u32 16, %s31
        %p305 = scmp.lt.s32.totalorder %s304, 31
        %s306 = scalar_select %p305, %s304, 31
        %s307 = smul.addr %s306, 8
        %s308 = scalar_lea.vmem %s2, %s307
        %p309 = pneg %p78
        %p310 = pneg %p75
        %p311 = scmp.lt.s32.totalorder %s31, 1
        %s312 = scalar_select %p311, %s31, 1
        %s313 = scalar_lea.vmem %s4, %s312
        %p314 = pneg %p104
        %p315 = pneg %p101
        %p316 = scmp.lt.s32.totalorder %s31, 1
        %s317 = scalar_select %p316, %s31, 1
        %s318 = scalar_lea.vmem %s5, %s317
        %p319 = pneg %p130
        %p320 = pneg %p127
        %s321 = smul.u32 16, %s31
        %p322 = scmp.lt.s32.totalorder %s321, 31
        %s323 = scalar_select %p322, %s321, 31
        %s324 = smul.addr %s323, 8
        %s325 = scalar_lea.vmem %s6, %s324
        %p326 = pneg %p156
        %p327 = pneg %p153
        %p328 = pneg %p177
        %p329 = pneg %p174
        %p330 = pneg %p203
        %p331 = pneg %p200
        %s332 = sand.u32 %s190, 1
        %s333 = scalar_lea.sflag [#allocation8], %s332
        %s334 = sand.u32 %s190, 1
        %s335 = scalar_lea.vmem [#allocation7], %s334
        %p336 = pneg %p229
        %p337 = pneg %p226
        %s338 = smul.u32 16, %s31
        %p339 = scmp.lt.s32.totalorder %s338, 31
        %s340 = scalar_select %p339, %s338, 31
        %s341 = smul.addr %s340, 8
        %s342 = scalar_lea.vmem %s9, %s341
        %s343 = smul.u32 16, %s31
        %p344 = scmp.lt.s32.totalorder %s343, 31
        %s345 = scalar_select %p344, %s343, 31
        %s346 = smul.addr %s345, 8
        %s347 = scalar_lea.vmem %s1, %s346
        %s348 = smul.u32 16, %s31
        %s349 = smul.u32 16, %s31
        %p350 = scmp.lt.s32.totalorder %s349, 31
        %s351 = scalar_select %p350, %s349, 31
        %s352 = smul.addr %s351, 8
        %s353 = scalar_lea.vmem %s2, %s352
        %s354 = smul.u32 16, %s31
        %p355 = scmp.lt.s32.totalorder %s31, 1
        %s356 = scalar_select %p355, %s31, 1
        %s357 = scalar_lea.vmem %s4, %s356
        %p358 = scmp.lt.s32.totalorder %s31, 1
        %s359 = scalar_select %p358, %s31, 1
        %s360 = scalar_lea.vmem %s5, %s359
        %s361 = smul.u32 16, %s31
        %p362 = scmp.lt.s32.totalorder %s361, 31
        %s363 = scalar_select %p362, %s361, 31
        %s364 = smul.addr %s363, 8
        %s365 = scalar_lea.vmem %s6, %s364
        %s366 = smul.u32 16, %s31
        %s367 = smul.u32 16, %s31
        %p368 = scmp.lt.s32.totalorder %s367, 31
        %s369 = scalar_select %p368, %s367, 31
        %s370 = smul.addr %s369, 8
        %s371 = scalar_lea.vmem %s9, %s370
        %s372 = smul.u32 16, %s31
        %s373 = smul.u32 %s31, 1024
        loop: start=0, step=1, limit=1024
        $region45: #{tpu_custom_call.1} parent=43 // loop_pre_header
          _
        $region46: #{tpu_custom_call.1} parent=43 // loop_header
          %s375 = sphi 0, %s379
          %p376 = scmp.ge.s32.totalorder %s375, 1024
        $region47: #{tpu_custom_call.1} parent=43 // loop_header_branch
          %378 = sbr.rel (%p376) target = $region51
        $region48: #{tpu_custom_call.1} parent=43 // loop_body
          %s380 = sadd.s32 %s373, %s375
          %s381 = sld [smem:[#allocation5 + %s380]]
          %s382 = scalar_lea.vmem %s3, %s381
          %s383 = scalar_lea.vmem [#allocation2], %s375
          %p385 = scmp.lt.u32.totalorder 1, 8
          %p386 = pneg %p385
          // Predicated region
          $region52: #{tpu_custom_call.1} parent=48 // pred_check
            _
          $region53: #{tpu_custom_call.1} parent=48 // pred_check_branch
            %388 = sbr.rel (%p385) target = $region55
          $region54: #{tpu_custom_call.1} parent=48 // pred_region
            %s404 = sand.u32 1, 7
            %p405 = scmp.eq.s32.totalorder %s404, 0
            %p406 = pneg %p405
            // Predicated region
            $region67: #{tpu_custom_call.1} parent=54 // pred_check
              _
            $region68: #{tpu_custom_call.1} parent=54 // pred_check_branch
              %408 = sbr.rel (%p405) target = $region70
            $region69: #{tpu_custom_call.1} parent=54 // pred_region
              %s409 = sand.u32 1, 7
              %s410 = ssub.s32 1, %s409
              %s411 = scalar_lea.vmem %s382, %s410
              %s412 = ssub.s32 1, %s409
              %s413 = scalar_lea.vmem %s383, %s412 [#allocation2]
              %s414 = sshll.u32 1, %s409
              %s415 = ssub.s32 %s414, 1
              loop: start=0, step=1, limit=1
              $region71: #{tpu_custom_call.1} parent=69 // loop_pre_header
                _
              $region72: #{tpu_custom_call.1} parent=69 // loop_header
                %s417 = sphi 0, %s421
                %p418 = scmp.ge.s32.totalorder %s417, 1
                %s422 = sphi %s411, %s411
                %s423 = sphi %s413, %s413
              $region73: #{tpu_custom_call.1} parent=69 // loop_header_branch
                %420 = sbr.rel (%p418) target = $region77
              $region74: #{tpu_custom_call.1} parent=69 // loop_body
                %v424 = vld [vmem:[%s422] sm:%s415]
                %425 = vst [vmem:[%s423] sm:%s415] %v424
              $region75: #{tpu_custom_call.1} parent=69 // loop_footer
                %s421 = sadd.s32 1, %s417
              $region76: #{tpu_custom_call.1} parent=69 // loop_footer_branch
                %416 = sbr.rel target = $region72
              $region77: #{tpu_custom_call.1} parent=69 // loop_exit
                _
            $region70: #{tpu_custom_call.1} parent=54 // pred_fallthru
              _
          $region55: #{tpu_custom_call.1} parent=48 // pred_fallthru
            _
          // Predicated region
          $region56: #{tpu_custom_call.1} parent=48 // pred_check
            %p389 = pneg %p385
          $region57: #{tpu_custom_call.1} parent=48 // pred_check_branch
            %391 = sbr.rel (%p389) target = $region59
          $region58: #{tpu_custom_call.1} parent=48 // pred_region
            %s392 = sshll.u32 1, 1
            %s393 = ssub.s32 %s392, 1
            loop: start=0, step=1, limit=1
            $region60: #{tpu_custom_call.1} parent=58 // loop_pre_header
              _
            $region61: #{tpu_custom_call.1} parent=58 // loop_header
              %s395 = sphi 0, %s399
              %p396 = scmp.ge.s32.totalorder %s395, 1
              %s400 = sphi %s382, %s382
              %s401 = sphi %s383, %s383
            $region62: #{tpu_custom_call.1} parent=58 // loop_header_branch
              %398 = sbr.rel (%p396) target = $region66
            $region63: #{tpu_custom_call.1} parent=58 // loop_body
              %v402 = vld [vmem:[%s400] sm:%s393]
              %403 = vst [vmem:[%s401] sm:%s393] %v402
            $region64: #{tpu_custom_call.1} parent=58 // loop_footer
              %s399 = sadd.s32 1, %s395
            $region65: #{tpu_custom_call.1} parent=58 // loop_footer_branch
              %394 = sbr.rel target = $region61
            $region66: #{tpu_custom_call.1} parent=58 // loop_exit
              _
          $region59: #{tpu_custom_call.1} parent=48 // pred_fallthru
            _
          // Predicated region
          $region78: #{tpu_custom_call.1} parent=48 // pred_check
            _
          $region79: #{tpu_custom_call.1} parent=48 // pred_check_branch
            %428 = sbr.rel (0) target = $region81
          $region80: #{tpu_custom_call.1} parent=48 // pred_region
            %429 = vsyncadd [#allocation3], 16
          $region81: #{tpu_custom_call.1} parent=48 // pred_fallthru
            _
        $region49: #{tpu_custom_call.1} parent=43 // loop_footer
          %s379 = sadd.s32 1, %s375
        $region50: #{tpu_custom_call.1} parent=43 // loop_footer_branch
          %374 = sbr.rel target = $region46
        $region51: #{tpu_custom_call.1} parent=43 // loop_exit
          _
        %v430 = vld [vmem:[%s347] sm:$0xff]
        %v431 = vld [vmem:[%s347 + $0x8] sm:$0xff]
        %v432 = vld [vmem:[%s347 + $0x10] sm:$0xff]
        %v433 = vld [vmem:[%s347 + $0x18] sm:$0xff]
        %v434 = vld [vmem:[%s347 + $0x20] sm:$0xff]
        %v435 = vld [vmem:[%s347 + $0x28] sm:$0xff]
        %v436 = vld [vmem:[%s347 + $0x30] sm:$0xff]
        %v437 = vld [vmem:[%s347 + $0x38] sm:$0xff]
        %v438 = vld [vmem:[%s347 + $0x40] sm:$0xff]
        %v439 = vld [vmem:[%s347 + $0x48] sm:$0xff]
        %v440 = vld [vmem:[%s347 + $0x50] sm:$0xff]
        %v441 = vld [vmem:[%s347 + $0x58] sm:$0xff]
        %v442 = vld [vmem:[%s347 + $0x60] sm:$0xff]
        %v443 = vld [vmem:[%s347 + $0x68] sm:$0xff]
        %v444 = vld [vmem:[%s347 + $0x70] sm:$0xff]
        %v445 = vld [vmem:[%s347 + $0x78] sm:$0xff]
        %v446 = vld [vmem:[%s353] sm:$0xff]
        %v447 = vld [vmem:[%s353 + $0x8] sm:$0xff]
        %v448 = vld [vmem:[%s353 + $0x10] sm:$0xff]
        %v449 = vld [vmem:[%s353 + $0x18] sm:$0xff]
        %v450 = vld [vmem:[%s353 + $0x20] sm:$0xff]
        %v451 = vld [vmem:[%s353 + $0x28] sm:$0xff]
        %v452 = vld [vmem:[%s353 + $0x30] sm:$0xff]
        %v453 = vld [vmem:[%s353 + $0x38] sm:$0xff]
        %v454 = vld [vmem:[%s353 + $0x40] sm:$0xff]
        %v455 = vld [vmem:[%s353 + $0x48] sm:$0xff]
        %v456 = vld [vmem:[%s353 + $0x50] sm:$0xff]
        %v457 = vld [vmem:[%s353 + $0x58] sm:$0xff]
        %v458 = vld [vmem:[%s353 + $0x60] sm:$0xff]
        %v459 = vld [vmem:[%s353 + $0x68] sm:$0xff]
        %v460 = vld [vmem:[%s353 + $0x70] sm:$0xff]
        %v461 = vld [vmem:[%s353 + $0x78] sm:$0xff]
        %v462 = vmul.f32 %v430, %v446
        %v463 = vmul.f32 %v431, %v447
        %v464 = vmul.f32 %v432, %v448
        %v465 = vmul.f32 %v433, %v449
        %v466 = vmul.f32 %v434, %v450
        %v467 = vmul.f32 %v435, %v451
        %v468 = vmul.f32 %v436, %v452
        %v469 = vmul.f32 %v437, %v453
        %v470 = vmul.f32 %v438, %v454
        %v471 = vmul.f32 %v439, %v455
        %v472 = vmul.f32 %v440, %v456
        %v473 = vmul.f32 %v441, %v457
        %v474 = vmul.f32 %v442, %v458
        %v475 = vmul.f32 %v443, %v459
        %v476 = vmul.f32 %v444, %v460
        %v477 = vmul.f32 %v445, %v461
        %vm478 = vcmask 523264
        %v479 = vsel %vm478, %v462, 0.0
        %480 = vadd.xlane.f32.xlu0 %v479
        %v481 = vpop.xlane.xlu0 %480
        %v482 = vsel %vm478, %v463, 0.0
        %483 = vadd.xlane.f32.xlu0 %v482
        %v484 = vpop.xlane.xlu0 %483
        %v485 = vsel %vm478, %v464, 0.0
        %486 = vadd.xlane.f32.xlu0 %v485
        %v487 = vpop.xlane.xlu0 %486
        %v488 = vsel %vm478, %v465, 0.0
        %489 = vadd.xlane.f32.xlu0 %v488
        %v490 = vpop.xlane.xlu0 %489
        %v491 = vsel %vm478, %v466, 0.0
        %492 = vadd.xlane.f32.xlu0 %v491
        %v493 = vpop.xlane.xlu0 %492
        %v494 = vsel %vm478, %v467, 0.0
        %495 = vadd.xlane.f32.xlu0 %v494
        %v496 = vpop.xlane.xlu0 %495
        %v497 = vsel %vm478, %v468, 0.0
        %498 = vadd.xlane.f32.xlu0 %v497
        %v499 = vpop.xlane.xlu0 %498
        %v500 = vsel %vm478, %v469, 0.0
        %501 = vadd.xlane.f32.xlu0 %v500
        %v502 = vpop.xlane.xlu0 %501
        %v503 = vsel %vm478, %v470, 0.0
        %504 = vadd.xlane.f32.xlu0 %v503
        %v505 = vpop.xlane.xlu0 %504
        %v506 = vsel %vm478, %v471, 0.0
        %507 = vadd.xlane.f32.xlu0 %v506
        %v508 = vpop.xlane.xlu0 %507
        %v509 = vsel %vm478, %v472, 0.0
        %510 = vadd.xlane.f32.xlu0 %v509
        %v511 = vpop.xlane.xlu0 %510
        %v512 = vsel %vm478, %v473, 0.0
        %513 = vadd.xlane.f32.xlu0 %v512
        %v514 = vpop.xlane.xlu0 %513
        %v515 = vsel %vm478, %v474, 0.0
        %516 = vadd.xlane.f32.xlu0 %v515
        %v517 = vpop.xlane.xlu0 %516
        %v518 = vsel %vm478, %v475, 0.0
        %519 = vadd.xlane.f32.xlu0 %v518
        %v520 = vpop.xlane.xlu0 %519
        %v521 = vsel %vm478, %v476, 0.0
        %522 = vadd.xlane.f32.xlu0 %v521
        %v523 = vpop.xlane.xlu0 %522
        %v524 = vsel %vm478, %v477, 0.0
        %525 = vadd.xlane.f32.xlu0 %v524
        %v526 = vpop.xlane.xlu0 %525
        %527 = vxpose.xlu0.b32.start [1/16] %v481, 128
        %528 = vxpose.xlu0.b32.cont [2/16] %v484, 128
        %529 = vxpose.xlu0.b32.cont [3/16] %v487, 128
        %530 = vxpose.xlu0.b32.cont [4/16] %v490, 128
        %531 = vxpose.xlu0.b32.cont [5/16] %v493, 128
        %532 = vxpose.xlu0.b32.cont [6/16] %v496, 128
        %533 = vxpose.xlu0.b32.cont [7/16] %v499, 128
        %534 = vxpose.xlu0.b32.cont [8/16] %v502, 128
        %535 = vxpose.xlu0.b32.cont [9/16] %v505, 128
        %536 = vxpose.xlu0.b32.cont [10/16] %v508, 128
        %537 = vxpose.xlu0.b32.cont [11/16] %v511, 128
        %538 = vxpose.xlu0.b32.cont [12/16] %v514, 128
        %539 = vxpose.xlu0.b32.cont [13/16] %v517, 128
        %540 = vxpose.xlu0.b32.cont [14/16] %v520, 128
        %541 = vxpose.xlu0.b32.cont [15/16] %v523, 128
        %542 = vxpose.xlu0.b32.end [16/16] %v526, 128
        %v543 = vpop.trf.xlu0
        %v544 = vpop.trf.xlu0
        %v545 = vpop.trf.xlu0
        %v546 = vpop.trf.xlu0
        %v547 = vpop.trf.xlu0
        %v548 = vpop.trf.xlu0
        %v549 = vpop.trf.xlu0
        %v550 = vpop.trf.xlu0
        %v551 = vpop.trf.xlu0
        %v552 = vpop.trf.xlu0
        %v553 = vpop.trf.xlu0
        %v554 = vpop.trf.xlu0
        %v555 = vpop.trf.xlu0
        %v556 = vpop.trf.xlu0
        %v557 = vpop.trf.xlu0
        %v558 = vpop.trf.xlu0
        %v559 = vld [vmem:[%s357] sm:$0x1]
        %v560 = vadd.f32 %v543, %v559
        %v561 = vld [vmem:[%s360] sm:$0x1]
        %v562 = vadd.f32 %v560, %v561
        %s563 = sld [smem:[#allocation6]]
        %v564 = vstv %s563
        %v565 = vadd.f32 %v562, %v564
        %566 = vst [vmem:[%s335] sm:$0x1] %v565
        loop: start=0, step=1, limit=1024
        $region82: #{tpu_custom_call.1} parent=43 // loop_pre_header
          _
        $region83: #{tpu_custom_call.1} parent=43 // loop_header
          %s568 = sphi 0, %s572
          %p569 = scmp.ge.s32.totalorder %s568, 1024
        $region84: #{tpu_custom_call.1} parent=43 // loop_header_branch
          %571 = sbr.rel (%p569) target = $region88
        $region85: #{tpu_custom_call.1} parent=43 // loop_body
          %574 = dma.done [#allocation3], 16
        $region86: #{tpu_custom_call.1} parent=43 // loop_footer
          %s572 = sadd.s32 1, %s568
        $region87: #{tpu_custom_call.1} parent=43 // loop_footer_branch
          %567 = sbr.rel target = $region83
        $region88: #{tpu_custom_call.1} parent=43 // loop_exit
          _
        %v575 = vld [vmem:[#allocation2] sm:$0xff]
        %v576 = vld [vmem:[#allocation2 + $0x8] sm:$0xff]
        %v577 = vld [vmem:[#allocation2 + $0x10] sm:$0xff]
        %v578 = vld [vmem:[#allocation2 + $0x18] sm:$0xff]
        %v579 = vld [vmem:[#allocation2 + $0x20] sm:$0xff]
        %v580 = vld [vmem:[#allocation2 + $0x28] sm:$0xff]
        %v581 = vld [vmem:[#allocation2 + $0x30] sm:$0xff]
        %v582 = vld [vmem:[#allocation2 + $0x38] sm:$0xff]
        %v583 = vld [vmem:[#allocation2 + $0x40] sm:$0xff]
        %v584 = vld [vmem:[#allocation2 + $0x48] sm:$0xff]
        %v585 = vld [vmem:[#allocation2 + $0x50] sm:$0xff]
        %v586 = vld [vmem:[#allocation2 + $0x58] sm:$0xff]
        %v587 = vld [vmem:[#allocation2 + $0x60] sm:$0xff]
        %v588 = vld [vmem:[#allocation2 + $0x68] sm:$0xff]
        %v589 = vld [vmem:[#allocation2 + $0x70] sm:$0xff]
        %v590 = vld [vmem:[#allocation2 + $0x78] sm:$0xff]
        %v591 = vld [vmem:[#allocation2 + $0x80] sm:$0xff]
        %v592 = vld [vmem:[#allocation2 + $0x88] sm:$0xff]
        %v593 = vld [vmem:[#allocation2 + $0x90] sm:$0xff]
        %v594 = vld [vmem:[#allocation2 + $0x98] sm:$0xff]
        %v595 = vld [vmem:[#allocation2 + $0xa0] sm:$0xff]
        %v596 = vld [vmem:[#allocation2 + $0xa8] sm:$0xff]
        %v597 = vld [vmem:[#allocation2 + $0xb0] sm:$0xff]
        %v598 = vld [vmem:[#allocation2 + $0xb8] sm:$0xff]
        %v599 = vld [vmem:[#allocation2 + $0xc0] sm:$0xff]
        %v600 = vld [vmem:[#allocation2 + $0xc8] sm:$0xff]
        %v601 = vld [vmem:[#allocation2 + $0xd0] sm:$0xff]
        %v602 = vld [vmem:[#allocation2 + $0xd8] sm:$0xff]
        %v603 = vld [vmem:[#allocation2 + $0xe0] sm:$0xff]
        %v604 = vld [vmem:[#allocation2 + $0xe8] sm:$0xff]
        %v605 = vld [vmem:[#allocation2 + $0xf0] sm:$0xff]
        %v606 = vld [vmem:[#allocation2 + $0xf8] sm:$0xff]
        %v607 = vld [vmem:[#allocation2 + $0x100] sm:$0xff]
        %v608 = vld [vmem:[#allocation2 + $0x108] sm:$0xff]
        %v609 = vld [vmem:[#allocation2 + $0x110] sm:$0xff]
        %v610 = vld [vmem:[#allocation2 + $0x118] sm:$0xff]
        %v611 = vld [vmem:[#allocation2 + $0x120] sm:$0xff]
        %v612 = vld [vmem:[#allocation2 + $0x128] sm:$0xff]
        %v613 = vld [vmem:[#allocation2 + $0x130] sm:$0xff]
        %v614 = vld [vmem:[#allocation2 + $0x138] sm:$0xff]
        %v615 = vld [vmem:[#allocation2 + $0x140] sm:$0xff]
        %v616 = vld [vmem:[#allocation2 + $0x148] sm:$0xff]
        %v617 = vld [vmem:[#allocation2 + $0x150] sm:$0xff]
        %v618 = vld [vmem:[#allocation2 + $0x158] sm:$0xff]
        %v619 = vld [vmem:[#allocation2 + $0x160] sm:$0xff]
        %v620 = vld [vmem:[#allocation2 + $0x168] sm:$0xff]
        %v621 = vld [vmem:[#allocation2 + $0x170] sm:$0xff]
        %v622 = vld [vmem:[#allocation2 + $0x178] sm:$0xff]
        %v623 = vld [vmem:[#allocation2 + $0x180] sm:$0xff]
        %v624 = vld [vmem:[#allocation2 + $0x188] sm:$0xff]
        %v625 = vld [vmem:[#allocation2 + $0x190] sm:$0xff]
        %v626 = vld [vmem:[#allocation2 + $0x198] sm:$0xff]
        %v627 = vld [vmem:[#allocation2 + $0x1a0] sm:$0xff]
        %v628 = vld [vmem:[#allocation2 + $0x1a8] sm:$0xff]
        %v629 = vld [vmem:[#allocation2 + $0x1b0] sm:$0xff]
        %v630 = vld [vmem:[#allocation2 + $0x1b8] sm:$0xff]
        %v631 = vld [vmem:[#allocation2 + $0x1c0] sm:$0xff]
        %v632 = vld [vmem:[#allocation2 + $0x1c8] sm:$0xff]
        %v633 = vld [vmem:[#allocation2 + $0x1d0] sm:$0xff]
        %v634 = vld [vmem:[#allocation2 + $0x1d8] sm:$0xff]
        %v635 = vld [vmem:[#allocation2 + $0x1e0] sm:$0xff]
        %v636 = vld [vmem:[#allocation2 + $0x1e8] sm:$0xff]
        %v637 = vld [vmem:[#allocation2 + $0x1f0] sm:$0xff]
        %v638 = vld [vmem:[#allocation2 + $0x1f8] sm:$0xff]
        %v639 = vld [vmem:[#allocation2 + $0x200] sm:$0xff]
        %v640 = vld [vmem:[#allocation2 + $0x208] sm:$0xff]
        %v641 = vld [vmem:[#allocation2 + $0x210] sm:$0xff]
        %v642 = vld [vmem:[#allocation2 + $0x218] sm:$0xff]
        %v643 = vld [vmem:[#allocation2 + $0x220] sm:$0xff]
        %v644 = vld [vmem:[#allocation2 + $0x228] sm:$0xff]
        %v645 = vld [vmem:[#allocation2 + $0x230] sm:$0xff]
        %v646 = vld [vmem:[#allocation2 + $0x238] sm:$0xff]
        %v647 = vld [vmem:[#allocation2 + $0x240] sm:$0xff]
        %v648 = vld [vmem:[#allocation2 + $0x248] sm:$0xff]
        %v649 = vld [vmem:[#allocation2 + $0x250] sm:$0xff]
        %v650 = vld [vmem:[#allocation2 + $0x258] sm:$0xff]
        %v651 = vld [vmem:[#allocation2 + $0x260] sm:$0xff]
        %v652 = vld [vmem:[#allocation2 + $0x268] sm:$0xff]
        %v653 = vld [vmem:[#allocation2 + $0x270] sm:$0xff]
        %v654 = vld [vmem:[#allocation2 + $0x278] sm:$0xff]
        %v655 = vld [vmem:[#allocation2 + $0x280] sm:$0xff]
        %v656 = vld [vmem:[#allocation2 + $0x288] sm:$0xff]
        %v657 = vld [vmem:[#allocation2 + $0x290] sm:$0xff]
        %v658 = vld [vmem:[#allocation2 + $0x298] sm:$0xff]
        %v659 = vld [vmem:[#allocation2 + $0x2a0] sm:$0xff]
        %v660 = vld [vmem:[#allocation2 + $0x2a8] sm:$0xff]
        %v661 = vld [vmem:[#allocation2 + $0x2b0] sm:$0xff]
        %v662 = vld [vmem:[#allocation2 + $0x2b8] sm:$0xff]
        %v663 = vld [vmem:[#allocation2 + $0x2c0] sm:$0xff]
        %v664 = vld [vmem:[#allocation2 + $0x2c8] sm:$0xff]
        %v665 = vld [vmem:[#allocation2 + $0x2d0] sm:$0xff]
        %v666 = vld [vmem:[#allocation2 + $0x2d8] sm:$0xff]
        %v667 = vld [vmem:[#allocation2 + $0x2e0] sm:$0xff]
        %v668 = vld [vmem:[#allocation2 + $0x2e8] sm:$0xff]
        %v669 = vld [vmem:[#allocation2 + $0x2f0] sm:$0xff]
        %v670 = vld [vmem:[#allocation2 + $0x2f8] sm:$0xff]
        %v671 = vld [vmem:[#allocation2 + $0x300] sm:$0xff]
        %v672 = vld [vmem:[#allocation2 + $0x308] sm:$0xff]
        %v673 = vld [vmem:[#allocation2 + $0x310] sm:$0xff]
        %v674 = vld [vmem:[#allocation2 + $0x318] sm:$0xff]
        %v675 = vld [vmem:[#allocation2 + $0x320] sm:$0xff]
        %v676 = vld [vmem:[#allocation2 + $0x328] sm:$0xff]
        %v677 = vld [vmem:[#allocation2 + $0x330] sm:$0xff]
        %v678 = vld [vmem:[#allocation2 + $0x338] sm:$0xff]
        %v679 = vld [vmem:[#allocation2 + $0x340] sm:$0xff]
        %v680 = vld [vmem:[#allocation2 + $0x348] sm:$0xff]
        %v681 = vld [vmem:[#allocation2 + $0x350] sm:$0xff]
        %v682 = vld [vmem:[#allocation2 + $0x358] sm:$0xff]
        %v683 = vld [vmem:[#allocation2 + $0x360] sm:$0xff]
        %v684 = vld [vmem:[#allocation2 + $0x368] sm:$0xff]
        %v685 = vld [vmem:[#allocation2 + $0x370] sm:$0xff]
        %v686 = vld [vmem:[#allocation2 + $0x378] sm:$0xff]
        %v687 = vld [vmem:[#allocation2 + $0x380] sm:$0xff]
        %v688 = vld [vmem:[#allocation2 + $0x388] sm:$0xff]
        %v689 = vld [vmem:[#allocation2 + $0x390] sm:$0xff]
        %v690 = vld [vmem:[#allocation2 + $0x398] sm:$0xff]
        %v691 = vld [vmem:[#allocation2 + $0x3a0] sm:$0xff]
        %v692 = vld [vmem:[#allocation2 + $0x3a8] sm:$0xff]
        %v693 = vld [vmem:[#allocation2 + $0x3b0] sm:$0xff]
        %v694 = vld [vmem:[#allocation2 + $0x3b8] sm:$0xff]
        %v695 = vld [vmem:[#allocation2 + $0x3c0] sm:$0xff]
        %v696 = vld [vmem:[#allocation2 + $0x3c8] sm:$0xff]
        %v697 = vld [vmem:[#allocation2 + $0x3d0] sm:$0xff]
        %v698 = vld [vmem:[#allocation2 + $0x3d8] sm:$0xff]
        %v699 = vld [vmem:[#allocation2 + $0x3e0] sm:$0xff]
        %v700 = vld [vmem:[#allocation2 + $0x3e8] sm:$0xff]
        %v701 = vld [vmem:[#allocation2 + $0x3f0] sm:$0xff]
        %v702 = vld [vmem:[#allocation2 + $0x3f8] sm:$0xff]
        %v719 = vcombine.high %v430, %v430
        %v721 = vunpack.c.l.s4 1966171168
        %v722 = vunpack.c.0.s8 %v721
        %v723 = vlaneseq
        %v724 = vshrl.u32 %v723, 7
        %v725 = vsub.s32 %v722, %v724
        %v726 = vrot.slane %v430, %v725
        %v728 = vunpack.c.l.s4 1966171168
        %v729 = vunpack.c.0.s8 %v728
        %v730 = vlaneseq
        %v731 = vshrl.u32 %v730, 7
        %v732 = vsub.s32 %v729, %v731
        %v733 = vrot.slane %v719, %v732
        %v734 = vcombine.high %v726, %v726
        %v735 = vcombine.high %v733, %v733
        %v737 = vunpack.c.l.s4 1966171168
        %v738 = vunpack.c.0.s8 %v737
        %v739 = vlaneseq
        %v740 = vshrl.u32 %v739, 7
        %v741 = vsub.s32 %v738, %v740
        %v742 = vrot.slane %v726, %v741
        %v744 = vunpack.c.l.s4 1966171168
        %v745 = vunpack.c.0.s8 %v744
        %v746 = vlaneseq
        %v747 = vshrl.u32 %v746, 7
        %v748 = vsub.s32 %v745, %v747
        %v749 = vrot.slane %v733, %v748
        %v751 = vunpack.c.l.s4 1966171168
        %v752 = vunpack.c.0.s8 %v751
        %v753 = vlaneseq
        %v754 = vshrl.u32 %v753, 7
        %v755 = vsub.s32 %v752, %v754
        %v756 = vrot.slane %v734, %v755
        %v758 = vunpack.c.l.s4 1966171168
        %v759 = vunpack.c.0.s8 %v758
        %v760 = vlaneseq
        %v761 = vshrl.u32 %v760, 7
        %v762 = vsub.s32 %v759, %v761
        %v763 = vrot.slane %v735, %v762
        %v764 = vcombine.high %v742, %v742
        %v765 = vcombine.high %v749, %v749
        %v766 = vcombine.high %v756, %v756
        %v767 = vcombine.high %v763, %v763
        %v768 = vcombine.high %v431, %v431
        %v770 = vunpack.c.l.s4 1966171168
        %v771 = vunpack.c.0.s8 %v770
        %v772 = vlaneseq
        %v773 = vshrl.u32 %v772, 7
        %v774 = vsub.s32 %v771, %v773
        %v775 = vrot.slane %v431, %v774
        %v777 = vunpack.c.l.s4 1966171168
        %v778 = vunpack.c.0.s8 %v777
        %v779 = vlaneseq
        %v780 = vshrl.u32 %v779, 7
        %v781 = vsub.s32 %v778, %v780
        %v782 = vrot.slane %v768, %v781
        %v783 = vcombine.high %v775, %v775
        %v784 = vcombine.high %v782, %v782
        %v786 = vunpack.c.l.s4 1966171168
        %v787 = vunpack.c.0.s8 %v786
        %v788 = vlaneseq
        %v789 = vshrl.u32 %v788, 7
        %v790 = vsub.s32 %v787, %v789
        %v791 = vrot.slane %v775, %v790
        %v793 = vunpack.c.l.s4 1966171168
        %v794 = vunpack.c.0.s8 %v793
        %v795 = vlaneseq
        %v796 = vshrl.u32 %v795, 7
        %v797 = vsub.s32 %v794, %v796
        %v798 = vrot.slane %v782, %v797
        %v800 = vunpack.c.l.s4 1966171168
        %v801 = vunpack.c.0.s8 %v800
        %v802 = vlaneseq
        %v803 = vshrl.u32 %v802, 7
        %v804 = vsub.s32 %v801, %v803
        %v805 = vrot.slane %v783, %v804
        %v807 = vunpack.c.l.s4 1966171168
        %v808 = vunpack.c.0.s8 %v807
        %v809 = vlaneseq
        %v810 = vshrl.u32 %v809, 7
        %v811 = vsub.s32 %v808, %v810
        %v812 = vrot.slane %v784, %v811
        %v813 = vcombine.high %v791, %v791
        %v814 = vcombine.high %v798, %v798
        %v815 = vcombine.high %v805, %v805
        %v816 = vcombine.high %v812, %v812
        %v817 = vcombine.high %v432, %v432
        %v819 = vunpack.c.l.s4 1966171168
        %v820 = vunpack.c.0.s8 %v819
        %v821 = vlaneseq
        %v822 = vshrl.u32 %v821, 7
        %v823 = vsub.s32 %v820, %v822
        %v824 = vrot.slane %v432, %v823
        %v826 = vunpack.c.l.s4 1966171168
        %v827 = vunpack.c.0.s8 %v826
        %v828 = vlaneseq
        %v829 = vshrl.u32 %v828, 7
        %v830 = vsub.s32 %v827, %v829
        %v831 = vrot.slane %v817, %v830
        %v832 = vcombine.high %v824, %v824
        %v833 = vcombine.high %v831, %v831
        %v835 = vunpack.c.l.s4 1966171168
        %v836 = vunpack.c.0.s8 %v835
        %v837 = vlaneseq
        %v838 = vshrl.u32 %v837, 7
        %v839 = vsub.s32 %v836, %v838
        %v840 = vrot.slane %v824, %v839
        %v842 = vunpack.c.l.s4 1966171168
        %v843 = vunpack.c.0.s8 %v842
        %v844 = vlaneseq
        %v845 = vshrl.u32 %v844, 7
        %v846 = vsub.s32 %v843, %v845
        %v847 = vrot.slane %v831, %v846
        %v849 = vunpack.c.l.s4 1966171168
        %v850 = vunpack.c.0.s8 %v849
        %v851 = vlaneseq
        %v852 = vshrl.u32 %v851, 7
        %v853 = vsub.s32 %v850, %v852
        %v854 = vrot.slane %v832, %v853
        %v856 = vunpack.c.l.s4 1966171168
        %v857 = vunpack.c.0.s8 %v856
        %v858 = vlaneseq
        %v859 = vshrl.u32 %v858, 7
        %v860 = vsub.s32 %v857, %v859
        %v861 = vrot.slane %v833, %v860
        %v862 = vcombine.high %v840, %v840
        %v863 = vcombine.high %v847, %v847
        %v864 = vcombine.high %v854, %v854
        %v865 = vcombine.high %v861, %v861
        %v866 = vcombine.high %v433, %v433
        %v868 = vunpack.c.l.s4 1966171168
        %v869 = vunpack.c.0.s8 %v868
        %v870 = vlaneseq
        %v871 = vshrl.u32 %v870, 7
        %v872 = vsub.s32 %v869, %v871
        %v873 = vrot.slane %v433, %v872
        %v875 = vunpack.c.l.s4 1966171168
        %v876 = vunpack.c.0.s8 %v875
        %v877 = vlaneseq
        %v878 = vshrl.u32 %v877, 7
        %v879 = vsub.s32 %v876, %v878
        %v880 = vrot.slane %v866, %v879
        %v881 = vcombine.high %v873, %v873
        %v882 = vcombine.high %v880, %v880
        %v884 = vunpack.c.l.s4 1966171168
        %v885 = vunpack.c.0.s8 %v884
        %v886 = vlaneseq
        %v887 = vshrl.u32 %v886, 7
        %v888 = vsub.s32 %v885, %v887
        %v889 = vrot.slane %v873, %v888
        %v891 = vunpack.c.l.s4 1966171168
        %v892 = vunpack.c.0.s8 %v891
        %v893 = vlaneseq
        %v894 = vshrl.u32 %v893, 7
        %v895 = vsub.s32 %v892, %v894
        %v896 = vrot.slane %v880, %v895
        %v898 = vunpack.c.l.s4 1966171168
        %v899 = vunpack.c.0.s8 %v898
        %v900 = vlaneseq
        %v901 = vshrl.u32 %v900, 7
        %v902 = vsub.s32 %v899, %v901
        %v903 = vrot.slane %v881, %v902
        %v905 = vunpack.c.l.s4 1966171168
        %v906 = vunpack.c.0.s8 %v905
        %v907 = vlaneseq
        %v908 = vshrl.u32 %v907, 7
        %v909 = vsub.s32 %v906, %v908
        %v910 = vrot.slane %v882, %v909
        %v911 = vcombine.high %v889, %v889
        %v912 = vcombine.high %v896, %v896
        %v913 = vcombine.high %v903, %v903
        %v914 = vcombine.high %v910, %v910
        %v915 = vcombine.high %v434, %v434
        %v917 = vunpack.c.l.s4 1966171168
        %v918 = vunpack.c.0.s8 %v917
        %v919 = vlaneseq
        %v920 = vshrl.u32 %v919, 7
        %v921 = vsub.s32 %v918, %v920
        %v922 = vrot.slane %v434, %v921
        %v924 = vunpack.c.l.s4 1966171168
        %v925 = vunpack.c.0.s8 %v924
        %v926 = vlaneseq
        %v927 = vshrl.u32 %v926, 7
        %v928 = vsub.s32 %v925, %v927
        %v929 = vrot.slane %v915, %v928
        %v930 = vcombine.high %v922, %v922
        %v931 = vcombine.high %v929, %v929
        %v933 = vunpack.c.l.s4 1966171168
        %v934 = vunpack.c.0.s8 %v933
        %v935 = vlaneseq
        %v936 = vshrl.u32 %v935, 7
        %v937 = vsub.s32 %v934, %v936
        %v938 = vrot.slane %v922, %v937
        %v940 = vunpack.c.l.s4 1966171168
        %v941 = vunpack.c.0.s8 %v940
        %v942 = vlaneseq
        %v943 = vshrl.u32 %v942, 7
        %v944 = vsub.s32 %v941, %v943
        %v945 = vrot.slane %v929, %v944
        %v947 = vunpack.c.l.s4 1966171168
        %v948 = vunpack.c.0.s8 %v947
        %v949 = vlaneseq
        %v950 = vshrl.u32 %v949, 7
        %v951 = vsub.s32 %v948, %v950
        %v952 = vrot.slane %v930, %v951
        %v954 = vunpack.c.l.s4 1966171168
        %v955 = vunpack.c.0.s8 %v954
        %v956 = vlaneseq
        %v957 = vshrl.u32 %v956, 7
        %v958 = vsub.s32 %v955, %v957
        %v959 = vrot.slane %v931, %v958
        %v960 = vcombine.high %v938, %v938
        %v961 = vcombine.high %v945, %v945
        %v962 = vcombine.high %v952, %v952
        %v963 = vcombine.high %v959, %v959
        %v964 = vcombine.high %v435, %v435
        %v966 = vunpack.c.l.s4 1966171168
        %v967 = vunpack.c.0.s8 %v966
        %v968 = vlaneseq
        %v969 = vshrl.u32 %v968, 7
        %v970 = vsub.s32 %v967, %v969
        %v971 = vrot.slane %v435, %v970
        %v973 = vunpack.c.l.s4 1966171168
        %v974 = vunpack.c.0.s8 %v973
        %v975 = vlaneseq
        %v976 = vshrl.u32 %v975, 7
        %v977 = vsub.s32 %v974, %v976
        %v978 = vrot.slane %v964, %v977
        %v979 = vcombine.high %v971, %v971
        %v980 = vcombine.high %v978, %v978
        %v982 = vunpack.c.l.s4 1966171168
        %v983 = vunpack.c.0.s8 %v982
        %v984 = vlaneseq
        %v985 = vshrl.u32 %v984, 7
        %v986 = vsub.s32 %v983, %v985
        %v987 = vrot.slane %v971, %v986
        %v989 = vunpack.c.l.s4 1966171168
        %v990 = vunpack.c.0.s8 %v989
        %v991 = vlaneseq
        %v992 = vshrl.u32 %v991, 7
        %v993 = vsub.s32 %v990, %v992
        %v994 = vrot.slane %v978, %v993
        %v996 = vunpack.c.l.s4 1966171168
        %v997 = vunpack.c.0.s8 %v996
        %v998 = vlaneseq
        %v999 = vshrl.u32 %v998, 7
        %v1000 = vsub.s32 %v997, %v999
        %v1001 = vrot.slane %v979, %v1000
        %v1003 = vunpack.c.l.s4 1966171168
        %v1004 = vunpack.c.0.s8 %v1003
        %v1005 = vlaneseq
        %v1006 = vshrl.u32 %v1005, 7
        %v1007 = vsub.s32 %v1004, %v1006
        %v1008 = vrot.slane %v980, %v1007
        %v1009 = vcombine.high %v987, %v987
        %v1010 = vcombine.high %v994, %v994
        %v1011 = vcombine.high %v1001, %v1001
        %v1012 = vcombine.high %v1008, %v1008
        %v1013 = vcombine.high %v436, %v436
        %v1015 = vunpack.c.l.s4 1966171168
        %v1016 = vunpack.c.0.s8 %v1015
        %v1017 = vlaneseq
        %v1018 = vshrl.u32 %v1017, 7
        %v1019 = vsub.s32 %v1016, %v1018
        %v1020 = vrot.slane %v436, %v1019
        %v1022 = vunpack.c.l.s4 1966171168
        %v1023 = vunpack.c.0.s8 %v1022
        %v1024 = vlaneseq
        %v1025 = vshrl.u32 %v1024, 7
        %v1026 = vsub.s32 %v1023, %v1025
        %v1027 = vrot.slane %v1013, %v1026
        %v1028 = vcombine.high %v1020, %v1020
        %v1029 = vcombine.high %v1027, %v1027
        %v1031 = vunpack.c.l.s4 1966171168
        %v1032 = vunpack.c.0.s8 %v1031
        %v1033 = vlaneseq
        %v1034 = vshrl.u32 %v1033, 7
        %v1035 = vsub.s32 %v1032, %v1034
        %v1036 = vrot.slane %v1020, %v1035
        %v1038 = vunpack.c.l.s4 1966171168
        %v1039 = vunpack.c.0.s8 %v1038
        %v1040 = vlaneseq
        %v1041 = vshrl.u32 %v1040, 7
        %v1042 = vsub.s32 %v1039, %v1041
        %v1043 = vrot.slane %v1027, %v1042
        %v1045 = vunpack.c.l.s4 1966171168
        %v1046 = vunpack.c.0.s8 %v1045
        %v1047 = vlaneseq
        %v1048 = vshrl.u32 %v1047, 7
        %v1049 = vsub.s32 %v1046, %v1048
        %v1050 = vrot.slane %v1028, %v1049
        %v1052 = vunpack.c.l.s4 1966171168
        %v1053 = vunpack.c.0.s8 %v1052
        %v1054 = vlaneseq
        %v1055 = vshrl.u32 %v1054, 7
        %v1056 = vsub.s32 %v1053, %v1055
        %v1057 = vrot.slane %v1029, %v1056
        %v1058 = vcombine.high %v1036, %v1036
        %v1059 = vcombine.high %v1043, %v1043
        %v1060 = vcombine.high %v1050, %v1050
        %v1061 = vcombine.high %v1057, %v1057
        %v1062 = vcombine.high %v437, %v437
        %v1064 = vunpack.c.l.s4 1966171168
        %v1065 = vunpack.c.0.s8 %v1064
        %v1066 = vlaneseq
        %v1067 = vshrl.u32 %v1066, 7
        %v1068 = vsub.s32 %v1065, %v1067
        %v1069 = vrot.slane %v437, %v1068
        %v1071 = vunpack.c.l.s4 1966171168
        %v1072 = vunpack.c.0.s8 %v1071
        %v1073 = vlaneseq
        %v1074 = vshrl.u32 %v1073, 7
        %v1075 = vsub.s32 %v1072, %v1074
        %v1076 = vrot.slane %v1062, %v1075
        %v1077 = vcombine.high %v1069, %v1069
        %v1078 = vcombine.high %v1076, %v1076
        %v1080 = vunpack.c.l.s4 1966171168
        %v1081 = vunpack.c.0.s8 %v1080
        %v1082 = vlaneseq
        %v1083 = vshrl.u32 %v1082, 7
        %v1084 = vsub.s32 %v1081, %v1083
        %v1085 = vrot.slane %v1069, %v1084
        %v1087 = vunpack.c.l.s4 1966171168
        %v1088 = vunpack.c.0.s8 %v1087
        %v1089 = vlaneseq
        %v1090 = vshrl.u32 %v1089, 7
        %v1091 = vsub.s32 %v1088, %v1090
        %v1092 = vrot.slane %v1076, %v1091
        %v1094 = vunpack.c.l.s4 1966171168
        %v1095 = vunpack.c.0.s8 %v1094
        %v1096 = vlaneseq
        %v1097 = vshrl.u32 %v1096, 7
        %v1098 = vsub.s32 %v1095, %v1097
        %v1099 = vrot.slane %v1077, %v1098
        %v1101 = vunpack.c.l.s4 1966171168
        %v1102 = vunpack.c.0.s8 %v1101
        %v1103 = vlaneseq
        %v1104 = vshrl.u32 %v1103, 7
        %v1105 = vsub.s32 %v1102, %v1104
        %v1106 = vrot.slane %v1078, %v1105
        %v1107 = vcombine.high %v1085, %v1085
        %v1108 = vcombine.high %v1092, %v1092
        %v1109 = vcombine.high %v1099, %v1099
        %v1110 = vcombine.high %v1106, %v1106
        %v1111 = vcombine.high %v438, %v438
        %v1113 = vunpack.c.l.s4 1966171168
        %v1114 = vunpack.c.0.s8 %v1113
        %v1115 = vlaneseq
        %v1116 = vshrl.u32 %v1115, 7
        %v1117 = vsub.s32 %v1114, %v1116
        %v1118 = vrot.slane %v438, %v1117
        %v1120 = vunpack.c.l.s4 1966171168
        %v1121 = vunpack.c.0.s8 %v1120
        %v1122 = vlaneseq
        %v1123 = vshrl.u32 %v1122, 7
        %v1124 = vsub.s32 %v1121, %v1123
        %v1125 = vrot.slane %v1111, %v1124
        %v1126 = vcombine.high %v1118, %v1118
        %v1127 = vcombine.high %v1125, %v1125
        %v1129 = vunpack.c.l.s4 1966171168
        %v1130 = vunpack.c.0.s8 %v1129
        %v1131 = vlaneseq
        %v1132 = vshrl.u32 %v1131, 7
        %v1133 = vsub.s32 %v1130, %v1132
        %v1134 = vrot.slane %v1118, %v1133
        %v1136 = vunpack.c.l.s4 1966171168
        %v1137 = vunpack.c.0.s8 %v1136
        %v1138 = vlaneseq
        %v1139 = vshrl.u32 %v1138, 7
        %v1140 = vsub.s32 %v1137, %v1139
        %v1141 = vrot.slane %v1125, %v1140
        %v1143 = vunpack.c.l.s4 1966171168
        %v1144 = vunpack.c.0.s8 %v1143
        %v1145 = vlaneseq
        %v1146 = vshrl.u32 %v1145, 7
        %v1147 = vsub.s32 %v1144, %v1146
        %v1148 = vrot.slane %v1126, %v1147
        %v1150 = vunpack.c.l.s4 1966171168
        %v1151 = vunpack.c.0.s8 %v1150
        %v1152 = vlaneseq
        %v1153 = vshrl.u32 %v1152, 7
        %v1154 = vsub.s32 %v1151, %v1153
        %v1155 = vrot.slane %v1127, %v1154
        %v1156 = vcombine.high %v1134, %v1134
        %v1157 = vcombine.high %v1141, %v1141
        %v1158 = vcombine.high %v1148, %v1148
        %v1159 = vcombine.high %v1155, %v1155
        %v1160 = vcombine.high %v439, %v439
        %v1162 = vunpack.c.l.s4 1966171168
        %v1163 = vunpack.c.0.s8 %v1162
        %v1164 = vlaneseq
        %v1165 = vshrl.u32 %v1164, 7
        %v1166 = vsub.s32 %v1163, %v1165
        %v1167 = vrot.slane %v439, %v1166
        %v1169 = vunpack.c.l.s4 1966171168
        %v1170 = vunpack.c.0.s8 %v1169
        %v1171 = vlaneseq
        %v1172 = vshrl.u32 %v1171, 7
        %v1173 = vsub.s32 %v1170, %v1172
        %v1174 = vrot.slane %v1160, %v1173
        %v1175 = vcombine.high %v1167, %v1167
        %v1176 = vcombine.high %v1174, %v1174
        %v1178 = vunpack.c.l.s4 1966171168
        %v1179 = vunpack.c.0.s8 %v1178
        %v1180 = vlaneseq
        %v1181 = vshrl.u32 %v1180, 7
        %v1182 = vsub.s32 %v1179, %v1181
        %v1183 = vrot.slane %v1167, %v1182
        %v1185 = vunpack.c.l.s4 1966171168
        %v1186 = vunpack.c.0.s8 %v1185
        %v1187 = vlaneseq
        %v1188 = vshrl.u32 %v1187, 7
        %v1189 = vsub.s32 %v1186, %v1188
        %v1190 = vrot.slane %v1174, %v1189
        %v1192 = vunpack.c.l.s4 1966171168
        %v1193 = vunpack.c.0.s8 %v1192
        %v1194 = vlaneseq
        %v1195 = vshrl.u32 %v1194, 7
        %v1196 = vsub.s32 %v1193, %v1195
        %v1197 = vrot.slane %v1175, %v1196
        %v1199 = vunpack.c.l.s4 1966171168
        %v1200 = vunpack.c.0.s8 %v1199
        %v1201 = vlaneseq
        %v1202 = vshrl.u32 %v1201, 7
        %v1203 = vsub.s32 %v1200, %v1202
        %v1204 = vrot.slane %v1176, %v1203
        %v1205 = vcombine.high %v1183, %v1183
        %v1206 = vcombine.high %v1190, %v1190
        %v1207 = vcombine.high %v1197, %v1197
        %v1208 = vcombine.high %v1204, %v1204
        %v1209 = vcombine.high %v440, %v440
        %v1211 = vunpack.c.l.s4 1966171168
        %v1212 = vunpack.c.0.s8 %v1211
        %v1213 = vlaneseq
        %v1214 = vshrl.u32 %v1213, 7
        %v1215 = vsub.s32 %v1212, %v1214
        %v1216 = vrot.slane %v440, %v1215
        %v1218 = vunpack.c.l.s4 1966171168
        %v1219 = vunpack.c.0.s8 %v1218
        %v1220 = vlaneseq
        %v1221 = vshrl.u32 %v1220, 7
        %v1222 = vsub.s32 %v1219, %v1221
        %v1223 = vrot.slane %v1209, %v1222
        %v1224 = vcombine.high %v1216, %v1216
        %v1225 = vcombine.high %v1223, %v1223
        %v1227 = vunpack.c.l.s4 1966171168
        %v1228 = vunpack.c.0.s8 %v1227
        %v1229 = vlaneseq
        %v1230 = vshrl.u32 %v1229, 7
        %v1231 = vsub.s32 %v1228, %v1230
        %v1232 = vrot.slane %v1216, %v1231
        %v1234 = vunpack.c.l.s4 1966171168
        %v1235 = vunpack.c.0.s8 %v1234
        %v1236 = vlaneseq
        %v1237 = vshrl.u32 %v1236, 7
        %v1238 = vsub.s32 %v1235, %v1237
        %v1239 = vrot.slane %v1223, %v1238
        %v1241 = vunpack.c.l.s4 1966171168
        %v1242 = vunpack.c.0.s8 %v1241
        %v1243 = vlaneseq
        %v1244 = vshrl.u32 %v1243, 7
        %v1245 = vsub.s32 %v1242, %v1244
        %v1246 = vrot.slane %v1224, %v1245
        %v1248 = vunpack.c.l.s4 1966171168
        %v1249 = vunpack.c.0.s8 %v1248
        %v1250 = vlaneseq
        %v1251 = vshrl.u32 %v1250, 7
        %v1252 = vsub.s32 %v1249, %v1251
        %v1253 = vrot.slane %v1225, %v1252
        %v1254 = vcombine.high %v1232, %v1232
        %v1255 = vcombine.high %v1239, %v1239
        %v1256 = vcombine.high %v1246, %v1246
        %v1257 = vcombine.high %v1253, %v1253
        %v1258 = vcombine.high %v441, %v441
        %v1260 = vunpack.c.l.s4 1966171168
        %v1261 = vunpack.c.0.s8 %v1260
        %v1262 = vlaneseq
        %v1263 = vshrl.u32 %v1262, 7
        %v1264 = vsub.s32 %v1261, %v1263
        %v1265 = vrot.slane %v441, %v1264
        %v1267 = vunpack.c.l.s4 1966171168
        %v1268 = vunpack.c.0.s8 %v1267
        %v1269 = vlaneseq
        %v1270 = vshrl.u32 %v1269, 7
        %v1271 = vsub.s32 %v1268, %v1270
        %v1272 = vrot.slane %v1258, %v1271
        %v1273 = vcombine.high %v1265, %v1265
        %v1274 = vcombine.high %v1272, %v1272
        %v1276 = vunpack.c.l.s4 1966171168
        %v1277 = vunpack.c.0.s8 %v1276
        %v1278 = vlaneseq
        %v1279 = vshrl.u32 %v1278, 7
        %v1280 = vsub.s32 %v1277, %v1279
        %v1281 = vrot.slane %v1265, %v1280
        %v1283 = vunpack.c.l.s4 1966171168
        %v1284 = vunpack.c.0.s8 %v1283
        %v1285 = vlaneseq
        %v1286 = vshrl.u32 %v1285, 7
        %v1287 = vsub.s32 %v1284, %v1286
        %v1288 = vrot.slane %v1272, %v1287
        %v1290 = vunpack.c.l.s4 1966171168
        %v1291 = vunpack.c.0.s8 %v1290
        %v1292 = vlaneseq
        %v1293 = vshrl.u32 %v1292, 7
        %v1294 = vsub.s32 %v1291, %v1293
        %v1295 = vrot.slane %v1273, %v1294
        %v1297 = vunpack.c.l.s4 1966171168
        %v1298 = vunpack.c.0.s8 %v1297
        %v1299 = vlaneseq
        %v1300 = vshrl.u32 %v1299, 7
        %v1301 = vsub.s32 %v1298, %v1300
        %v1302 = vrot.slane %v1274, %v1301
        %v1303 = vcombine.high %v1281, %v1281
        %v1304 = vcombine.high %v1288, %v1288
        %v1305 = vcombine.high %v1295, %v1295
        %v1306 = vcombine.high %v1302, %v1302
        %v1307 = vcombine.high %v442, %v442
        %v1309 = vunpack.c.l.s4 1966171168
        %v1310 = vunpack.c.0.s8 %v1309
        %v1311 = vlaneseq
        %v1312 = vshrl.u32 %v1311, 7
        %v1313 = vsub.s32 %v1310, %v1312
        %v1314 = vrot.slane %v442, %v1313
        %v1316 = vunpack.c.l.s4 1966171168
        %v1317 = vunpack.c.0.s8 %v1316
        %v1318 = vlaneseq
        %v1319 = vshrl.u32 %v1318, 7
        %v1320 = vsub.s32 %v1317, %v1319
        %v1321 = vrot.slane %v1307, %v1320
        %v1322 = vcombine.high %v1314, %v1314
        %v1323 = vcombine.high %v1321, %v1321
        %v1325 = vunpack.c.l.s4 1966171168
        %v1326 = vunpack.c.0.s8 %v1325
        %v1327 = vlaneseq
        %v1328 = vshrl.u32 %v1327, 7
        %v1329 = vsub.s32 %v1326, %v1328
        %v1330 = vrot.slane %v1314, %v1329
        %v1332 = vunpack.c.l.s4 1966171168
        %v1333 = vunpack.c.0.s8 %v1332
        %v1334 = vlaneseq
        %v1335 = vshrl.u32 %v1334, 7
        %v1336 = vsub.s32 %v1333, %v1335
        %v1337 = vrot.slane %v1321, %v1336
        %v1339 = vunpack.c.l.s4 1966171168
        %v1340 = vunpack.c.0.s8 %v1339
        %v1341 = vlaneseq
        %v1342 = vshrl.u32 %v1341, 7
        %v1343 = vsub.s32 %v1340, %v1342
        %v1344 = vrot.slane %v1322, %v1343
        %v1346 = vunpack.c.l.s4 1966171168
        %v1347 = vunpack.c.0.s8 %v1346
        %v1348 = vlaneseq
        %v1349 = vshrl.u32 %v1348, 7
        %v1350 = vsub.s32 %v1347, %v1349
        %v1351 = vrot.slane %v1323, %v1350
        %v1352 = vcombine.high %v1330, %v1330
        %v1353 = vcombine.high %v1337, %v1337
        %v1354 = vcombine.high %v1344, %v1344
        %v1355 = vcombine.high %v1351, %v1351
        %v1356 = vcombine.high %v443, %v443
        %v1358 = vunpack.c.l.s4 1966171168
        %v1359 = vunpack.c.0.s8 %v1358
        %v1360 = vlaneseq
        %v1361 = vshrl.u32 %v1360, 7
        %v1362 = vsub.s32 %v1359, %v1361
        %v1363 = vrot.slane %v443, %v1362
        %v1365 = vunpack.c.l.s4 1966171168
        %v1366 = vunpack.c.0.s8 %v1365
        %v1367 = vlaneseq
        %v1368 = vshrl.u32 %v1367, 7
        %v1369 = vsub.s32 %v1366, %v1368
        %v1370 = vrot.slane %v1356, %v1369
        %v1371 = vcombine.high %v1363, %v1363
        %v1372 = vcombine.high %v1370, %v1370
        %v1374 = vunpack.c.l.s4 1966171168
        %v1375 = vunpack.c.0.s8 %v1374
        %v1376 = vlaneseq
        %v1377 = vshrl.u32 %v1376, 7
        %v1378 = vsub.s32 %v1375, %v1377
        %v1379 = vrot.slane %v1363, %v1378
        %v1381 = vunpack.c.l.s4 1966171168
        %v1382 = vunpack.c.0.s8 %v1381
        %v1383 = vlaneseq
        %v1384 = vshrl.u32 %v1383, 7
        %v1385 = vsub.s32 %v1382, %v1384
        %v1386 = vrot.slane %v1370, %v1385
        %v1388 = vunpack.c.l.s4 1966171168
        %v1389 = vunpack.c.0.s8 %v1388
        %v1390 = vlaneseq
        %v1391 = vshrl.u32 %v1390, 7
        %v1392 = vsub.s32 %v1389, %v1391
        %v1393 = vrot.slane %v1371, %v1392
        %v1395 = vunpack.c.l.s4 1966171168
        %v1396 = vunpack.c.0.s8 %v1395
        %v1397 = vlaneseq
        %v1398 = vshrl.u32 %v1397, 7
        %v1399 = vsub.s32 %v1396, %v1398
        %v1400 = vrot.slane %v1372, %v1399
        %v1401 = vcombine.high %v1379, %v1379
        %v1402 = vcombine.high %v1386, %v1386
        %v1403 = vcombine.high %v1393, %v1393
        %v1404 = vcombine.high %v1400, %v1400
        %v1405 = vcombine.high %v444, %v444
        %v1407 = vunpack.c.l.s4 1966171168
        %v1408 = vunpack.c.0.s8 %v1407
        %v1409 = vlaneseq
        %v1410 = vshrl.u32 %v1409, 7
        %v1411 = vsub.s32 %v1408, %v1410
        %v1412 = vrot.slane %v444, %v1411
        %v1414 = vunpack.c.l.s4 1966171168
        %v1415 = vunpack.c.0.s8 %v1414
        %v1416 = vlaneseq
        %v1417 = vshrl.u32 %v1416, 7
        %v1418 = vsub.s32 %v1415, %v1417
        %v1419 = vrot.slane %v1405, %v1418
        %v1420 = vcombine.high %v1412, %v1412
        %v1421 = vcombine.high %v1419, %v1419
        %v1423 = vunpack.c.l.s4 1966171168
        %v1424 = vunpack.c.0.s8 %v1423
        %v1425 = vlaneseq
        %v1426 = vshrl.u32 %v1425, 7
        %v1427 = vsub.s32 %v1424, %v1426
        %v1428 = vrot.slane %v1412, %v1427
        %v1430 = vunpack.c.l.s4 1966171168
        %v1431 = vunpack.c.0.s8 %v1430
        %v1432 = vlaneseq
        %v1433 = vshrl.u32 %v1432, 7
        %v1434 = vsub.s32 %v1431, %v1433
        %v1435 = vrot.slane %v1419, %v1434
        %v1437 = vunpack.c.l.s4 1966171168
        %v1438 = vunpack.c.0.s8 %v1437
        %v1439 = vlaneseq
        %v1440 = vshrl.u32 %v1439, 7
        %v1441 = vsub.s32 %v1438, %v1440
        %v1442 = vrot.slane %v1420, %v1441
        %v1444 = vunpack.c.l.s4 1966171168
        %v1445 = vunpack.c.0.s8 %v1444
        %v1446 = vlaneseq
        %v1447 = vshrl.u32 %v1446, 7
        %v1448 = vsub.s32 %v1445, %v1447
        %v1449 = vrot.slane %v1421, %v1448
        %v1450 = vcombine.high %v1428, %v1428
        %v1451 = vcombine.high %v1435, %v1435
        %v1452 = vcombine.high %v1442, %v1442
        %v1453 = vcombine.high %v1449, %v1449
        %v1454 = vcombine.high %v445, %v445
        %v1456 = vunpack.c.l.s4 1966171168
        %v1457 = vunpack.c.0.s8 %v1456
        %v1458 = vlaneseq
        %v1459 = vshrl.u32 %v1458, 7
        %v1460 = vsub.s32 %v1457, %v1459
        %v1461 = vrot.slane %v445, %v1460
        %v1463 = vunpack.c.l.s4 1966171168
        %v1464 = vunpack.c.0.s8 %v1463
        %v1465 = vlaneseq
        %v1466 = vshrl.u32 %v1465, 7
        %v1467 = vsub.s32 %v1464, %v1466
        %v1468 = vrot.slane %v1454, %v1467
        %v1469 = vcombine.high %v1461, %v1461
        %v1470 = vcombine.high %v1468, %v1468
        %v1472 = vunpack.c.l.s4 1966171168
        %v1473 = vunpack.c.0.s8 %v1472
        %v1474 = vlaneseq
        %v1475 = vshrl.u32 %v1474, 7
        %v1476 = vsub.s32 %v1473, %v1475
        %v1477 = vrot.slane %v1461, %v1476
        %v1479 = vunpack.c.l.s4 1966171168
        %v1480 = vunpack.c.0.s8 %v1479
        %v1481 = vlaneseq
        %v1482 = vshrl.u32 %v1481, 7
        %v1483 = vsub.s32 %v1480, %v1482
        %v1484 = vrot.slane %v1468, %v1483
        %v1486 = vunpack.c.l.s4 1966171168
        %v1487 = vunpack.c.0.s8 %v1486
        %v1488 = vlaneseq
        %v1489 = vshrl.u32 %v1488, 7
        %v1490 = vsub.s32 %v1487, %v1489
        %v1491 = vrot.slane %v1469, %v1490
        %v1493 = vunpack.c.l.s4 1966171168
        %v1494 = vunpack.c.0.s8 %v1493
        %v1495 = vlaneseq
        %v1496 = vshrl.u32 %v1495, 7
        %v1497 = vsub.s32 %v1494, %v1496
        %v1498 = vrot.slane %v1470, %v1497
        %v1499 = vcombine.high %v1477, %v1477
        %v1500 = vcombine.high %v1484, %v1484
        %v1501 = vcombine.high %v1491, %v1491
        %v1502 = vcombine.high %v1498, %v1498
        %v1503 = vlaneseq
        %v1504 = vshrl.u32 %v1503, 7
        %v1505 = vsub.s32 0, %v1504
        %v1506 = vrot.slane %v742, %v1505
        %v1507 = vlaneseq
        %v1508 = vshrl.u32 %v1507, 7
        %v1509 = vsub.s32 0, %v1508
        %v1510 = vrot.slane %v756, %v1509
        %v1511 = vlaneseq
        %v1512 = vshrl.u32 %v1511, 7
        %v1513 = vsub.s32 0, %v1512
        %v1514 = vrot.slane %v764, %v1513
        %v1515 = vlaneseq
        %v1516 = vshrl.u32 %v1515, 7
        %v1517 = vsub.s32 0, %v1516
        %v1518 = vrot.slane %v766, %v1517
        %v1519 = vlaneseq
        %v1520 = vshrl.u32 %v1519, 7
        %v1521 = vsub.s32 0, %v1520
        %v1522 = vrot.slane %v749, %v1521
        %v1523 = vlaneseq
        %v1524 = vshrl.u32 %v1523, 7
        %v1525 = vsub.s32 0, %v1524
        %v1526 = vrot.slane %v763, %v1525
        %v1527 = vlaneseq
        %v1528 = vshrl.u32 %v1527, 7
        %v1529 = vsub.s32 0, %v1528
        %v1530 = vrot.slane %v765, %v1529
        %v1531 = vlaneseq
        %v1532 = vshrl.u32 %v1531, 7
        %v1533 = vsub.s32 0, %v1532
        %v1534 = vrot.slane %v767, %v1533
        %v1535 = vlaneseq
        %v1536 = vshrl.u32 %v1535, 7
        %v1537 = vsub.s32 0, %v1536
        %v1538 = vrot.slane %v791, %v1537
        %v1539 = vlaneseq
        %v1540 = vshrl.u32 %v1539, 7
        %v1541 = vsub.s32 0, %v1540
        %v1542 = vrot.slane %v805, %v1541
        %v1543 = vlaneseq
        %v1544 = vshrl.u32 %v1543, 7
        %v1545 = vsub.s32 0, %v1544
        %v1546 = vrot.slane %v813, %v1545
        %v1547 = vlaneseq
        %v1548 = vshrl.u32 %v1547, 7
        %v1549 = vsub.s32 0, %v1548
        %v1550 = vrot.slane %v815, %v1549
        %v1551 = vlaneseq
        %v1552 = vshrl.u32 %v1551, 7
        %v1553 = vsub.s32 0, %v1552
        %v1554 = vrot.slane %v798, %v1553
        %v1555 = vlaneseq
        %v1556 = vshrl.u32 %v1555, 7
        %v1557 = vsub.s32 0, %v1556
        %v1558 = vrot.slane %v812, %v1557
        %v1559 = vlaneseq
        %v1560 = vshrl.u32 %v1559, 7
        %v1561 = vsub.s32 0, %v1560
        %v1562 = vrot.slane %v814, %v1561
        %v1563 = vlaneseq
        %v1564 = vshrl.u32 %v1563, 7
        %v1565 = vsub.s32 0, %v1564
        %v1566 = vrot.slane %v816, %v1565
        %v1567 = vlaneseq
        %v1568 = vshrl.u32 %v1567, 7
        %v1569 = vsub.s32 0, %v1568
        %v1570 = vrot.slane %v840, %v1569
        %v1571 = vlaneseq
        %v1572 = vshrl.u32 %v1571, 7
        %v1573 = vsub.s32 0, %v1572
        %v1574 = vrot.slane %v854, %v1573
        %v1575 = vlaneseq
        %v1576 = vshrl.u32 %v1575, 7
        %v1577 = vsub.s32 0, %v1576
        %v1578 = vrot.slane %v862, %v1577
        %v1579 = vlaneseq
        %v1580 = vshrl.u32 %v1579, 7
        %v1581 = vsub.s32 0, %v1580
        %v1582 = vrot.slane %v864, %v1581
        %v1583 = vlaneseq
        %v1584 = vshrl.u32 %v1583, 7
        %v1585 = vsub.s32 0, %v1584
        %v1586 = vrot.slane %v847, %v1585
        %v1587 = vlaneseq
        %v1588 = vshrl.u32 %v1587, 7
        %v1589 = vsub.s32 0, %v1588
        %v1590 = vrot.slane %v861, %v1589
        %v1591 = vlaneseq
        %v1592 = vshrl.u32 %v1591, 7
        %v1593 = vsub.s32 0, %v1592
        %v1594 = vrot.slane %v863, %v1593
        %v1595 = vlaneseq
        %v1596 = vshrl.u32 %v1595, 7
        %v1597 = vsub.s32 0, %v1596
        %v1598 = vrot.slane %v865, %v1597
        %v1599 = vlaneseq
        %v1600 = vshrl.u32 %v1599, 7
        %v1601 = vsub.s32 0, %v1600
        %v1602 = vrot.slane %v889, %v1601
        %v1603 = vlaneseq
        %v1604 = vshrl.u32 %v1603, 7
        %v1605 = vsub.s32 0, %v1604
        %v1606 = vrot.slane %v903, %v1605
        %v1607 = vlaneseq
        %v1608 = vshrl.u32 %v1607, 7
        %v1609 = vsub.s32 0, %v1608
        %v1610 = vrot.slane %v911, %v1609
        %v1611 = vlaneseq
        %v1612 = vshrl.u32 %v1611, 7
        %v1613 = vsub.s32 0, %v1612
        %v1614 = vrot.slane %v913, %v1613
        %v1615 = vlaneseq
        %v1616 = vshrl.u32 %v1615, 7
        %v1617 = vsub.s32 0, %v1616
        %v1618 = vrot.slane %v896, %v1617
        %v1619 = vlaneseq
        %v1620 = vshrl.u32 %v1619, 7
        %v1621 = vsub.s32 0, %v1620
        %v1622 = vrot.slane %v910, %v1621
        %v1623 = vlaneseq
        %v1624 = vshrl.u32 %v1623, 7
        %v1625 = vsub.s32 0, %v1624
        %v1626 = vrot.slane %v912, %v1625
        %v1627 = vlaneseq
        %v1628 = vshrl.u32 %v1627, 7
        %v1629 = vsub.s32 0, %v1628
        %v1630 = vrot.slane %v914, %v1629
        %v1631 = vlaneseq
        %v1632 = vshrl.u32 %v1631, 7
        %v1633 = vsub.s32 0, %v1632
        %v1634 = vrot.slane %v938, %v1633
        %v1635 = vlaneseq
        %v1636 = vshrl.u32 %v1635, 7
        %v1637 = vsub.s32 0, %v1636
        %v1638 = vrot.slane %v952, %v1637
        %v1639 = vlaneseq
        %v1640 = vshrl.u32 %v1639, 7
        %v1641 = vsub.s32 0, %v1640
        %v1642 = vrot.slane %v960, %v1641
        %v1643 = vlaneseq
        %v1644 = vshrl.u32 %v1643, 7
        %v1645 = vsub.s32 0, %v1644
        %v1646 = vrot.slane %v962, %v1645
        %v1647 = vlaneseq
        %v1648 = vshrl.u32 %v1647, 7
        %v1649 = vsub.s32 0, %v1648
        %v1650 = vrot.slane %v945, %v1649
        %v1651 = vlaneseq
        %v1652 = vshrl.u32 %v1651, 7
        %v1653 = vsub.s32 0, %v1652
        %v1654 = vrot.slane %v959, %v1653
        %v1655 = vlaneseq
        %v1656 = vshrl.u32 %v1655, 7
        %v1657 = vsub.s32 0, %v1656
        %v1658 = vrot.slane %v961, %v1657
        %v1659 = vlaneseq
        %v1660 = vshrl.u32 %v1659, 7
        %v1661 = vsub.s32 0, %v1660
        %v1662 = vrot.slane %v963, %v1661
        %v1663 = vlaneseq
        %v1664 = vshrl.u32 %v1663, 7
        %v1665 = vsub.s32 0, %v1664
        %v1666 = vrot.slane %v987, %v1665
        %v1667 = vlaneseq
        %v1668 = vshrl.u32 %v1667, 7
        %v1669 = vsub.s32 0, %v1668
        %v1670 = vrot.slane %v1001, %v1669
        %v1671 = vlaneseq
        %v1672 = vshrl.u32 %v1671, 7
        %v1673 = vsub.s32 0, %v1672
        %v1674 = vrot.slane %v1009, %v1673
        %v1675 = vlaneseq
        %v1676 = vshrl.u32 %v1675, 7
        %v1677 = vsub.s32 0, %v1676
        %v1678 = vrot.slane %v1011, %v1677
        %v1679 = vlaneseq
        %v1680 = vshrl.u32 %v1679, 7
        %v1681 = vsub.s32 0, %v1680
        %v1682 = vrot.slane %v994, %v1681
        %v1683 = vlaneseq
        %v1684 = vshrl.u32 %v1683, 7
        %v1685 = vsub.s32 0, %v1684
        %v1686 = vrot.slane %v1008, %v1685
        %v1687 = vlaneseq
        %v1688 = vshrl.u32 %v1687, 7
        %v1689 = vsub.s32 0, %v1688
        %v1690 = vrot.slane %v1010, %v1689
        %v1691 = vlaneseq
        %v1692 = vshrl.u32 %v1691, 7
        %v1693 = vsub.s32 0, %v1692
        %v1694 = vrot.slane %v1012, %v1693
        %v1695 = vlaneseq
        %v1696 = vshrl.u32 %v1695, 7
        %v1697 = vsub.s32 0, %v1696
        %v1698 = vrot.slane %v1036, %v1697
        %v1699 = vlaneseq
        %v1700 = vshrl.u32 %v1699, 7
        %v1701 = vsub.s32 0, %v1700
        %v1702 = vrot.slane %v1050, %v1701
        %v1703 = vlaneseq
        %v1704 = vshrl.u32 %v1703, 7
        %v1705 = vsub.s32 0, %v1704
        %v1706 = vrot.slane %v1058, %v1705
        %v1707 = vlaneseq
        %v1708 = vshrl.u32 %v1707, 7
        %v1709 = vsub.s32 0, %v1708
        %v1710 = vrot.slane %v1060, %v1709
        %v1711 = vlaneseq
        %v1712 = vshrl.u32 %v1711, 7
        %v1713 = vsub.s32 0, %v1712
        %v1714 = vrot.slane %v1043, %v1713
        %v1715 = vlaneseq
        %v1716 = vshrl.u32 %v1715, 7
        %v1717 = vsub.s32 0, %v1716
        %v1718 = vrot.slane %v1057, %v1717
        %v1719 = vlaneseq
        %v1720 = vshrl.u32 %v1719, 7
        %v1721 = vsub.s32 0, %v1720
        %v1722 = vrot.slane %v1059, %v1721
        %v1723 = vlaneseq
        %v1724 = vshrl.u32 %v1723, 7
        %v1725 = vsub.s32 0, %v1724
        %v1726 = vrot.slane %v1061, %v1725
        %v1727 = vlaneseq
        %v1728 = vshrl.u32 %v1727, 7
        %v1729 = vsub.s32 0, %v1728
        %v1730 = vrot.slane %v1085, %v1729
        %v1731 = vlaneseq
        %v1732 = vshrl.u32 %v1731, 7
        %v1733 = vsub.s32 0, %v1732
        %v1734 = vrot.slane %v1099, %v1733
        %v1735 = vlaneseq
        %v1736 = vshrl.u32 %v1735, 7
        %v1737 = vsub.s32 0, %v1736
        %v1738 = vrot.slane %v1107, %v1737
        %v1739 = vlaneseq
        %v1740 = vshrl.u32 %v1739, 7
        %v1741 = vsub.s32 0, %v1740
        %v1742 = vrot.slane %v1109, %v1741
        %v1743 = vlaneseq
        %v1744 = vshrl.u32 %v1743, 7
        %v1745 = vsub.s32 0, %v1744
        %v1746 = vrot.slane %v1092, %v1745
        %v1747 = vlaneseq
        %v1748 = vshrl.u32 %v1747, 7
        %v1749 = vsub.s32 0, %v1748
        %v1750 = vrot.slane %v1106, %v1749
        %v1751 = vlaneseq
        %v1752 = vshrl.u32 %v1751, 7
        %v1753 = vsub.s32 0, %v1752
        %v1754 = vrot.slane %v1108, %v1753
        %v1755 = vlaneseq
        %v1756 = vshrl.u32 %v1755, 7
        %v1757 = vsub.s32 0, %v1756
        %v1758 = vrot.slane %v1110, %v1757
        %v1759 = vlaneseq
        %v1760 = vshrl.u32 %v1759, 7
        %v1761 = vsub.s32 0, %v1760
        %v1762 = vrot.slane %v1134, %v1761
        %v1763 = vlaneseq
        %v1764 = vshrl.u32 %v1763, 7
        %v1765 = vsub.s32 0, %v1764
        %v1766 = vrot.slane %v1148, %v1765
        %v1767 = vlaneseq
        %v1768 = vshrl.u32 %v1767, 7
        %v1769 = vsub.s32 0, %v1768
        %v1770 = vrot.slane %v1156, %v1769
        %v1771 = vlaneseq
        %v1772 = vshrl.u32 %v1771, 7
        %v1773 = vsub.s32 0, %v1772
        %v1774 = vrot.slane %v1158, %v1773
        %v1775 = vlaneseq
        %v1776 = vshrl.u32 %v1775, 7
        %v1777 = vsub.s32 0, %v1776
        %v1778 = vrot.slane %v1141, %v1777
        %v1779 = vlaneseq
        %v1780 = vshrl.u32 %v1779, 7
        %v1781 = vsub.s32 0, %v1780
        %v1782 = vrot.slane %v1155, %v1781
        %v1783 = vlaneseq
        %v1784 = vshrl.u32 %v1783, 7
        %v1785 = vsub.s32 0, %v1784
        %v1786 = vrot.slane %v1157, %v1785
        %v1787 = vlaneseq
        %v1788 = vshrl.u32 %v1787, 7
        %v1789 = vsub.s32 0, %v1788
        %v1790 = vrot.slane %v1159, %v1789
        %v1791 = vlaneseq
        %v1792 = vshrl.u32 %v1791, 7
        %v1793 = vsub.s32 0, %v1792
        %v1794 = vrot.slane %v1183, %v1793
        %v1795 = vlaneseq
        %v1796 = vshrl.u32 %v1795, 7
        %v1797 = vsub.s32 0, %v1796
        %v1798 = vrot.slane %v1197, %v1797
        %v1799 = vlaneseq
        %v1800 = vshrl.u32 %v1799, 7
        %v1801 = vsub.s32 0, %v1800
        %v1802 = vrot.slane %v1205, %v1801
        %v1803 = vlaneseq
        %v1804 = vshrl.u32 %v1803, 7
        %v1805 = vsub.s32 0, %v1804
        %v1806 = vrot.slane %v1207, %v1805
        %v1807 = vlaneseq
        %v1808 = vshrl.u32 %v1807, 7
        %v1809 = vsub.s32 0, %v1808
        %v1810 = vrot.slane %v1190, %v1809
        %v1811 = vlaneseq
        %v1812 = vshrl.u32 %v1811, 7
        %v1813 = vsub.s32 0, %v1812
        %v1814 = vrot.slane %v1204, %v1813
        %v1815 = vlaneseq
        %v1816 = vshrl.u32 %v1815, 7
        %v1817 = vsub.s32 0, %v1816
        %v1818 = vrot.slane %v1206, %v1817
        %v1819 = vlaneseq
        %v1820 = vshrl.u32 %v1819, 7
        %v1821 = vsub.s32 0, %v1820
        %v1822 = vrot.slane %v1208, %v1821
        %v1823 = vlaneseq
        %v1824 = vshrl.u32 %v1823, 7
        %v1825 = vsub.s32 0, %v1824
        %v1826 = vrot.slane %v1232, %v1825
        %v1827 = vlaneseq
        %v1828 = vshrl.u32 %v1827, 7
        %v1829 = vsub.s32 0, %v1828
        %v1830 = vrot.slane %v1246, %v1829
        %v1831 = vlaneseq
        %v1832 = vshrl.u32 %v1831, 7
        %v1833 = vsub.s32 0, %v1832
        %v1834 = vrot.slane %v1254, %v1833
        %v1835 = vlaneseq
        %v1836 = vshrl.u32 %v1835, 7
        %v1837 = vsub.s32 0, %v1836
        %v1838 = vrot.slane %v1256, %v1837
        %v1839 = vlaneseq
        %v1840 = vshrl.u32 %v1839, 7
        %v1841 = vsub.s32 0, %v1840
        %v1842 = vrot.slane %v1239, %v1841
        %v1843 = vlaneseq
        %v1844 = vshrl.u32 %v1843, 7
        %v1845 = vsub.s32 0, %v1844
        %v1846 = vrot.slane %v1253, %v1845
        %v1847 = vlaneseq
        %v1848 = vshrl.u32 %v1847, 7
        %v1849 = vsub.s32 0, %v1848
        %v1850 = vrot.slane %v1255, %v1849
        %v1851 = vlaneseq
        %v1852 = vshrl.u32 %v1851, 7
        %v1853 = vsub.s32 0, %v1852
        %v1854 = vrot.slane %v1257, %v1853
        %v1855 = vlaneseq
        %v1856 = vshrl.u32 %v1855, 7
        %v1857 = vsub.s32 0, %v1856
        %v1858 = vrot.slane %v1281, %v1857
        %v1859 = vlaneseq
        %v1860 = vshrl.u32 %v1859, 7
        %v1861 = vsub.s32 0, %v1860
        %v1862 = vrot.slane %v1295, %v1861
        %v1863 = vlaneseq
        %v1864 = vshrl.u32 %v1863, 7
        %v1865 = vsub.s32 0, %v1864
        %v1866 = vrot.slane %v1303, %v1865
        %v1867 = vlaneseq
        %v1868 = vshrl.u32 %v1867, 7
        %v1869 = vsub.s32 0, %v1868
        %v1870 = vrot.slane %v1305, %v1869
        %v1871 = vlaneseq
        %v1872 = vshrl.u32 %v1871, 7
        %v1873 = vsub.s32 0, %v1872
        %v1874 = vrot.slane %v1288, %v1873
        %v1875 = vlaneseq
        %v1876 = vshrl.u32 %v1875, 7
        %v1877 = vsub.s32 0, %v1876
        %v1878 = vrot.slane %v1302, %v1877
        %v1879 = vlaneseq
        %v1880 = vshrl.u32 %v1879, 7
        %v1881 = vsub.s32 0, %v1880
        %v1882 = vrot.slane %v1304, %v1881
        %v1883 = vlaneseq
        %v1884 = vshrl.u32 %v1883, 7
        %v1885 = vsub.s32 0, %v1884
        %v1886 = vrot.slane %v1306, %v1885
        %v1887 = vlaneseq
        %v1888 = vshrl.u32 %v1887, 7
        %v1889 = vsub.s32 0, %v1888
        %v1890 = vrot.slane %v1330, %v1889
        %v1891 = vlaneseq
        %v1892 = vshrl.u32 %v1891, 7
        %v1893 = vsub.s32 0, %v1892
        %v1894 = vrot.slane %v1344, %v1893
        %v1895 = vlaneseq
        %v1896 = vshrl.u32 %v1895, 7
        %v1897 = vsub.s32 0, %v1896
        %v1898 = vrot.slane %v1352, %v1897
        %v1899 = vlaneseq
        %v1900 = vshrl.u32 %v1899, 7
        %v1901 = vsub.s32 0, %v1900
        %v1902 = vrot.slane %v1354, %v1901
        %v1903 = vlaneseq
        %v1904 = vshrl.u32 %v1903, 7
        %v1905 = vsub.s32 0, %v1904
        %v1906 = vrot.slane %v1337, %v1905
        %v1907 = vlaneseq
        %v1908 = vshrl.u32 %v1907, 7
        %v1909 = vsub.s32 0, %v1908
        %v1910 = vrot.slane %v1351, %v1909
        %v1911 = vlaneseq
        %v1912 = vshrl.u32 %v1911, 7
        %v1913 = vsub.s32 0, %v1912
        %v1914 = vrot.slane %v1353, %v1913
        %v1915 = vlaneseq
        %v1916 = vshrl.u32 %v1915, 7
        %v1917 = vsub.s32 0, %v1916
        %v1918 = vrot.slane %v1355, %v1917
        %v1919 = vlaneseq
        %v1920 = vshrl.u32 %v1919, 7
        %v1921 = vsub.s32 0, %v1920
        %v1922 = vrot.slane %v1379, %v1921
        %v1923 = vlaneseq
        %v1924 = vshrl.u32 %v1923, 7
        %v1925 = vsub.s32 0, %v1924
        %v1926 = vrot.slane %v1393, %v1925
        %v1927 = vlaneseq
        %v1928 = vshrl.u32 %v1927, 7
        %v1929 = vsub.s32 0, %v1928
        %v1930 = vrot.slane %v1401, %v1929
        %v1931 = vlaneseq
        %v1932 = vshrl.u32 %v1931, 7
        %v1933 = vsub.s32 0, %v1932
        %v1934 = vrot.slane %v1403, %v1933
        %v1935 = vlaneseq
        %v1936 = vshrl.u32 %v1935, 7
        %v1937 = vsub.s32 0, %v1936
        %v1938 = vrot.slane %v1386, %v1937
        %v1939 = vlaneseq
        %v1940 = vshrl.u32 %v1939, 7
        %v1941 = vsub.s32 0, %v1940
        %v1942 = vrot.slane %v1400, %v1941
        %v1943 = vlaneseq
        %v1944 = vshrl.u32 %v1943, 7
        %v1945 = vsub.s32 0, %v1944
        %v1946 = vrot.slane %v1402, %v1945
        %v1947 = vlaneseq
        %v1948 = vshrl.u32 %v1947, 7
        %v1949 = vsub.s32 0, %v1948
        %v1950 = vrot.slane %v1404, %v1949
        %v1951 = vlaneseq
        %v1952 = vshrl.u32 %v1951, 7
        %v1953 = vsub.s32 0, %v1952
        %v1954 = vrot.slane %v1428, %v1953
        %v1955 = vlaneseq
        %v1956 = vshrl.u32 %v1955, 7
        %v1957 = vsub.s32 0, %v1956
        %v1958 = vrot.slane %v1442, %v1957
        %v1959 = vlaneseq
        %v1960 = vshrl.u32 %v1959, 7
        %v1961 = vsub.s32 0, %v1960
        %v1962 = vrot.slane %v1450, %v1961
        %v1963 = vlaneseq
        %v1964 = vshrl.u32 %v1963, 7
        %v1965 = vsub.s32 0, %v1964
        %v1966 = vrot.slane %v1452, %v1965
        %v1967 = vlaneseq
        %v1968 = vshrl.u32 %v1967, 7
        %v1969 = vsub.s32 0, %v1968
        %v1970 = vrot.slane %v1435, %v1969
        %v1971 = vlaneseq
        %v1972 = vshrl.u32 %v1971, 7
        %v1973 = vsub.s32 0, %v1972
        %v1974 = vrot.slane %v1449, %v1973
        %v1975 = vlaneseq
        %v1976 = vshrl.u32 %v1975, 7
        %v1977 = vsub.s32 0, %v1976
        %v1978 = vrot.slane %v1451, %v1977
        %v1979 = vlaneseq
        %v1980 = vshrl.u32 %v1979, 7
        %v1981 = vsub.s32 0, %v1980
        %v1982 = vrot.slane %v1453, %v1981
        %v1983 = vlaneseq
        %v1984 = vshrl.u32 %v1983, 7
        %v1985 = vsub.s32 0, %v1984
        %v1986 = vrot.slane %v1477, %v1985
        %v1987 = vlaneseq
        %v1988 = vshrl.u32 %v1987, 7
        %v1989 = vsub.s32 0, %v1988
        %v1990 = vrot.slane %v1491, %v1989
        %v1991 = vlaneseq
        %v1992 = vshrl.u32 %v1991, 7
        %v1993 = vsub.s32 0, %v1992
        %v1994 = vrot.slane %v1499, %v1993
        %v1995 = vlaneseq
        %v1996 = vshrl.u32 %v1995, 7
        %v1997 = vsub.s32 0, %v1996
        %v1998 = vrot.slane %v1501, %v1997
        %v1999 = vlaneseq
        %v2000 = vshrl.u32 %v1999, 7
        %v2001 = vsub.s32 0, %v2000
        %v2002 = vrot.slane %v1484, %v2001
        %v2003 = vlaneseq
        %v2004 = vshrl.u32 %v2003, 7
        %v2005 = vsub.s32 0, %v2004
        %v2006 = vrot.slane %v1498, %v2005
        %v2007 = vlaneseq
        %v2008 = vshrl.u32 %v2007, 7
        %v2009 = vsub.s32 0, %v2008
        %v2010 = vrot.slane %v1500, %v2009
        %v2011 = vlaneseq
        %v2012 = vshrl.u32 %v2011, 7
        %v2013 = vsub.s32 0, %v2012
        %v2014 = vrot.slane %v1502, %v2013
        %v2143 = vmul.f32 %v575, %v1506
        %v2144 = vmul.f32 %v576, %v1510
        %v2145 = vmul.f32 %v577, %v1514
        %v2146 = vmul.f32 %v578, %v1518
        %v2147 = vmul.f32 %v579, %v1522
        %v2148 = vmul.f32 %v580, %v1526
        %v2149 = vmul.f32 %v581, %v1530
        %v2150 = vmul.f32 %v582, %v1534
        %v2151 = vmul.f32 %v583, %v1538
        %v2152 = vmul.f32 %v584, %v1542
        %v2153 = vmul.f32 %v585, %v1546
        %v2154 = vmul.f32 %v586, %v1550
        %v2155 = vmul.f32 %v587, %v1554
        %v2156 = vmul.f32 %v588, %v1558
        %v2157 = vmul.f32 %v589, %v1562
        %v2158 = vmul.f32 %v590, %v1566
        %v2159 = vmul.f32 %v591, %v1570
        %v2160 = vmul.f32 %v592, %v1574
        %v2161 = vmul.f32 %v593, %v1578
        %v2162 = vmul.f32 %v594, %v1582
        %v2163 = vmul.f32 %v595, %v1586
        %v2164 = vmul.f32 %v596, %v1590
        %v2165 = vmul.f32 %v597, %v1594
        %v2166 = vmul.f32 %v598, %v1598
        %v2167 = vmul.f32 %v599, %v1602
        %v2168 = vmul.f32 %v600, %v1606
        %v2169 = vmul.f32 %v601, %v1610
        %v2170 = vmul.f32 %v602, %v1614
        %v2171 = vmul.f32 %v603, %v1618
        %v2172 = vmul.f32 %v604, %v1622
        %v2173 = vmul.f32 %v605, %v1626
        %v2174 = vmul.f32 %v606, %v1630
        %v2175 = vmul.f32 %v607, %v1634
        %v2176 = vmul.f32 %v608, %v1638
        %v2177 = vmul.f32 %v609, %v1642
        %v2178 = vmul.f32 %v610, %v1646
        %v2179 = vmul.f32 %v611, %v1650
        %v2180 = vmul.f32 %v612, %v1654
        %v2181 = vmul.f32 %v613, %v1658
        %v2182 = vmul.f32 %v614, %v1662
        %v2183 = vmul.f32 %v615, %v1666
        %v2184 = vmul.f32 %v616, %v1670
        %v2185 = vmul.f32 %v617, %v1674
        %v2186 = vmul.f32 %v618, %v1678
        %v2187 = vmul.f32 %v619, %v1682
        %v2188 = vmul.f32 %v620, %v1686
        %v2189 = vmul.f32 %v621, %v1690
        %v2190 = vmul.f32 %v622, %v1694
        %v2191 = vmul.f32 %v623, %v1698
        %v2192 = vmul.f32 %v624, %v1702
        %v2193 = vmul.f32 %v625, %v1706
        %v2194 = vmul.f32 %v626, %v1710
        %v2195 = vmul.f32 %v627, %v1714
        %v2196 = vmul.f32 %v628, %v1718
        %v2197 = vmul.f32 %v629, %v1722
        %v2198 = vmul.f32 %v630, %v1726
        %v2199 = vmul.f32 %v631, %v1730
        %v2200 = vmul.f32 %v632, %v1734
        %v2201 = vmul.f32 %v633, %v1738
        %v2202 = vmul.f32 %v634, %v1742
        %v2203 = vmul.f32 %v635, %v1746
        %v2204 = vmul.f32 %v636, %v1750
        %v2205 = vmul.f32 %v637, %v1754
        %v2206 = vmul.f32 %v638, %v1758
        %v2207 = vmul.f32 %v639, %v1762
        %v2208 = vmul.f32 %v640, %v1766
        %v2209 = vmul.f32 %v641, %v1770
        %v2210 = vmul.f32 %v642, %v1774
        %v2211 = vmul.f32 %v643, %v1778
        %v2212 = vmul.f32 %v644, %v1782
        %v2213 = vmul.f32 %v645, %v1786
        %v2214 = vmul.f32 %v646, %v1790
        %v2215 = vmul.f32 %v647, %v1794
        %v2216 = vmul.f32 %v648, %v1798
        %v2217 = vmul.f32 %v649, %v1802
        %v2218 = vmul.f32 %v650, %v1806
        %v2219 = vmul.f32 %v651, %v1810
        %v2220 = vmul.f32 %v652, %v1814
        %v2221 = vmul.f32 %v653, %v1818
        %v2222 = vmul.f32 %v654, %v1822
        %v2223 = vmul.f32 %v655, %v1826
        %v2224 = vmul.f32 %v656, %v1830
        %v2225 = vmul.f32 %v657, %v1834
        %v2226 = vmul.f32 %v658, %v1838
        %v2227 = vmul.f32 %v659, %v1842
        %v2228 = vmul.f32 %v660, %v1846
        %v2229 = vmul.f32 %v661, %v1850
        %v2230 = vmul.f32 %v662, %v1854
        %v2231 = vmul.f32 %v663, %v1858
        %v2232 = vmul.f32 %v664, %v1862
        %v2233 = vmul.f32 %v665, %v1866
        %v2234 = vmul.f32 %v666, %v1870
        %v2235 = vmul.f32 %v667, %v1874
        %v2236 = vmul.f32 %v668, %v1878
        %v2237 = vmul.f32 %v669, %v1882
        %v2238 = vmul.f32 %v670, %v1886
        %v2239 = vmul.f32 %v671, %v1890
        %v2240 = vmul.f32 %v672, %v1894
        %v2241 = vmul.f32 %v673, %v1898
        %v2242 = vmul.f32 %v674, %v1902
        %v2243 = vmul.f32 %v675, %v1906
        %v2244 = vmul.f32 %v676, %v1910
        %v2245 = vmul.f32 %v677, %v1914
        %v2246 = vmul.f32 %v678, %v1918
        %v2247 = vmul.f32 %v679, %v1922
        %v2248 = vmul.f32 %v680, %v1926
        %v2249 = vmul.f32 %v681, %v1930
        %v2250 = vmul.f32 %v682, %v1934
        %v2251 = vmul.f32 %v683, %v1938
        %v2252 = vmul.f32 %v684, %v1942
        %v2253 = vmul.f32 %v685, %v1946
        %v2254 = vmul.f32 %v686, %v1950
        %v2255 = vmul.f32 %v687, %v1954
        %v2256 = vmul.f32 %v688, %v1958
        %v2257 = vmul.f32 %v689, %v1962
        %v2258 = vmul.f32 %v690, %v1966
        %v2259 = vmul.f32 %v691, %v1970
        %v2260 = vmul.f32 %v692, %v1974
        %v2261 = vmul.f32 %v693, %v1978
        %v2262 = vmul.f32 %v694, %v1982
        %v2263 = vmul.f32 %v695, %v1986
        %v2264 = vmul.f32 %v696, %v1990
        %v2265 = vmul.f32 %v697, %v1994
        %v2266 = vmul.f32 %v698, %v1998
        %v2267 = vmul.f32 %v699, %v2002
        %v2268 = vmul.f32 %v700, %v2006
        %v2269 = vmul.f32 %v701, %v2010
        %v2270 = vmul.f32 %v702, %v2014
        %v2271 = vsel %vm478, %v2143, 0.0
        %2272 = vadd.xlane.f32.xlu0 %v2271
        %v2273 = vpop.xlane.xlu0 %2272
        %v2274 = vsel %vm478, %v2144, 0.0
        %2275 = vadd.xlane.f32.xlu0 %v2274
        %v2276 = vpop.xlane.xlu0 %2275
        %v2277 = vsel %vm478, %v2145, 0.0
        %2278 = vadd.xlane.f32.xlu0 %v2277
        %v2279 = vpop.xlane.xlu0 %2278
        %v2280 = vsel %vm478, %v2146, 0.0
        %2281 = vadd.xlane.f32.xlu0 %v2280
        %v2282 = vpop.xlane.xlu0 %2281
        %v2283 = vsel %vm478, %v2147, 0.0
        %2284 = vadd.xlane.f32.xlu0 %v2283
        %v2285 = vpop.xlane.xlu0 %2284
        %v2286 = vsel %vm478, %v2148, 0.0
        %2287 = vadd.xlane.f32.xlu0 %v2286
        %v2288 = vpop.xlane.xlu0 %2287
        %v2289 = vsel %vm478, %v2149, 0.0
        %2290 = vadd.xlane.f32.xlu0 %v2289
        %v2291 = vpop.xlane.xlu0 %2290
        %v2292 = vsel %vm478, %v2150, 0.0
        %2293 = vadd.xlane.f32.xlu0 %v2292
        %v2294 = vpop.xlane.xlu0 %2293
        %v2295 = vsel %vm478, %v2151, 0.0
        %2296 = vadd.xlane.f32.xlu0 %v2295
        %v2297 = vpop.xlane.xlu0 %2296
        %v2298 = vsel %vm478, %v2152, 0.0
        %2299 = vadd.xlane.f32.xlu0 %v2298
        %v2300 = vpop.xlane.xlu0 %2299
        %v2301 = vsel %vm478, %v2153, 0.0
        %2302 = vadd.xlane.f32.xlu0 %v2301
        %v2303 = vpop.xlane.xlu0 %2302
        %v2304 = vsel %vm478, %v2154, 0.0
        %2305 = vadd.xlane.f32.xlu0 %v2304
        %v2306 = vpop.xlane.xlu0 %2305
        %v2307 = vsel %vm478, %v2155, 0.0
        %2308 = vadd.xlane.f32.xlu0 %v2307
        %v2309 = vpop.xlane.xlu0 %2308
        %v2310 = vsel %vm478, %v2156, 0.0
        %2311 = vadd.xlane.f32.xlu0 %v2310
        %v2312 = vpop.xlane.xlu0 %2311
        %v2313 = vsel %vm478, %v2157, 0.0
        %2314 = vadd.xlane.f32.xlu0 %v2313
        %v2315 = vpop.xlane.xlu0 %2314
        %v2316 = vsel %vm478, %v2158, 0.0
        %2317 = vadd.xlane.f32.xlu0 %v2316
        %v2318 = vpop.xlane.xlu0 %2317
        %v2319 = vsel %vm478, %v2159, 0.0
        %2320 = vadd.xlane.f32.xlu0 %v2319
        %v2321 = vpop.xlane.xlu0 %2320
        %v2322 = vsel %vm478, %v2160, 0.0
        %2323 = vadd.xlane.f32.xlu0 %v2322
        %v2324 = vpop.xlane.xlu0 %2323
        %v2325 = vsel %vm478, %v2161, 0.0
        %2326 = vadd.xlane.f32.xlu0 %v2325
        %v2327 = vpop.xlane.xlu0 %2326
        %v2328 = vsel %vm478, %v2162, 0.0
        %2329 = vadd.xlane.f32.xlu0 %v2328
        %v2330 = vpop.xlane.xlu0 %2329
        %v2331 = vsel %vm478, %v2163, 0.0
        %2332 = vadd.xlane.f32.xlu0 %v2331
        %v2333 = vpop.xlane.xlu0 %2332
        %v2334 = vsel %vm478, %v2164, 0.0
        %2335 = vadd.xlane.f32.xlu0 %v2334
        %v2336 = vpop.xlane.xlu0 %2335
        %v2337 = vsel %vm478, %v2165, 0.0
        %2338 = vadd.xlane.f32.xlu0 %v2337
        %v2339 = vpop.xlane.xlu0 %2338
        %v2340 = vsel %vm478, %v2166, 0.0
        %2341 = vadd.xlane.f32.xlu0 %v2340
        %v2342 = vpop.xlane.xlu0 %2341
        %v2343 = vsel %vm478, %v2167, 0.0
        %2344 = vadd.xlane.f32.xlu0 %v2343
        %v2345 = vpop.xlane.xlu0 %2344
        %v2346 = vsel %vm478, %v2168, 0.0
        %2347 = vadd.xlane.f32.xlu0 %v2346
        %v2348 = vpop.xlane.xlu0 %2347
        %v2349 = vsel %vm478, %v2169, 0.0
        %2350 = vadd.xlane.f32.xlu0 %v2349
        %v2351 = vpop.xlane.xlu0 %2350
        %v2352 = vsel %vm478, %v2170, 0.0
        %2353 = vadd.xlane.f32.xlu0 %v2352
        %v2354 = vpop.xlane.xlu0 %2353
        %v2355 = vsel %vm478, %v2171, 0.0
        %2356 = vadd.xlane.f32.xlu0 %v2355
        %v2357 = vpop.xlane.xlu0 %2356
        %v2358 = vsel %vm478, %v2172, 0.0
        %2359 = vadd.xlane.f32.xlu0 %v2358
        %v2360 = vpop.xlane.xlu0 %2359
        %v2361 = vsel %vm478, %v2173, 0.0
        %2362 = vadd.xlane.f32.xlu0 %v2361
        %v2363 = vpop.xlane.xlu0 %2362
        %v2364 = vsel %vm478, %v2174, 0.0
        %2365 = vadd.xlane.f32.xlu0 %v2364
        %v2366 = vpop.xlane.xlu0 %2365
        %v2367 = vsel %vm478, %v2175, 0.0
        %2368 = vadd.xlane.f32.xlu0 %v2367
        %v2369 = vpop.xlane.xlu0 %2368
        %v2370 = vsel %vm478, %v2176, 0.0
        %2371 = vadd.xlane.f32.xlu0 %v2370
        %v2372 = vpop.xlane.xlu0 %2371
        %v2373 = vsel %vm478, %v2177, 0.0
        %2374 = vadd.xlane.f32.xlu0 %v2373
        %v2375 = vpop.xlane.xlu0 %2374
        %v2376 = vsel %vm478, %v2178, 0.0
        %2377 = vadd.xlane.f32.xlu0 %v2376
        %v2378 = vpop.xlane.xlu0 %2377
        %v2379 = vsel %vm478, %v2179, 0.0
        %2380 = vadd.xlane.f32.xlu0 %v2379
        %v2381 = vpop.xlane.xlu0 %2380
        %v2382 = vsel %vm478, %v2180, 0.0
        %2383 = vadd.xlane.f32.xlu0 %v2382
        %v2384 = vpop.xlane.xlu0 %2383
        %v2385 = vsel %vm478, %v2181, 0.0
        %2386 = vadd.xlane.f32.xlu0 %v2385
        %v2387 = vpop.xlane.xlu0 %2386
        %v2388 = vsel %vm478, %v2182, 0.0
        %2389 = vadd.xlane.f32.xlu0 %v2388
        %v2390 = vpop.xlane.xlu0 %2389
        %v2391 = vsel %vm478, %v2183, 0.0
        %2392 = vadd.xlane.f32.xlu0 %v2391
        %v2393 = vpop.xlane.xlu0 %2392
        %v2394 = vsel %vm478, %v2184, 0.0
        %2395 = vadd.xlane.f32.xlu0 %v2394
        %v2396 = vpop.xlane.xlu0 %2395
        %v2397 = vsel %vm478, %v2185, 0.0
        %2398 = vadd.xlane.f32.xlu0 %v2397
        %v2399 = vpop.xlane.xlu0 %2398
        %v2400 = vsel %vm478, %v2186, 0.0
        %2401 = vadd.xlane.f32.xlu0 %v2400
        %v2402 = vpop.xlane.xlu0 %2401
        %v2403 = vsel %vm478, %v2187, 0.0
        %2404 = vadd.xlane.f32.xlu0 %v2403
        %v2405 = vpop.xlane.xlu0 %2404
        %v2406 = vsel %vm478, %v2188, 0.0
        %2407 = vadd.xlane.f32.xlu0 %v2406
        %v2408 = vpop.xlane.xlu0 %2407
        %v2409 = vsel %vm478, %v2189, 0.0
        %2410 = vadd.xlane.f32.xlu0 %v2409
        %v2411 = vpop.xlane.xlu0 %2410
        %v2412 = vsel %vm478, %v2190, 0.0
        %2413 = vadd.xlane.f32.xlu0 %v2412
        %v2414 = vpop.xlane.xlu0 %2413
        %v2415 = vsel %vm478, %v2191, 0.0
        %2416 = vadd.xlane.f32.xlu0 %v2415
        %v2417 = vpop.xlane.xlu0 %2416
        %v2418 = vsel %vm478, %v2192, 0.0
        %2419 = vadd.xlane.f32.xlu0 %v2418
        %v2420 = vpop.xlane.xlu0 %2419
        %v2421 = vsel %vm478, %v2193, 0.0
        %2422 = vadd.xlane.f32.xlu0 %v2421
        %v2423 = vpop.xlane.xlu0 %2422
        %v2424 = vsel %vm478, %v2194, 0.0
        %2425 = vadd.xlane.f32.xlu0 %v2424
        %v2426 = vpop.xlane.xlu0 %2425
        %v2427 = vsel %vm478, %v2195, 0.0
        %2428 = vadd.xlane.f32.xlu0 %v2427
        %v2429 = vpop.xlane.xlu0 %2428
        %v2430 = vsel %vm478, %v2196, 0.0
        %2431 = vadd.xlane.f32.xlu0 %v2430
        %v2432 = vpop.xlane.xlu0 %2431
        %v2433 = vsel %vm478, %v2197, 0.0
        %2434 = vadd.xlane.f32.xlu0 %v2433
        %v2435 = vpop.xlane.xlu0 %2434
        %v2436 = vsel %vm478, %v2198, 0.0
        %2437 = vadd.xlane.f32.xlu0 %v2436
        %v2438 = vpop.xlane.xlu0 %2437
        %v2439 = vsel %vm478, %v2199, 0.0
        %2440 = vadd.xlane.f32.xlu0 %v2439
        %v2441 = vpop.xlane.xlu0 %2440
        %v2442 = vsel %vm478, %v2200, 0.0
        %2443 = vadd.xlane.f32.xlu0 %v2442
        %v2444 = vpop.xlane.xlu0 %2443
        %v2445 = vsel %vm478, %v2201, 0.0
        %2446 = vadd.xlane.f32.xlu0 %v2445
        %v2447 = vpop.xlane.xlu0 %2446
        %v2448 = vsel %vm478, %v2202, 0.0
        %2449 = vadd.xlane.f32.xlu0 %v2448
        %v2450 = vpop.xlane.xlu0 %2449
        %v2451 = vsel %vm478, %v2203, 0.0
        %2452 = vadd.xlane.f32.xlu0 %v2451
        %v2453 = vpop.xlane.xlu0 %2452
        %v2454 = vsel %vm478, %v2204, 0.0
        %2455 = vadd.xlane.f32.xlu0 %v2454
        %v2456 = vpop.xlane.xlu0 %2455
        %v2457 = vsel %vm478, %v2205, 0.0
        %2458 = vadd.xlane.f32.xlu0 %v2457
        %v2459 = vpop.xlane.xlu0 %2458
        %v2460 = vsel %vm478, %v2206, 0.0
        %2461 = vadd.xlane.f32.xlu0 %v2460
        %v2462 = vpop.xlane.xlu0 %2461
        %v2463 = vsel %vm478, %v2207, 0.0
        %2464 = vadd.xlane.f32.xlu0 %v2463
        %v2465 = vpop.xlane.xlu0 %2464
        %v2466 = vsel %vm478, %v2208, 0.0
        %2467 = vadd.xlane.f32.xlu0 %v2466
        %v2468 = vpop.xlane.xlu0 %2467
        %v2469 = vsel %vm478, %v2209, 0.0
        %2470 = vadd.xlane.f32.xlu0 %v2469
        %v2471 = vpop.xlane.xlu0 %2470
        %v2472 = vsel %vm478, %v2210, 0.0
        %2473 = vadd.xlane.f32.xlu0 %v2472
        %v2474 = vpop.xlane.xlu0 %2473
        %v2475 = vsel %vm478, %v2211, 0.0
        %2476 = vadd.xlane.f32.xlu0 %v2475
        %v2477 = vpop.xlane.xlu0 %2476
        %v2478 = vsel %vm478, %v2212, 0.0
        %2479 = vadd.xlane.f32.xlu0 %v2478
        %v2480 = vpop.xlane.xlu0 %2479
        %v2481 = vsel %vm478, %v2213, 0.0
        %2482 = vadd.xlane.f32.xlu0 %v2481
        %v2483 = vpop.xlane.xlu0 %2482
        %v2484 = vsel %vm478, %v2214, 0.0
        %2485 = vadd.xlane.f32.xlu0 %v2484
        %v2486 = vpop.xlane.xlu0 %2485
        %v2487 = vsel %vm478, %v2215, 0.0
        %2488 = vadd.xlane.f32.xlu0 %v2487
        %v2489 = vpop.xlane.xlu0 %2488
        %v2490 = vsel %vm478, %v2216, 0.0
        %2491 = vadd.xlane.f32.xlu0 %v2490
        %v2492 = vpop.xlane.xlu0 %2491
        %v2493 = vsel %vm478, %v2217, 0.0
        %2494 = vadd.xlane.f32.xlu0 %v2493
        %v2495 = vpop.xlane.xlu0 %2494
        %v2496 = vsel %vm478, %v2218, 0.0
        %2497 = vadd.xlane.f32.xlu0 %v2496
        %v2498 = vpop.xlane.xlu0 %2497
        %v2499 = vsel %vm478, %v2219, 0.0
        %2500 = vadd.xlane.f32.xlu0 %v2499
        %v2501 = vpop.xlane.xlu0 %2500
        %v2502 = vsel %vm478, %v2220, 0.0
        %2503 = vadd.xlane.f32.xlu0 %v2502
        %v2504 = vpop.xlane.xlu0 %2503
        %v2505 = vsel %vm478, %v2221, 0.0
        %2506 = vadd.xlane.f32.xlu0 %v2505
        %v2507 = vpop.xlane.xlu0 %2506
        %v2508 = vsel %vm478, %v2222, 0.0
        %2509 = vadd.xlane.f32.xlu0 %v2508
        %v2510 = vpop.xlane.xlu0 %2509
        %v2511 = vsel %vm478, %v2223, 0.0
        %2512 = vadd.xlane.f32.xlu0 %v2511
        %v2513 = vpop.xlane.xlu0 %2512
        %v2514 = vsel %vm478, %v2224, 0.0
        %2515 = vadd.xlane.f32.xlu0 %v2514
        %v2516 = vpop.xlane.xlu0 %2515
        %v2517 = vsel %vm478, %v2225, 0.0
        %2518 = vadd.xlane.f32.xlu0 %v2517
        %v2519 = vpop.xlane.xlu0 %2518
        %v2520 = vsel %vm478, %v2226, 0.0
        %2521 = vadd.xlane.f32.xlu0 %v2520
        %v2522 = vpop.xlane.xlu0 %2521
        %v2523 = vsel %vm478, %v2227, 0.0
        %2524 = vadd.xlane.f32.xlu0 %v2523
        %v2525 = vpop.xlane.xlu0 %2524
        %v2526 = vsel %vm478, %v2228, 0.0
        %2527 = vadd.xlane.f32.xlu0 %v2526
        %v2528 = vpop.xlane.xlu0 %2527
        %v2529 = vsel %vm478, %v2229, 0.0
        %2530 = vadd.xlane.f32.xlu0 %v2529
        %v2531 = vpop.xlane.xlu0 %2530
        %v2532 = vsel %vm478, %v2230, 0.0
        %2533 = vadd.xlane.f32.xlu0 %v2532
        %v2534 = vpop.xlane.xlu0 %2533
        %v2535 = vsel %vm478, %v2231, 0.0
        %2536 = vadd.xlane.f32.xlu0 %v2535
        %v2537 = vpop.xlane.xlu0 %2536
        %v2538 = vsel %vm478, %v2232, 0.0
        %2539 = vadd.xlane.f32.xlu0 %v2538
        %v2540 = vpop.xlane.xlu0 %2539
        %v2541 = vsel %vm478, %v2233, 0.0
        %2542 = vadd.xlane.f32.xlu0 %v2541
        %v2543 = vpop.xlane.xlu0 %2542
        %v2544 = vsel %vm478, %v2234, 0.0
        %2545 = vadd.xlane.f32.xlu0 %v2544
        %v2546 = vpop.xlane.xlu0 %2545
        %v2547 = vsel %vm478, %v2235, 0.0
        %2548 = vadd.xlane.f32.xlu0 %v2547
        %v2549 = vpop.xlane.xlu0 %2548
        %v2550 = vsel %vm478, %v2236, 0.0
        %2551 = vadd.xlane.f32.xlu0 %v2550
        %v2552 = vpop.xlane.xlu0 %2551
        %v2553 = vsel %vm478, %v2237, 0.0
        %2554 = vadd.xlane.f32.xlu0 %v2553
        %v2555 = vpop.xlane.xlu0 %2554
        %v2556 = vsel %vm478, %v2238, 0.0
        %2557 = vadd.xlane.f32.xlu0 %v2556
        %v2558 = vpop.xlane.xlu0 %2557
        %v2559 = vsel %vm478, %v2239, 0.0
        %2560 = vadd.xlane.f32.xlu0 %v2559
        %v2561 = vpop.xlane.xlu0 %2560
        %v2562 = vsel %vm478, %v2240, 0.0
        %2563 = vadd.xlane.f32.xlu0 %v2562
        %v2564 = vpop.xlane.xlu0 %2563
        %v2565 = vsel %vm478, %v2241, 0.0
        %2566 = vadd.xlane.f32.xlu0 %v2565
        %v2567 = vpop.xlane.xlu0 %2566
        %v2568 = vsel %vm478, %v2242, 0.0
        %2569 = vadd.xlane.f32.xlu0 %v2568
        %v2570 = vpop.xlane.xlu0 %2569
        %v2571 = vsel %vm478, %v2243, 0.0
        %2572 = vadd.xlane.f32.xlu0 %v2571
        %v2573 = vpop.xlane.xlu0 %2572
        %v2574 = vsel %vm478, %v2244, 0.0
        %2575 = vadd.xlane.f32.xlu0 %v2574
        %v2576 = vpop.xlane.xlu0 %2575
        %v2577 = vsel %vm478, %v2245, 0.0
        %2578 = vadd.xlane.f32.xlu0 %v2577
        %v2579 = vpop.xlane.xlu0 %2578
        %v2580 = vsel %vm478, %v2246, 0.0
        %2581 = vadd.xlane.f32.xlu0 %v2580
        %v2582 = vpop.xlane.xlu0 %2581
        %v2583 = vsel %vm478, %v2247, 0.0
        %2584 = vadd.xlane.f32.xlu0 %v2583
        %v2585 = vpop.xlane.xlu0 %2584
        %v2586 = vsel %vm478, %v2248, 0.0
        %2587 = vadd.xlane.f32.xlu0 %v2586
        %v2588 = vpop.xlane.xlu0 %2587
        %v2589 = vsel %vm478, %v2249, 0.0
        %2590 = vadd.xlane.f32.xlu0 %v2589
        %v2591 = vpop.xlane.xlu0 %2590
        %v2592 = vsel %vm478, %v2250, 0.0
        %2593 = vadd.xlane.f32.xlu0 %v2592
        %v2594 = vpop.xlane.xlu0 %2593
        %v2595 = vsel %vm478, %v2251, 0.0
        %2596 = vadd.xlane.f32.xlu0 %v2595
        %v2597 = vpop.xlane.xlu0 %2596
        %v2598 = vsel %vm478, %v2252, 0.0
        %2599 = vadd.xlane.f32.xlu0 %v2598
        %v2600 = vpop.xlane.xlu0 %2599
        %v2601 = vsel %vm478, %v2253, 0.0
        %2602 = vadd.xlane.f32.xlu0 %v2601
        %v2603 = vpop.xlane.xlu0 %2602
        %v2604 = vsel %vm478, %v2254, 0.0
        %2605 = vadd.xlane.f32.xlu0 %v2604
        %v2606 = vpop.xlane.xlu0 %2605
        %v2607 = vsel %vm478, %v2255, 0.0
        %2608 = vadd.xlane.f32.xlu0 %v2607
        %v2609 = vpop.xlane.xlu0 %2608
        %v2610 = vsel %vm478, %v2256, 0.0
        %2611 = vadd.xlane.f32.xlu0 %v2610
        %v2612 = vpop.xlane.xlu0 %2611
        %v2613 = vsel %vm478, %v2257, 0.0
        %2614 = vadd.xlane.f32.xlu0 %v2613
        %v2615 = vpop.xlane.xlu0 %2614
        %v2616 = vsel %vm478, %v2258, 0.0
        %2617 = vadd.xlane.f32.xlu0 %v2616
        %v2618 = vpop.xlane.xlu0 %2617
        %v2619 = vsel %vm478, %v2259, 0.0
        %2620 = vadd.xlane.f32.xlu0 %v2619
        %v2621 = vpop.xlane.xlu0 %2620
        %v2622 = vsel %vm478, %v2260, 0.0
        %2623 = vadd.xlane.f32.xlu0 %v2622
        %v2624 = vpop.xlane.xlu0 %2623
        %v2625 = vsel %vm478, %v2261, 0.0
        %2626 = vadd.xlane.f32.xlu0 %v2625
        %v2627 = vpop.xlane.xlu0 %2626
        %v2628 = vsel %vm478, %v2262, 0.0
        %2629 = vadd.xlane.f32.xlu0 %v2628
        %v2630 = vpop.xlane.xlu0 %2629
        %v2631 = vsel %vm478, %v2263, 0.0
        %2632 = vadd.xlane.f32.xlu0 %v2631
        %v2633 = vpop.xlane.xlu0 %2632
        %v2634 = vsel %vm478, %v2264, 0.0
        %2635 = vadd.xlane.f32.xlu0 %v2634
        %v2636 = vpop.xlane.xlu0 %2635
        %v2637 = vsel %vm478, %v2265, 0.0
        %2638 = vadd.xlane.f32.xlu0 %v2637
        %v2639 = vpop.xlane.xlu0 %2638
        %v2640 = vsel %vm478, %v2266, 0.0
        %2641 = vadd.xlane.f32.xlu0 %v2640
        %v2642 = vpop.xlane.xlu0 %2641
        %v2643 = vsel %vm478, %v2267, 0.0
        %2644 = vadd.xlane.f32.xlu0 %v2643
        %v2645 = vpop.xlane.xlu0 %2644
        %v2646 = vsel %vm478, %v2268, 0.0
        %2647 = vadd.xlane.f32.xlu0 %v2646
        %v2648 = vpop.xlane.xlu0 %2647
        %v2649 = vsel %vm478, %v2269, 0.0
        %2650 = vadd.xlane.f32.xlu0 %v2649
        %v2651 = vpop.xlane.xlu0 %2650
        %v2652 = vsel %vm478, %v2270, 0.0
        %2653 = vadd.xlane.f32.xlu0 %v2652
        %v2654 = vpop.xlane.xlu0 %2653
        %v2655 = vld [vmem:[%s357] sm:$0x1]
        %2656 = vxpose.xlu0.b32.start [1/16] %v2655, 128
        %2657 = vxpose.xlu0.b32.cont [2/16] 0.0, 128
        %2658 = vxpose.xlu0.b32.cont [3/16] 0.0, 128
        %2659 = vxpose.xlu0.b32.cont [4/16] 0.0, 128
        %2660 = vxpose.xlu0.b32.cont [5/16] 0.0, 128
        %2661 = vxpose.xlu0.b32.cont [6/16] 0.0, 128
        %2662 = vxpose.xlu0.b32.cont [7/16] 0.0, 128
        %2663 = vxpose.xlu0.b32.cont [8/16] 0.0, 128
        %2664 = vxpose.xlu0.b32.cont [9/16] 0.0, 128
        %2665 = vxpose.xlu0.b32.cont [10/16] 0.0, 128
        %2666 = vxpose.xlu0.b32.cont [11/16] 0.0, 128
        %2667 = vxpose.xlu0.b32.cont [12/16] 0.0, 128
        %2668 = vxpose.xlu0.b32.cont [13/16] 0.0, 128
        %2669 = vxpose.xlu0.b32.cont [14/16] 0.0, 128
        %2670 = vxpose.xlu0.b32.cont [15/16] 0.0, 128
        %2671 = vxpose.xlu0.b32.end [16/16] 0.0, 128
        %v2672 = vpop.trf.xlu0
        %v2673 = vpop.trf.xlu0
        %v2674 = vpop.trf.xlu0
        %v2675 = vpop.trf.xlu0
        %v2676 = vpop.trf.xlu0
        %v2677 = vpop.trf.xlu0
        %v2678 = vpop.trf.xlu0
        %v2679 = vpop.trf.xlu0
        %v2680 = vpop.trf.xlu0
        %v2681 = vpop.trf.xlu0
        %v2682 = vpop.trf.xlu0
        %v2683 = vpop.trf.xlu0
        %v2684 = vpop.trf.xlu0
        %v2685 = vpop.trf.xlu0
        %v2686 = vpop.trf.xlu0
        %v2687 = vpop.trf.xlu0
        %2689 = vset.pattern.permute.xlu0 0
        %2690 = vperm.xlu0 %2689, %v2672
        %v2691 = vpop.permute.xlu0 %2690
        %2693 = vset.pattern.permute.xlu0 0
        %2694 = vperm.xlu0 %2693, %v2673
        %v2695 = vpop.permute.xlu0 %2694
        %2697 = vset.pattern.permute.xlu0 0
        %2698 = vperm.xlu0 %2697, %v2674
        %v2699 = vpop.permute.xlu0 %2698
        %2701 = vset.pattern.permute.xlu0 0
        %2702 = vperm.xlu0 %2701, %v2675
        %v2703 = vpop.permute.xlu0 %2702
        %2705 = vset.pattern.permute.xlu0 0
        %2706 = vperm.xlu0 %2705, %v2676
        %v2707 = vpop.permute.xlu0 %2706
        %2709 = vset.pattern.permute.xlu0 0
        %2710 = vperm.xlu0 %2709, %v2677
        %v2711 = vpop.permute.xlu0 %2710
        %2713 = vset.pattern.permute.xlu0 0
        %2714 = vperm.xlu0 %2713, %v2678
        %v2715 = vpop.permute.xlu0 %2714
        %2717 = vset.pattern.permute.xlu0 0
        %2718 = vperm.xlu0 %2717, %v2679
        %v2719 = vpop.permute.xlu0 %2718
        %2721 = vset.pattern.permute.xlu0 0
        %2722 = vperm.xlu0 %2721, %v2680
        %v2723 = vpop.permute.xlu0 %2722
        %2725 = vset.pattern.permute.xlu0 0
        %2726 = vperm.xlu0 %2725, %v2681
        %v2727 = vpop.permute.xlu0 %2726
        %2729 = vset.pattern.permute.xlu0 0
        %2730 = vperm.xlu0 %2729, %v2682
        %v2731 = vpop.permute.xlu0 %2730
        %2733 = vset.pattern.permute.xlu0 0
        %2734 = vperm.xlu0 %2733, %v2683
        %v2735 = vpop.permute.xlu0 %2734
        %2737 = vset.pattern.permute.xlu0 0
        %2738 = vperm.xlu0 %2737, %v2684
        %v2739 = vpop.permute.xlu0 %2738
        %2741 = vset.pattern.permute.xlu0 0
        %2742 = vperm.xlu0 %2741, %v2685
        %v2743 = vpop.permute.xlu0 %2742
        %2745 = vset.pattern.permute.xlu0 0
        %2746 = vperm.xlu0 %2745, %v2686
        %v2747 = vpop.permute.xlu0 %2746
        %2749 = vset.pattern.permute.xlu0 0
        %2750 = vperm.xlu0 %2749, %v2687
        %v2751 = vpop.permute.xlu0 %2750
        %v2752 = vlaneseq
        %v2753 = vshrl.u32 %v2752, 7
        %v2754 = vsub.s32 0, %v2753
        %v2755 = vrot.slane %v2691, %v2754
        %v2756 = vlaneseq
        %v2757 = vshrl.u32 %v2756, 7
        %v2758 = vsub.s32 1, %v2757
        %v2759 = vrot.slane %v2691, %v2758
        %v2760 = vlaneseq
        %v2761 = vshrl.u32 %v2760, 7
        %v2762 = vsub.s32 2, %v2761
        %v2763 = vrot.slane %v2691, %v2762
        %v2764 = vlaneseq
        %v2765 = vshrl.u32 %v2764, 7
        %v2766 = vsub.s32 3, %v2765
        %v2767 = vrot.slane %v2691, %v2766
        %v2768 = vlaneseq
        %v2769 = vshrl.u32 %v2768, 7
        %v2770 = vsub.s32 4, %v2769
        %v2771 = vrot.slane %v2691, %v2770
        %v2772 = vlaneseq
        %v2773 = vshrl.u32 %v2772, 7
        %v2774 = vsub.s32 5, %v2773
        %v2775 = vrot.slane %v2691, %v2774
        %v2776 = vlaneseq
        %v2777 = vshrl.u32 %v2776, 7
        %v2778 = vsub.s32 6, %v2777
        %v2779 = vrot.slane %v2691, %v2778
        %v2780 = vlaneseq
        %v2781 = vshrl.u32 %v2780, 7
        %v2782 = vsub.s32 7, %v2781
        %v2783 = vrot.slane %v2691, %v2782
        %v2784 = vlaneseq
        %v2785 = vshrl.u32 %v2784, 7
        %v2786 = vsub.s32 0, %v2785
        %v2787 = vrot.slane %v2695, %v2786
        %v2788 = vlaneseq
        %v2789 = vshrl.u32 %v2788, 7
        %v2790 = vsub.s32 1, %v2789
        %v2791 = vrot.slane %v2695, %v2790
        %v2792 = vlaneseq
        %v2793 = vshrl.u32 %v2792, 7
        %v2794 = vsub.s32 2, %v2793
        %v2795 = vrot.slane %v2695, %v2794
        %v2796 = vlaneseq
        %v2797 = vshrl.u32 %v2796, 7
        %v2798 = vsub.s32 3, %v2797
        %v2799 = vrot.slane %v2695, %v2798
        %v2800 = vlaneseq
        %v2801 = vshrl.u32 %v2800, 7
        %v2802 = vsub.s32 4, %v2801
        %v2803 = vrot.slane %v2695, %v2802
        %v2804 = vlaneseq
        %v2805 = vshrl.u32 %v2804, 7
        %v2806 = vsub.s32 5, %v2805
        %v2807 = vrot.slane %v2695, %v2806
        %v2808 = vlaneseq
        %v2809 = vshrl.u32 %v2808, 7
        %v2810 = vsub.s32 6, %v2809
        %v2811 = vrot.slane %v2695, %v2810
        %v2812 = vlaneseq
        %v2813 = vshrl.u32 %v2812, 7
        %v2814 = vsub.s32 7, %v2813
        %v2815 = vrot.slane %v2695, %v2814
        %v2816 = vlaneseq
        %v2817 = vshrl.u32 %v2816, 7
        %v2818 = vsub.s32 0, %v2817
        %v2819 = vrot.slane %v2699, %v2818
        %v2820 = vlaneseq
        %v2821 = vshrl.u32 %v2820, 7
        %v2822 = vsub.s32 1, %v2821
        %v2823 = vrot.slane %v2699, %v2822
        %v2824 = vlaneseq
        %v2825 = vshrl.u32 %v2824, 7
        %v2826 = vsub.s32 2, %v2825
        %v2827 = vrot.slane %v2699, %v2826
        %v2828 = vlaneseq
        %v2829 = vshrl.u32 %v2828, 7
        %v2830 = vsub.s32 3, %v2829
        %v2831 = vrot.slane %v2699, %v2830
        %v2832 = vlaneseq
        %v2833 = vshrl.u32 %v2832, 7
        %v2834 = vsub.s32 4, %v2833
        %v2835 = vrot.slane %v2699, %v2834
        %v2836 = vlaneseq
        %v2837 = vshrl.u32 %v2836, 7
        %v2838 = vsub.s32 5, %v2837
        %v2839 = vrot.slane %v2699, %v2838
        %v2840 = vlaneseq
        %v2841 = vshrl.u32 %v2840, 7
        %v2842 = vsub.s32 6, %v2841
        %v2843 = vrot.slane %v2699, %v2842
        %v2844 = vlaneseq
        %v2845 = vshrl.u32 %v2844, 7
        %v2846 = vsub.s32 7, %v2845
        %v2847 = vrot.slane %v2699, %v2846
        %v2848 = vlaneseq
        %v2849 = vshrl.u32 %v2848, 7
        %v2850 = vsub.s32 0, %v2849
        %v2851 = vrot.slane %v2703, %v2850
        %v2852 = vlaneseq
        %v2853 = vshrl.u32 %v2852, 7
        %v2854 = vsub.s32 1, %v2853
        %v2855 = vrot.slane %v2703, %v2854
        %v2856 = vlaneseq
        %v2857 = vshrl.u32 %v2856, 7
        %v2858 = vsub.s32 2, %v2857
        %v2859 = vrot.slane %v2703, %v2858
        %v2860 = vlaneseq
        %v2861 = vshrl.u32 %v2860, 7
        %v2862 = vsub.s32 3, %v2861
        %v2863 = vrot.slane %v2703, %v2862
        %v2864 = vlaneseq
        %v2865 = vshrl.u32 %v2864, 7
        %v2866 = vsub.s32 4, %v2865
        %v2867 = vrot.slane %v2703, %v2866
        %v2868 = vlaneseq
        %v2869 = vshrl.u32 %v2868, 7
        %v2870 = vsub.s32 5, %v2869
        %v2871 = vrot.slane %v2703, %v2870
        %v2872 = vlaneseq
        %v2873 = vshrl.u32 %v2872, 7
        %v2874 = vsub.s32 6, %v2873
        %v2875 = vrot.slane %v2703, %v2874
        %v2876 = vlaneseq
        %v2877 = vshrl.u32 %v2876, 7
        %v2878 = vsub.s32 7, %v2877
        %v2879 = vrot.slane %v2703, %v2878
        %v2880 = vlaneseq
        %v2881 = vshrl.u32 %v2880, 7
        %v2882 = vsub.s32 0, %v2881
        %v2883 = vrot.slane %v2707, %v2882
        %v2884 = vlaneseq
        %v2885 = vshrl.u32 %v2884, 7
        %v2886 = vsub.s32 1, %v2885
        %v2887 = vrot.slane %v2707, %v2886
        %v2888 = vlaneseq
        %v2889 = vshrl.u32 %v2888, 7
        %v2890 = vsub.s32 2, %v2889
        %v2891 = vrot.slane %v2707, %v2890
        %v2892 = vlaneseq
        %v2893 = vshrl.u32 %v2892, 7
        %v2894 = vsub.s32 3, %v2893
        %v2895 = vrot.slane %v2707, %v2894
        %v2896 = vlaneseq
        %v2897 = vshrl.u32 %v2896, 7
        %v2898 = vsub.s32 4, %v2897
        %v2899 = vrot.slane %v2707, %v2898
        %v2900 = vlaneseq
        %v2901 = vshrl.u32 %v2900, 7
        %v2902 = vsub.s32 5, %v2901
        %v2903 = vrot.slane %v2707, %v2902
        %v2904 = vlaneseq
        %v2905 = vshrl.u32 %v2904, 7
        %v2906 = vsub.s32 6, %v2905
        %v2907 = vrot.slane %v2707, %v2906
        %v2908 = vlaneseq
        %v2909 = vshrl.u32 %v2908, 7
        %v2910 = vsub.s32 7, %v2909
        %v2911 = vrot.slane %v2707, %v2910
        %v2912 = vlaneseq
        %v2913 = vshrl.u32 %v2912, 7
        %v2914 = vsub.s32 0, %v2913
        %v2915 = vrot.slane %v2711, %v2914
        %v2916 = vlaneseq
        %v2917 = vshrl.u32 %v2916, 7
        %v2918 = vsub.s32 1, %v2917
        %v2919 = vrot.slane %v2711, %v2918
        %v2920 = vlaneseq
        %v2921 = vshrl.u32 %v2920, 7
        %v2922 = vsub.s32 2, %v2921
        %v2923 = vrot.slane %v2711, %v2922
        %v2924 = vlaneseq
        %v2925 = vshrl.u32 %v2924, 7
        %v2926 = vsub.s32 3, %v2925
        %v2927 = vrot.slane %v2711, %v2926
        %v2928 = vlaneseq
        %v2929 = vshrl.u32 %v2928, 7
        %v2930 = vsub.s32 4, %v2929
        %v2931 = vrot.slane %v2711, %v2930
        %v2932 = vlaneseq
        %v2933 = vshrl.u32 %v2932, 7
        %v2934 = vsub.s32 5, %v2933
        %v2935 = vrot.slane %v2711, %v2934
        %v2936 = vlaneseq
        %v2937 = vshrl.u32 %v2936, 7
        %v2938 = vsub.s32 6, %v2937
        %v2939 = vrot.slane %v2711, %v2938
        %v2940 = vlaneseq
        %v2941 = vshrl.u32 %v2940, 7
        %v2942 = vsub.s32 7, %v2941
        %v2943 = vrot.slane %v2711, %v2942
        %v2944 = vlaneseq
        %v2945 = vshrl.u32 %v2944, 7
        %v2946 = vsub.s32 0, %v2945
        %v2947 = vrot.slane %v2715, %v2946
        %v2948 = vlaneseq
        %v2949 = vshrl.u32 %v2948, 7
        %v2950 = vsub.s32 1, %v2949
        %v2951 = vrot.slane %v2715, %v2950
        %v2952 = vlaneseq
        %v2953 = vshrl.u32 %v2952, 7
        %v2954 = vsub.s32 2, %v2953
        %v2955 = vrot.slane %v2715, %v2954
        %v2956 = vlaneseq
        %v2957 = vshrl.u32 %v2956, 7
        %v2958 = vsub.s32 3, %v2957
        %v2959 = vrot.slane %v2715, %v2958
        %v2960 = vlaneseq
        %v2961 = vshrl.u32 %v2960, 7
        %v2962 = vsub.s32 4, %v2961
        %v2963 = vrot.slane %v2715, %v2962
        %v2964 = vlaneseq
        %v2965 = vshrl.u32 %v2964, 7
        %v2966 = vsub.s32 5, %v2965
        %v2967 = vrot.slane %v2715, %v2966
        %v2968 = vlaneseq
        %v2969 = vshrl.u32 %v2968, 7
        %v2970 = vsub.s32 6, %v2969
        %v2971 = vrot.slane %v2715, %v2970
        %v2972 = vlaneseq
        %v2973 = vshrl.u32 %v2972, 7
        %v2974 = vsub.s32 7, %v2973
        %v2975 = vrot.slane %v2715, %v2974
        %v2976 = vlaneseq
        %v2977 = vshrl.u32 %v2976, 7
        %v2978 = vsub.s32 0, %v2977
        %v2979 = vrot.slane %v2719, %v2978
        %v2980 = vlaneseq
        %v2981 = vshrl.u32 %v2980, 7
        %v2982 = vsub.s32 1, %v2981
        %v2983 = vrot.slane %v2719, %v2982
        %v2984 = vlaneseq
        %v2985 = vshrl.u32 %v2984, 7
        %v2986 = vsub.s32 2, %v2985
        %v2987 = vrot.slane %v2719, %v2986
        %v2988 = vlaneseq
        %v2989 = vshrl.u32 %v2988, 7
        %v2990 = vsub.s32 3, %v2989
        %v2991 = vrot.slane %v2719, %v2990
        %v2992 = vlaneseq
        %v2993 = vshrl.u32 %v2992, 7
        %v2994 = vsub.s32 4, %v2993
        %v2995 = vrot.slane %v2719, %v2994
        %v2996 = vlaneseq
        %v2997 = vshrl.u32 %v2996, 7
        %v2998 = vsub.s32 5, %v2997
        %v2999 = vrot.slane %v2719, %v2998
        %v3000 = vlaneseq
        %v3001 = vshrl.u32 %v3000, 7
        %v3002 = vsub.s32 6, %v3001
        %v3003 = vrot.slane %v2719, %v3002
        %v3004 = vlaneseq
        %v3005 = vshrl.u32 %v3004, 7
        %v3006 = vsub.s32 7, %v3005
        %v3007 = vrot.slane %v2719, %v3006
        %v3008 = vlaneseq
        %v3009 = vshrl.u32 %v3008, 7
        %v3010 = vsub.s32 0, %v3009
        %v3011 = vrot.slane %v2723, %v3010
        %v3012 = vlaneseq
        %v3013 = vshrl.u32 %v3012, 7
        %v3014 = vsub.s32 1, %v3013
        %v3015 = vrot.slane %v2723, %v3014
        %v3016 = vlaneseq
        %v3017 = vshrl.u32 %v3016, 7
        %v3018 = vsub.s32 2, %v3017
        %v3019 = vrot.slane %v2723, %v3018
        %v3020 = vlaneseq
        %v3021 = vshrl.u32 %v3020, 7
        %v3022 = vsub.s32 3, %v3021
        %v3023 = vrot.slane %v2723, %v3022
        %v3024 = vlaneseq
        %v3025 = vshrl.u32 %v3024, 7
        %v3026 = vsub.s32 4, %v3025
        %v3027 = vrot.slane %v2723, %v3026
        %v3028 = vlaneseq
        %v3029 = vshrl.u32 %v3028, 7
        %v3030 = vsub.s32 5, %v3029
        %v3031 = vrot.slane %v2723, %v3030
        %v3032 = vlaneseq
        %v3033 = vshrl.u32 %v3032, 7
        %v3034 = vsub.s32 6, %v3033
        %v3035 = vrot.slane %v2723, %v3034
        %v3036 = vlaneseq
        %v3037 = vshrl.u32 %v3036, 7
        %v3038 = vsub.s32 7, %v3037
        %v3039 = vrot.slane %v2723, %v3038
        %v3040 = vlaneseq
        %v3041 = vshrl.u32 %v3040, 7
        %v3042 = vsub.s32 0, %v3041
        %v3043 = vrot.slane %v2727, %v3042
        %v3044 = vlaneseq
        %v3045 = vshrl.u32 %v3044, 7
        %v3046 = vsub.s32 1, %v3045
        %v3047 = vrot.slane %v2727, %v3046
        %v3048 = vlaneseq
        %v3049 = vshrl.u32 %v3048, 7
        %v3050 = vsub.s32 2, %v3049
        %v3051 = vrot.slane %v2727, %v3050
        %v3052 = vlaneseq
        %v3053 = vshrl.u32 %v3052, 7
        %v3054 = vsub.s32 3, %v3053
        %v3055 = vrot.slane %v2727, %v3054
        %v3056 = vlaneseq
        %v3057 = vshrl.u32 %v3056, 7
        %v3058 = vsub.s32 4, %v3057
        %v3059 = vrot.slane %v2727, %v3058
        %v3060 = vlaneseq
        %v3061 = vshrl.u32 %v3060, 7
        %v3062 = vsub.s32 5, %v3061
        %v3063 = vrot.slane %v2727, %v3062
        %v3064 = vlaneseq
        %v3065 = vshrl.u32 %v3064, 7
        %v3066 = vsub.s32 6, %v3065
        %v3067 = vrot.slane %v2727, %v3066
        %v3068 = vlaneseq
        %v3069 = vshrl.u32 %v3068, 7
        %v3070 = vsub.s32 7, %v3069
        %v3071 = vrot.slane %v2727, %v3070
        %v3072 = vlaneseq
        %v3073 = vshrl.u32 %v3072, 7
        %v3074 = vsub.s32 0, %v3073
        %v3075 = vrot.slane %v2731, %v3074
        %v3076 = vlaneseq
        %v3077 = vshrl.u32 %v3076, 7
        %v3078 = vsub.s32 1, %v3077
        %v3079 = vrot.slane %v2731, %v3078
        %v3080 = vlaneseq
        %v3081 = vshrl.u32 %v3080, 7
        %v3082 = vsub.s32 2, %v3081
        %v3083 = vrot.slane %v2731, %v3082
        %v3084 = vlaneseq
        %v3085 = vshrl.u32 %v3084, 7
        %v3086 = vsub.s32 3, %v3085
        %v3087 = vrot.slane %v2731, %v3086
        %v3088 = vlaneseq
        %v3089 = vshrl.u32 %v3088, 7
        %v3090 = vsub.s32 4, %v3089
        %v3091 = vrot.slane %v2731, %v3090
        %v3092 = vlaneseq
        %v3093 = vshrl.u32 %v3092, 7
        %v3094 = vsub.s32 5, %v3093
        %v3095 = vrot.slane %v2731, %v3094
        %v3096 = vlaneseq
        %v3097 = vshrl.u32 %v3096, 7
        %v3098 = vsub.s32 6, %v3097
        %v3099 = vrot.slane %v2731, %v3098
        %v3100 = vlaneseq
        %v3101 = vshrl.u32 %v3100, 7
        %v3102 = vsub.s32 7, %v3101
        %v3103 = vrot.slane %v2731, %v3102
        %v3104 = vlaneseq
        %v3105 = vshrl.u32 %v3104, 7
        %v3106 = vsub.s32 0, %v3105
        %v3107 = vrot.slane %v2735, %v3106
        %v3108 = vlaneseq
        %v3109 = vshrl.u32 %v3108, 7
        %v3110 = vsub.s32 1, %v3109
        %v3111 = vrot.slane %v2735, %v3110
        %v3112 = vlaneseq
        %v3113 = vshrl.u32 %v3112, 7
        %v3114 = vsub.s32 2, %v3113
        %v3115 = vrot.slane %v2735, %v3114
        %v3116 = vlaneseq
        %v3117 = vshrl.u32 %v3116, 7
        %v3118 = vsub.s32 3, %v3117
        %v3119 = vrot.slane %v2735, %v3118
        %v3120 = vlaneseq
        %v3121 = vshrl.u32 %v3120, 7
        %v3122 = vsub.s32 4, %v3121
        %v3123 = vrot.slane %v2735, %v3122
        %v3124 = vlaneseq
        %v3125 = vshrl.u32 %v3124, 7
        %v3126 = vsub.s32 5, %v3125
        %v3127 = vrot.slane %v2735, %v3126
        %v3128 = vlaneseq
        %v3129 = vshrl.u32 %v3128, 7
        %v3130 = vsub.s32 6, %v3129
        %v3131 = vrot.slane %v2735, %v3130
        %v3132 = vlaneseq
        %v3133 = vshrl.u32 %v3132, 7
        %v3134 = vsub.s32 7, %v3133
        %v3135 = vrot.slane %v2735, %v3134
        %v3136 = vlaneseq
        %v3137 = vshrl.u32 %v3136, 7
        %v3138 = vsub.s32 0, %v3137
        %v3139 = vrot.slane %v2739, %v3138
        %v3140 = vlaneseq
        %v3141 = vshrl.u32 %v3140, 7
        %v3142 = vsub.s32 1, %v3141
        %v3143 = vrot.slane %v2739, %v3142
        %v3144 = vlaneseq
        %v3145 = vshrl.u32 %v3144, 7
        %v3146 = vsub.s32 2, %v3145
        %v3147 = vrot.slane %v2739, %v3146
        %v3148 = vlaneseq
        %v3149 = vshrl.u32 %v3148, 7
        %v3150 = vsub.s32 3, %v3149
        %v3151 = vrot.slane %v2739, %v3150
        %v3152 = vlaneseq
        %v3153 = vshrl.u32 %v3152, 7
        %v3154 = vsub.s32 4, %v3153
        %v3155 = vrot.slane %v2739, %v3154
        %v3156 = vlaneseq
        %v3157 = vshrl.u32 %v3156, 7
        %v3158 = vsub.s32 5, %v3157
        %v3159 = vrot.slane %v2739, %v3158
        %v3160 = vlaneseq
        %v3161 = vshrl.u32 %v3160, 7
        %v3162 = vsub.s32 6, %v3161
        %v3163 = vrot.slane %v2739, %v3162
        %v3164 = vlaneseq
        %v3165 = vshrl.u32 %v3164, 7
        %v3166 = vsub.s32 7, %v3165
        %v3167 = vrot.slane %v2739, %v3166
        %v3168 = vlaneseq
        %v3169 = vshrl.u32 %v3168, 7
        %v3170 = vsub.s32 0, %v3169
        %v3171 = vrot.slane %v2743, %v3170
        %v3172 = vlaneseq
        %v3173 = vshrl.u32 %v3172, 7
        %v3174 = vsub.s32 1, %v3173
        %v3175 = vrot.slane %v2743, %v3174
        %v3176 = vlaneseq
        %v3177 = vshrl.u32 %v3176, 7
        %v3178 = vsub.s32 2, %v3177
        %v3179 = vrot.slane %v2743, %v3178
        %v3180 = vlaneseq
        %v3181 = vshrl.u32 %v3180, 7
        %v3182 = vsub.s32 3, %v3181
        %v3183 = vrot.slane %v2743, %v3182
        %v3184 = vlaneseq
        %v3185 = vshrl.u32 %v3184, 7
        %v3186 = vsub.s32 4, %v3185
        %v3187 = vrot.slane %v2743, %v3186
        %v3188 = vlaneseq
        %v3189 = vshrl.u32 %v3188, 7
        %v3190 = vsub.s32 5, %v3189
        %v3191 = vrot.slane %v2743, %v3190
        %v3192 = vlaneseq
        %v3193 = vshrl.u32 %v3192, 7
        %v3194 = vsub.s32 6, %v3193
        %v3195 = vrot.slane %v2743, %v3194
        %v3196 = vlaneseq
        %v3197 = vshrl.u32 %v3196, 7
        %v3198 = vsub.s32 7, %v3197
        %v3199 = vrot.slane %v2743, %v3198
        %v3200 = vlaneseq
        %v3201 = vshrl.u32 %v3200, 7
        %v3202 = vsub.s32 0, %v3201
        %v3203 = vrot.slane %v2747, %v3202
        %v3204 = vlaneseq
        %v3205 = vshrl.u32 %v3204, 7
        %v3206 = vsub.s32 1, %v3205
        %v3207 = vrot.slane %v2747, %v3206
        %v3208 = vlaneseq
        %v3209 = vshrl.u32 %v3208, 7
        %v3210 = vsub.s32 2, %v3209
        %v3211 = vrot.slane %v2747, %v3210
        %v3212 = vlaneseq
        %v3213 = vshrl.u32 %v3212, 7
        %v3214 = vsub.s32 3, %v3213
        %v3215 = vrot.slane %v2747, %v3214
        %v3216 = vlaneseq
        %v3217 = vshrl.u32 %v3216, 7
        %v3218 = vsub.s32 4, %v3217
        %v3219 = vrot.slane %v2747, %v3218
        %v3220 = vlaneseq
        %v3221 = vshrl.u32 %v3220, 7
        %v3222 = vsub.s32 5, %v3221
        %v3223 = vrot.slane %v2747, %v3222
        %v3224 = vlaneseq
        %v3225 = vshrl.u32 %v3224, 7
        %v3226 = vsub.s32 6, %v3225
        %v3227 = vrot.slane %v2747, %v3226
        %v3228 = vlaneseq
        %v3229 = vshrl.u32 %v3228, 7
        %v3230 = vsub.s32 7, %v3229
        %v3231 = vrot.slane %v2747, %v3230
        %v3232 = vlaneseq
        %v3233 = vshrl.u32 %v3232, 7
        %v3234 = vsub.s32 0, %v3233
        %v3235 = vrot.slane %v2751, %v3234
        %v3236 = vlaneseq
        %v3237 = vshrl.u32 %v3236, 7
        %v3238 = vsub.s32 1, %v3237
        %v3239 = vrot.slane %v2751, %v3238
        %v3240 = vlaneseq
        %v3241 = vshrl.u32 %v3240, 7
        %v3242 = vsub.s32 2, %v3241
        %v3243 = vrot.slane %v2751, %v3242
        %v3244 = vlaneseq
        %v3245 = vshrl.u32 %v3244, 7
        %v3246 = vsub.s32 3, %v3245
        %v3247 = vrot.slane %v2751, %v3246
        %v3248 = vlaneseq
        %v3249 = vshrl.u32 %v3248, 7
        %v3250 = vsub.s32 4, %v3249
        %v3251 = vrot.slane %v2751, %v3250
        %v3252 = vlaneseq
        %v3253 = vshrl.u32 %v3252, 7
        %v3254 = vsub.s32 5, %v3253
        %v3255 = vrot.slane %v2751, %v3254
        %v3256 = vlaneseq
        %v3257 = vshrl.u32 %v3256, 7
        %v3258 = vsub.s32 6, %v3257
        %v3259 = vrot.slane %v2751, %v3258
        %v3260 = vlaneseq
        %v3261 = vshrl.u32 %v3260, 7
        %v3262 = vsub.s32 7, %v3261
        %v3263 = vrot.slane %v2751, %v3262
        %v3392 = vadd.f32 %v2273, %v2755
        %v3393 = vadd.f32 %v2276, %v2759
        %v3394 = vadd.f32 %v2279, %v2763
        %v3395 = vadd.f32 %v2282, %v2767
        %v3396 = vadd.f32 %v2285, %v2771
        %v3397 = vadd.f32 %v2288, %v2775
        %v3398 = vadd.f32 %v2291, %v2779
        %v3399 = vadd.f32 %v2294, %v2783
        %v3400 = vadd.f32 %v2297, %v2787
        %v3401 = vadd.f32 %v2300, %v2791
        %v3402 = vadd.f32 %v2303, %v2795
        %v3403 = vadd.f32 %v2306, %v2799
        %v3404 = vadd.f32 %v2309, %v2803
        %v3405 = vadd.f32 %v2312, %v2807
        %v3406 = vadd.f32 %v2315, %v2811
        %v3407 = vadd.f32 %v2318, %v2815
        %v3408 = vadd.f32 %v2321, %v2819
        %v3409 = vadd.f32 %v2324, %v2823
        %v3410 = vadd.f32 %v2327, %v2827
        %v3411 = vadd.f32 %v2330, %v2831
        %v3412 = vadd.f32 %v2333, %v2835
        %v3413 = vadd.f32 %v2336, %v2839
        %v3414 = vadd.f32 %v2339, %v2843
        %v3415 = vadd.f32 %v2342, %v2847
        %v3416 = vadd.f32 %v2345, %v2851
        %v3417 = vadd.f32 %v2348, %v2855
        %v3418 = vadd.f32 %v2351, %v2859
        %v3419 = vadd.f32 %v2354, %v2863
        %v3420 = vadd.f32 %v2357, %v2867
        %v3421 = vadd.f32 %v2360, %v2871
        %v3422 = vadd.f32 %v2363, %v2875
        %v3423 = vadd.f32 %v2366, %v2879
        %v3424 = vadd.f32 %v2369, %v2883
        %v3425 = vadd.f32 %v2372, %v2887
        %v3426 = vadd.f32 %v2375, %v2891
        %v3427 = vadd.f32 %v2378, %v2895
        %v3428 = vadd.f32 %v2381, %v2899
        %v3429 = vadd.f32 %v2384, %v2903
        %v3430 = vadd.f32 %v2387, %v2907
        %v3431 = vadd.f32 %v2390, %v2911
        %v3432 = vadd.f32 %v2393, %v2915
        %v3433 = vadd.f32 %v2396, %v2919
        %v3434 = vadd.f32 %v2399, %v2923
        %v3435 = vadd.f32 %v2402, %v2927
        %v3436 = vadd.f32 %v2405, %v2931
        %v3437 = vadd.f32 %v2408, %v2935
        %v3438 = vadd.f32 %v2411, %v2939
        %v3439 = vadd.f32 %v2414, %v2943
        %v3440 = vadd.f32 %v2417, %v2947
        %v3441 = vadd.f32 %v2420, %v2951
        %v3442 = vadd.f32 %v2423, %v2955
        %v3443 = vadd.f32 %v2426, %v2959
        %v3444 = vadd.f32 %v2429, %v2963
        %v3445 = vadd.f32 %v2432, %v2967
        %v3446 = vadd.f32 %v2435, %v2971
        %v3447 = vadd.f32 %v2438, %v2975
        %v3448 = vadd.f32 %v2441, %v2979
        %v3449 = vadd.f32 %v2444, %v2983
        %v3450 = vadd.f32 %v2447, %v2987
        %v3451 = vadd.f32 %v2450, %v2991
        %v3452 = vadd.f32 %v2453, %v2995
        %v3453 = vadd.f32 %v2456, %v2999
        %v3454 = vadd.f32 %v2459, %v3003
        %v3455 = vadd.f32 %v2462, %v3007
        %v3456 = vadd.f32 %v2465, %v3011
        %v3457 = vadd.f32 %v2468, %v3015
        %v3458 = vadd.f32 %v2471, %v3019
        %v3459 = vadd.f32 %v2474, %v3023
        %v3460 = vadd.f32 %v2477, %v3027
        %v3461 = vadd.f32 %v2480, %v3031
        %v3462 = vadd.f32 %v2483, %v3035
        %v3463 = vadd.f32 %v2486, %v3039
        %v3464 = vadd.f32 %v2489, %v3043
        %v3465 = vadd.f32 %v2492, %v3047
        %v3466 = vadd.f32 %v2495, %v3051
        %v3467 = vadd.f32 %v2498, %v3055
        %v3468 = vadd.f32 %v2501, %v3059
        %v3469 = vadd.f32 %v2504, %v3063
        %v3470 = vadd.f32 %v2507, %v3067
        %v3471 = vadd.f32 %v2510, %v3071
        %v3472 = vadd.f32 %v2513, %v3075
        %v3473 = vadd.f32 %v2516, %v3079
        %v3474 = vadd.f32 %v2519, %v3083
        %v3475 = vadd.f32 %v2522, %v3087
        %v3476 = vadd.f32 %v2525, %v3091
        %v3477 = vadd.f32 %v2528, %v3095
        %v3478 = vadd.f32 %v2531, %v3099
        %v3479 = vadd.f32 %v2534, %v3103
        %v3480 = vadd.f32 %v2537, %v3107
        %v3481 = vadd.f32 %v2540, %v3111
        %v3482 = vadd.f32 %v2543, %v3115
        %v3483 = vadd.f32 %v2546, %v3119
        %v3484 = vadd.f32 %v2549, %v3123
        %v3485 = vadd.f32 %v2552, %v3127
        %v3486 = vadd.f32 %v2555, %v3131
        %v3487 = vadd.f32 %v2558, %v3135
        %v3488 = vadd.f32 %v2561, %v3139
        %v3489 = vadd.f32 %v2564, %v3143
        %v3490 = vadd.f32 %v2567, %v3147
        %v3491 = vadd.f32 %v2570, %v3151
        %v3492 = vadd.f32 %v2573, %v3155
        %v3493 = vadd.f32 %v2576, %v3159
        %v3494 = vadd.f32 %v2579, %v3163
        %v3495 = vadd.f32 %v2582, %v3167
        %v3496 = vadd.f32 %v2585, %v3171
        %v3497 = vadd.f32 %v2588, %v3175
        %v3498 = vadd.f32 %v2591, %v3179
        %v3499 = vadd.f32 %v2594, %v3183
        %v3500 = vadd.f32 %v2597, %v3187
        %v3501 = vadd.f32 %v2600, %v3191
        %v3502 = vadd.f32 %v2603, %v3195
        %v3503 = vadd.f32 %v2606, %v3199
        %v3504 = vadd.f32 %v2609, %v3203
        %v3505 = vadd.f32 %v2612, %v3207
        %v3506 = vadd.f32 %v2615, %v3211
        %v3507 = vadd.f32 %v2618, %v3215
        %v3508 = vadd.f32 %v2621, %v3219
        %v3509 = vadd.f32 %v2624, %v3223
        %v3510 = vadd.f32 %v2627, %v3227
        %v3511 = vadd.f32 %v2630, %v3231
        %v3512 = vadd.f32 %v2633, %v3235
        %v3513 = vadd.f32 %v2636, %v3239
        %v3514 = vadd.f32 %v2639, %v3243
        %v3515 = vadd.f32 %v2642, %v3247
        %v3516 = vadd.f32 %v2645, %v3251
        %v3517 = vadd.f32 %v2648, %v3255
        %v3518 = vadd.f32 %v2651, %v3259
        %v3519 = vadd.f32 %v2654, %v3263
        %v3520 = vld [vmem:[%s365] sm:$0xff]
        %v3521 = vld [vmem:[%s365 + $0x8] sm:$0xff]
        %v3522 = vld [vmem:[%s365 + $0x10] sm:$0xff]
        %v3523 = vld [vmem:[%s365 + $0x18] sm:$0xff]
        %v3524 = vld [vmem:[%s365 + $0x20] sm:$0xff]
        %v3525 = vld [vmem:[%s365 + $0x28] sm:$0xff]
        %v3526 = vld [vmem:[%s365 + $0x30] sm:$0xff]
        %v3527 = vld [vmem:[%s365 + $0x38] sm:$0xff]
        %v3528 = vld [vmem:[%s365 + $0x40] sm:$0xff]
        %v3529 = vld [vmem:[%s365 + $0x48] sm:$0xff]
        %v3530 = vld [vmem:[%s365 + $0x50] sm:$0xff]
        %v3531 = vld [vmem:[%s365 + $0x58] sm:$0xff]
        %v3532 = vld [vmem:[%s365 + $0x60] sm:$0xff]
        %v3533 = vld [vmem:[%s365 + $0x68] sm:$0xff]
        %v3534 = vld [vmem:[%s365 + $0x70] sm:$0xff]
        %v3535 = vld [vmem:[%s365 + $0x78] sm:$0xff]
        %v3552 = vlaneseq
        %v3553 = vshrl.u32 %v3552, 7
        %v3554 = vsub.s32 0, %v3553
        %v3555 = vrot.slane %v3520, %v3554
        %3557 = vbcast.lane.b32.xlu0 %v3555, 256
        %v3558 = vpop.permute.xlu0 %3557
        %v3559 = vlaneseq
        %v3560 = vshrl.u32 %v3559, 7
        %v3561 = vsub.s32 1, %v3560
        %v3562 = vrot.slane %v3520, %v3561
        %3564 = vbcast.lane.b32.xlu0 %v3562, 256
        %v3565 = vpop.permute.xlu0 %3564
        %v3566 = vlaneseq
        %v3567 = vshrl.u32 %v3566, 7
        %v3568 = vsub.s32 2, %v3567
        %v3569 = vrot.slane %v3520, %v3568
        %3571 = vbcast.lane.b32.xlu0 %v3569, 256
        %v3572 = vpop.permute.xlu0 %3571
        %v3573 = vlaneseq
        %v3574 = vshrl.u32 %v3573, 7
        %v3575 = vsub.s32 3, %v3574
        %v3576 = vrot.slane %v3520, %v3575
        %3578 = vbcast.lane.b32.xlu0 %v3576, 256
        %v3579 = vpop.permute.xlu0 %3578
        %v3580 = vlaneseq
        %v3581 = vshrl.u32 %v3580, 7
        %v3582 = vsub.s32 4, %v3581
        %v3583 = vrot.slane %v3520, %v3582
        %3585 = vbcast.lane.b32.xlu0 %v3583, 256
        %v3586 = vpop.permute.xlu0 %3585
        %v3587 = vlaneseq
        %v3588 = vshrl.u32 %v3587, 7
        %v3589 = vsub.s32 5, %v3588
        %v3590 = vrot.slane %v3520, %v3589
        %3592 = vbcast.lane.b32.xlu0 %v3590, 256
        %v3593 = vpop.permute.xlu0 %3592
        %v3594 = vlaneseq
        %v3595 = vshrl.u32 %v3594, 7
        %v3596 = vsub.s32 6, %v3595
        %v3597 = vrot.slane %v3520, %v3596
        %3599 = vbcast.lane.b32.xlu0 %v3597, 256
        %v3600 = vpop.permute.xlu0 %3599
        %v3601 = vlaneseq
        %v3602 = vshrl.u32 %v3601, 7
        %v3603 = vsub.s32 7, %v3602
        %v3604 = vrot.slane %v3520, %v3603
        %3606 = vbcast.lane.b32.xlu0 %v3604, 256
        %v3607 = vpop.permute.xlu0 %3606
        %v3608 = vlaneseq
        %v3609 = vshrl.u32 %v3608, 7
        %v3610 = vsub.s32 0, %v3609
        %v3611 = vrot.slane %v3521, %v3610
        %3613 = vbcast.lane.b32.xlu0 %v3611, 256
        %v3614 = vpop.permute.xlu0 %3613
        %v3615 = vlaneseq
        %v3616 = vshrl.u32 %v3615, 7
        %v3617 = vsub.s32 1, %v3616
        %v3618 = vrot.slane %v3521, %v3617
        %3620 = vbcast.lane.b32.xlu0 %v3618, 256
        %v3621 = vpop.permute.xlu0 %3620
        %v3622 = vlaneseq
        %v3623 = vshrl.u32 %v3622, 7
        %v3624 = vsub.s32 2, %v3623
        %v3625 = vrot.slane %v3521, %v3624
        %3627 = vbcast.lane.b32.xlu0 %v3625, 256
        %v3628 = vpop.permute.xlu0 %3627
        %v3629 = vlaneseq
        %v3630 = vshrl.u32 %v3629, 7
        %v3631 = vsub.s32 3, %v3630
        %v3632 = vrot.slane %v3521, %v3631
        %3634 = vbcast.lane.b32.xlu0 %v3632, 256
        %v3635 = vpop.permute.xlu0 %3634
        %v3636 = vlaneseq
        %v3637 = vshrl.u32 %v3636, 7
        %v3638 = vsub.s32 4, %v3637
        %v3639 = vrot.slane %v3521, %v3638
        %3641 = vbcast.lane.b32.xlu0 %v3639, 256
        %v3642 = vpop.permute.xlu0 %3641
        %v3643 = vlaneseq
        %v3644 = vshrl.u32 %v3643, 7
        %v3645 = vsub.s32 5, %v3644
        %v3646 = vrot.slane %v3521, %v3645
        %3648 = vbcast.lane.b32.xlu0 %v3646, 256
        %v3649 = vpop.permute.xlu0 %3648
        %v3650 = vlaneseq
        %v3651 = vshrl.u32 %v3650, 7
        %v3652 = vsub.s32 6, %v3651
        %v3653 = vrot.slane %v3521, %v3652
        %3655 = vbcast.lane.b32.xlu0 %v3653, 256
        %v3656 = vpop.permute.xlu0 %3655
        %v3657 = vlaneseq
        %v3658 = vshrl.u32 %v3657, 7
        %v3659 = vsub.s32 7, %v3658
        %v3660 = vrot.slane %v3521, %v3659
        %3662 = vbcast.lane.b32.xlu0 %v3660, 256
        %v3663 = vpop.permute.xlu0 %3662
        %v3664 = vlaneseq
        %v3665 = vshrl.u32 %v3664, 7
        %v3666 = vsub.s32 0, %v3665
        %v3667 = vrot.slane %v3522, %v3666
        %3669 = vbcast.lane.b32.xlu0 %v3667, 256
        %v3670 = vpop.permute.xlu0 %3669
        %v3671 = vlaneseq
        %v3672 = vshrl.u32 %v3671, 7
        %v3673 = vsub.s32 1, %v3672
        %v3674 = vrot.slane %v3522, %v3673
        %3676 = vbcast.lane.b32.xlu0 %v3674, 256
        %v3677 = vpop.permute.xlu0 %3676
        %v3678 = vlaneseq
        %v3679 = vshrl.u32 %v3678, 7
        %v3680 = vsub.s32 2, %v3679
        %v3681 = vrot.slane %v3522, %v3680
        %3683 = vbcast.lane.b32.xlu0 %v3681, 256
        %v3684 = vpop.permute.xlu0 %3683
        %v3685 = vlaneseq
        %v3686 = vshrl.u32 %v3685, 7
        %v3687 = vsub.s32 3, %v3686
        %v3688 = vrot.slane %v3522, %v3687
        %3690 = vbcast.lane.b32.xlu0 %v3688, 256
        %v3691 = vpop.permute.xlu0 %3690
        %v3692 = vlaneseq
        %v3693 = vshrl.u32 %v3692, 7
        %v3694 = vsub.s32 4, %v3693
        %v3695 = vrot.slane %v3522, %v3694
        %3697 = vbcast.lane.b32.xlu0 %v3695, 256
        %v3698 = vpop.permute.xlu0 %3697
        %v3699 = vlaneseq
        %v3700 = vshrl.u32 %v3699, 7
        %v3701 = vsub.s32 5, %v3700
        %v3702 = vrot.slane %v3522, %v3701
        %3704 = vbcast.lane.b32.xlu0 %v3702, 256
        %v3705 = vpop.permute.xlu0 %3704
        %v3706 = vlaneseq
        %v3707 = vshrl.u32 %v3706, 7
        %v3708 = vsub.s32 6, %v3707
        %v3709 = vrot.slane %v3522, %v3708
        %3711 = vbcast.lane.b32.xlu0 %v3709, 256
        %v3712 = vpop.permute.xlu0 %3711
        %v3713 = vlaneseq
        %v3714 = vshrl.u32 %v3713, 7
        %v3715 = vsub.s32 7, %v3714
        %v3716 = vrot.slane %v3522, %v3715
        %3718 = vbcast.lane.b32.xlu0 %v3716, 256
        %v3719 = vpop.permute.xlu0 %3718
        %v3720 = vlaneseq
        %v3721 = vshrl.u32 %v3720, 7
        %v3722 = vsub.s32 0, %v3721
        %v3723 = vrot.slane %v3523, %v3722
        %3725 = vbcast.lane.b32.xlu0 %v3723, 256
        %v3726 = vpop.permute.xlu0 %3725
        %v3727 = vlaneseq
        %v3728 = vshrl.u32 %v3727, 7
        %v3729 = vsub.s32 1, %v3728
        %v3730 = vrot.slane %v3523, %v3729
        %3732 = vbcast.lane.b32.xlu0 %v3730, 256
        %v3733 = vpop.permute.xlu0 %3732
        %v3734 = vlaneseq
        %v3735 = vshrl.u32 %v3734, 7
        %v3736 = vsub.s32 2, %v3735
        %v3737 = vrot.slane %v3523, %v3736
        %3739 = vbcast.lane.b32.xlu0 %v3737, 256
        %v3740 = vpop.permute.xlu0 %3739
        %v3741 = vlaneseq
        %v3742 = vshrl.u32 %v3741, 7
        %v3743 = vsub.s32 3, %v3742
        %v3744 = vrot.slane %v3523, %v3743
        %3746 = vbcast.lane.b32.xlu0 %v3744, 256
        %v3747 = vpop.permute.xlu0 %3746
        %v3748 = vlaneseq
        %v3749 = vshrl.u32 %v3748, 7
        %v3750 = vsub.s32 4, %v3749
        %v3751 = vrot.slane %v3523, %v3750
        %3753 = vbcast.lane.b32.xlu0 %v3751, 256
        %v3754 = vpop.permute.xlu0 %3753
        %v3755 = vlaneseq
        %v3756 = vshrl.u32 %v3755, 7
        %v3757 = vsub.s32 5, %v3756
        %v3758 = vrot.slane %v3523, %v3757
        %3760 = vbcast.lane.b32.xlu0 %v3758, 256
        %v3761 = vpop.permute.xlu0 %3760
        %v3762 = vlaneseq
        %v3763 = vshrl.u32 %v3762, 7
        %v3764 = vsub.s32 6, %v3763
        %v3765 = vrot.slane %v3523, %v3764
        %3767 = vbcast.lane.b32.xlu0 %v3765, 256
        %v3768 = vpop.permute.xlu0 %3767
        %v3769 = vlaneseq
        %v3770 = vshrl.u32 %v3769, 7
        %v3771 = vsub.s32 7, %v3770
        %v3772 = vrot.slane %v3523, %v3771
        %3774 = vbcast.lane.b32.xlu0 %v3772, 256
        %v3775 = vpop.permute.xlu0 %3774
        %v3776 = vlaneseq
        %v3777 = vshrl.u32 %v3776, 7
        %v3778 = vsub.s32 0, %v3777
        %v3779 = vrot.slane %v3524, %v3778
        %3781 = vbcast.lane.b32.xlu0 %v3779, 256
        %v3782 = vpop.permute.xlu0 %3781
        %v3783 = vlaneseq
        %v3784 = vshrl.u32 %v3783, 7
        %v3785 = vsub.s32 1, %v3784
        %v3786 = vrot.slane %v3524, %v3785
        %3788 = vbcast.lane.b32.xlu0 %v3786, 256
        %v3789 = vpop.permute.xlu0 %3788
        %v3790 = vlaneseq
        %v3791 = vshrl.u32 %v3790, 7
        %v3792 = vsub.s32 2, %v3791
        %v3793 = vrot.slane %v3524, %v3792
        %3795 = vbcast.lane.b32.xlu0 %v3793, 256
        %v3796 = vpop.permute.xlu0 %3795
        %v3797 = vlaneseq
        %v3798 = vshrl.u32 %v3797, 7
        %v3799 = vsub.s32 3, %v3798
        %v3800 = vrot.slane %v3524, %v3799
        %3802 = vbcast.lane.b32.xlu0 %v3800, 256
        %v3803 = vpop.permute.xlu0 %3802
        %v3804 = vlaneseq
        %v3805 = vshrl.u32 %v3804, 7
        %v3806 = vsub.s32 4, %v3805
        %v3807 = vrot.slane %v3524, %v3806
        %3809 = vbcast.lane.b32.xlu0 %v3807, 256
        %v3810 = vpop.permute.xlu0 %3809
        %v3811 = vlaneseq
        %v3812 = vshrl.u32 %v3811, 7
        %v3813 = vsub.s32 5, %v3812
        %v3814 = vrot.slane %v3524, %v3813
        %3816 = vbcast.lane.b32.xlu0 %v3814, 256
        %v3817 = vpop.permute.xlu0 %3816
        %v3818 = vlaneseq
        %v3819 = vshrl.u32 %v3818, 7
        %v3820 = vsub.s32 6, %v3819
        %v3821 = vrot.slane %v3524, %v3820
        %3823 = vbcast.lane.b32.xlu0 %v3821, 256
        %v3824 = vpop.permute.xlu0 %3823
        %v3825 = vlaneseq
        %v3826 = vshrl.u32 %v3825, 7
        %v3827 = vsub.s32 7, %v3826
        %v3828 = vrot.slane %v3524, %v3827
        %3830 = vbcast.lane.b32.xlu0 %v3828, 256
        %v3831 = vpop.permute.xlu0 %3830
        %v3832 = vlaneseq
        %v3833 = vshrl.u32 %v3832, 7
        %v3834 = vsub.s32 0, %v3833
        %v3835 = vrot.slane %v3525, %v3834
        %3837 = vbcast.lane.b32.xlu0 %v3835, 256
        %v3838 = vpop.permute.xlu0 %3837
        %v3839 = vlaneseq
        %v3840 = vshrl.u32 %v3839, 7
        %v3841 = vsub.s32 1, %v3840
        %v3842 = vrot.slane %v3525, %v3841
        %3844 = vbcast.lane.b32.xlu0 %v3842, 256
        %v3845 = vpop.permute.xlu0 %3844
        %v3846 = vlaneseq
        %v3847 = vshrl.u32 %v3846, 7
        %v3848 = vsub.s32 2, %v3847
        %v3849 = vrot.slane %v3525, %v3848
        %3851 = vbcast.lane.b32.xlu0 %v3849, 256
        %v3852 = vpop.permute.xlu0 %3851
        %v3853 = vlaneseq
        %v3854 = vshrl.u32 %v3853, 7
        %v3855 = vsub.s32 3, %v3854
        %v3856 = vrot.slane %v3525, %v3855
        %3858 = vbcast.lane.b32.xlu0 %v3856, 256
        %v3859 = vpop.permute.xlu0 %3858
        %v3860 = vlaneseq
        %v3861 = vshrl.u32 %v3860, 7
        %v3862 = vsub.s32 4, %v3861
        %v3863 = vrot.slane %v3525, %v3862
        %3865 = vbcast.lane.b32.xlu0 %v3863, 256
        %v3866 = vpop.permute.xlu0 %3865
        %v3867 = vlaneseq
        %v3868 = vshrl.u32 %v3867, 7
        %v3869 = vsub.s32 5, %v3868
        %v3870 = vrot.slane %v3525, %v3869
        %3872 = vbcast.lane.b32.xlu0 %v3870, 256
        %v3873 = vpop.permute.xlu0 %3872
        %v3874 = vlaneseq
        %v3875 = vshrl.u32 %v3874, 7
        %v3876 = vsub.s32 6, %v3875
        %v3877 = vrot.slane %v3525, %v3876
        %3879 = vbcast.lane.b32.xlu0 %v3877, 256
        %v3880 = vpop.permute.xlu0 %3879
        %v3881 = vlaneseq
        %v3882 = vshrl.u32 %v3881, 7
        %v3883 = vsub.s32 7, %v3882
        %v3884 = vrot.slane %v3525, %v3883
        %3886 = vbcast.lane.b32.xlu0 %v3884, 256
        %v3887 = vpop.permute.xlu0 %3886
        %v3888 = vlaneseq
        %v3889 = vshrl.u32 %v3888, 7
        %v3890 = vsub.s32 0, %v3889
        %v3891 = vrot.slane %v3526, %v3890
        %3893 = vbcast.lane.b32.xlu0 %v3891, 256
        %v3894 = vpop.permute.xlu0 %3893
        %v3895 = vlaneseq
        %v3896 = vshrl.u32 %v3895, 7
        %v3897 = vsub.s32 1, %v3896
        %v3898 = vrot.slane %v3526, %v3897
        %3900 = vbcast.lane.b32.xlu0 %v3898, 256
        %v3901 = vpop.permute.xlu0 %3900
        %v3902 = vlaneseq
        %v3903 = vshrl.u32 %v3902, 7
        %v3904 = vsub.s32 2, %v3903
        %v3905 = vrot.slane %v3526, %v3904
        %3907 = vbcast.lane.b32.xlu0 %v3905, 256
        %v3908 = vpop.permute.xlu0 %3907
        %v3909 = vlaneseq
        %v3910 = vshrl.u32 %v3909, 7
        %v3911 = vsub.s32 3, %v3910
        %v3912 = vrot.slane %v3526, %v3911
        %3914 = vbcast.lane.b32.xlu0 %v3912, 256
        %v3915 = vpop.permute.xlu0 %3914
        %v3916 = vlaneseq
        %v3917 = vshrl.u32 %v3916, 7
        %v3918 = vsub.s32 4, %v3917
        %v3919 = vrot.slane %v3526, %v3918
        %3921 = vbcast.lane.b32.xlu0 %v3919, 256
        %v3922 = vpop.permute.xlu0 %3921
        %v3923 = vlaneseq
        %v3924 = vshrl.u32 %v3923, 7
        %v3925 = vsub.s32 5, %v3924
        %v3926 = vrot.slane %v3526, %v3925
        %3928 = vbcast.lane.b32.xlu0 %v3926, 256
        %v3929 = vpop.permute.xlu0 %3928
        %v3930 = vlaneseq
        %v3931 = vshrl.u32 %v3930, 7
        %v3932 = vsub.s32 6, %v3931
        %v3933 = vrot.slane %v3526, %v3932
        %3935 = vbcast.lane.b32.xlu0 %v3933, 256
        %v3936 = vpop.permute.xlu0 %3935
        %v3937 = vlaneseq
        %v3938 = vshrl.u32 %v3937, 7
        %v3939 = vsub.s32 7, %v3938
        %v3940 = vrot.slane %v3526, %v3939
        %3942 = vbcast.lane.b32.xlu0 %v3940, 256
        %v3943 = vpop.permute.xlu0 %3942
        %v3944 = vlaneseq
        %v3945 = vshrl.u32 %v3944, 7
        %v3946 = vsub.s32 0, %v3945
        %v3947 = vrot.slane %v3527, %v3946
        %3949 = vbcast.lane.b32.xlu0 %v3947, 256
        %v3950 = vpop.permute.xlu0 %3949
        %v3951 = vlaneseq
        %v3952 = vshrl.u32 %v3951, 7
        %v3953 = vsub.s32 1, %v3952
        %v3954 = vrot.slane %v3527, %v3953
        %3956 = vbcast.lane.b32.xlu0 %v3954, 256
        %v3957 = vpop.permute.xlu0 %3956
        %v3958 = vlaneseq
        %v3959 = vshrl.u32 %v3958, 7
        %v3960 = vsub.s32 2, %v3959
        %v3961 = vrot.slane %v3527, %v3960
        %3963 = vbcast.lane.b32.xlu0 %v3961, 256
        %v3964 = vpop.permute.xlu0 %3963
        %v3965 = vlaneseq
        %v3966 = vshrl.u32 %v3965, 7
        %v3967 = vsub.s32 3, %v3966
        %v3968 = vrot.slane %v3527, %v3967
        %3970 = vbcast.lane.b32.xlu0 %v3968, 256
        %v3971 = vpop.permute.xlu0 %3970
        %v3972 = vlaneseq
        %v3973 = vshrl.u32 %v3972, 7
        %v3974 = vsub.s32 4, %v3973
        %v3975 = vrot.slane %v3527, %v3974
        %3977 = vbcast.lane.b32.xlu0 %v3975, 256
        %v3978 = vpop.permute.xlu0 %3977
        %v3979 = vlaneseq
        %v3980 = vshrl.u32 %v3979, 7
        %v3981 = vsub.s32 5, %v3980
        %v3982 = vrot.slane %v3527, %v3981
        %3984 = vbcast.lane.b32.xlu0 %v3982, 256
        %v3985 = vpop.permute.xlu0 %3984
        %v3986 = vlaneseq
        %v3987 = vshrl.u32 %v3986, 7
        %v3988 = vsub.s32 6, %v3987
        %v3989 = vrot.slane %v3527, %v3988
        %3991 = vbcast.lane.b32.xlu0 %v3989, 256
        %v3992 = vpop.permute.xlu0 %3991
        %v3993 = vlaneseq
        %v3994 = vshrl.u32 %v3993, 7
        %v3995 = vsub.s32 7, %v3994
        %v3996 = vrot.slane %v3527, %v3995
        %3998 = vbcast.lane.b32.xlu0 %v3996, 256
        %v3999 = vpop.permute.xlu0 %3998
        %v4000 = vlaneseq
        %v4001 = vshrl.u32 %v4000, 7
        %v4002 = vsub.s32 0, %v4001
        %v4003 = vrot.slane %v3528, %v4002
        %4005 = vbcast.lane.b32.xlu0 %v4003, 256
        %v4006 = vpop.permute.xlu0 %4005
        %v4007 = vlaneseq
        %v4008 = vshrl.u32 %v4007, 7
        %v4009 = vsub.s32 1, %v4008
        %v4010 = vrot.slane %v3528, %v4009
        %4012 = vbcast.lane.b32.xlu0 %v4010, 256
        %v4013 = vpop.permute.xlu0 %4012
        %v4014 = vlaneseq
        %v4015 = vshrl.u32 %v4014, 7
        %v4016 = vsub.s32 2, %v4015
        %v4017 = vrot.slane %v3528, %v4016
        %4019 = vbcast.lane.b32.xlu0 %v4017, 256
        %v4020 = vpop.permute.xlu0 %4019
        %v4021 = vlaneseq
        %v4022 = vshrl.u32 %v4021, 7
        %v4023 = vsub.s32 3, %v4022
        %v4024 = vrot.slane %v3528, %v4023
        %4026 = vbcast.lane.b32.xlu0 %v4024, 256
        %v4027 = vpop.permute.xlu0 %4026
        %v4028 = vlaneseq
        %v4029 = vshrl.u32 %v4028, 7
        %v4030 = vsub.s32 4, %v4029
        %v4031 = vrot.slane %v3528, %v4030
        %4033 = vbcast.lane.b32.xlu0 %v4031, 256
        %v4034 = vpop.permute.xlu0 %4033
        %v4035 = vlaneseq
        %v4036 = vshrl.u32 %v4035, 7
        %v4037 = vsub.s32 5, %v4036
        %v4038 = vrot.slane %v3528, %v4037
        %4040 = vbcast.lane.b32.xlu0 %v4038, 256
        %v4041 = vpop.permute.xlu0 %4040
        %v4042 = vlaneseq
        %v4043 = vshrl.u32 %v4042, 7
        %v4044 = vsub.s32 6, %v4043
        %v4045 = vrot.slane %v3528, %v4044
        %4047 = vbcast.lane.b32.xlu0 %v4045, 256
        %v4048 = vpop.permute.xlu0 %4047
        %v4049 = vlaneseq
        %v4050 = vshrl.u32 %v4049, 7
        %v4051 = vsub.s32 7, %v4050
        %v4052 = vrot.slane %v3528, %v4051
        %4054 = vbcast.lane.b32.xlu0 %v4052, 256
        %v4055 = vpop.permute.xlu0 %4054
        %v4056 = vlaneseq
        %v4057 = vshrl.u32 %v4056, 7
        %v4058 = vsub.s32 0, %v4057
        %v4059 = vrot.slane %v3529, %v4058
        %4061 = vbcast.lane.b32.xlu0 %v4059, 256
        %v4062 = vpop.permute.xlu0 %4061
        %v4063 = vlaneseq
        %v4064 = vshrl.u32 %v4063, 7
        %v4065 = vsub.s32 1, %v4064
        %v4066 = vrot.slane %v3529, %v4065
        %4068 = vbcast.lane.b32.xlu0 %v4066, 256
        %v4069 = vpop.permute.xlu0 %4068
        %v4070 = vlaneseq
        %v4071 = vshrl.u32 %v4070, 7
        %v4072 = vsub.s32 2, %v4071
        %v4073 = vrot.slane %v3529, %v4072
        %4075 = vbcast.lane.b32.xlu0 %v4073, 256
        %v4076 = vpop.permute.xlu0 %4075
        %v4077 = vlaneseq
        %v4078 = vshrl.u32 %v4077, 7
        %v4079 = vsub.s32 3, %v4078
        %v4080 = vrot.slane %v3529, %v4079
        %4082 = vbcast.lane.b32.xlu0 %v4080, 256
        %v4083 = vpop.permute.xlu0 %4082
        %v4084 = vlaneseq
        %v4085 = vshrl.u32 %v4084, 7
        %v4086 = vsub.s32 4, %v4085
        %v4087 = vrot.slane %v3529, %v4086
        %4089 = vbcast.lane.b32.xlu0 %v4087, 256
        %v4090 = vpop.permute.xlu0 %4089
        %v4091 = vlaneseq
        %v4092 = vshrl.u32 %v4091, 7
        %v4093 = vsub.s32 5, %v4092
        %v4094 = vrot.slane %v3529, %v4093
        %4096 = vbcast.lane.b32.xlu0 %v4094, 256
        %v4097 = vpop.permute.xlu0 %4096
        %v4098 = vlaneseq
        %v4099 = vshrl.u32 %v4098, 7
        %v4100 = vsub.s32 6, %v4099
        %v4101 = vrot.slane %v3529, %v4100
        %4103 = vbcast.lane.b32.xlu0 %v4101, 256
        %v4104 = vpop.permute.xlu0 %4103
        %v4105 = vlaneseq
        %v4106 = vshrl.u32 %v4105, 7
        %v4107 = vsub.s32 7, %v4106
        %v4108 = vrot.slane %v3529, %v4107
        %4110 = vbcast.lane.b32.xlu0 %v4108, 256
        %v4111 = vpop.permute.xlu0 %4110
        %v4112 = vlaneseq
        %v4113 = vshrl.u32 %v4112, 7
        %v4114 = vsub.s32 0, %v4113
        %v4115 = vrot.slane %v3530, %v4114
        %4117 = vbcast.lane.b32.xlu0 %v4115, 256
        %v4118 = vpop.permute.xlu0 %4117
        %v4119 = vlaneseq
        %v4120 = vshrl.u32 %v4119, 7
        %v4121 = vsub.s32 1, %v4120
        %v4122 = vrot.slane %v3530, %v4121
        %4124 = vbcast.lane.b32.xlu0 %v4122, 256
        %v4125 = vpop.permute.xlu0 %4124
        %v4126 = vlaneseq
        %v4127 = vshrl.u32 %v4126, 7
        %v4128 = vsub.s32 2, %v4127
        %v4129 = vrot.slane %v3530, %v4128
        %4131 = vbcast.lane.b32.xlu0 %v4129, 256
        %v4132 = vpop.permute.xlu0 %4131
        %v4133 = vlaneseq
        %v4134 = vshrl.u32 %v4133, 7
        %v4135 = vsub.s32 3, %v4134
        %v4136 = vrot.slane %v3530, %v4135
        %4138 = vbcast.lane.b32.xlu0 %v4136, 256
        %v4139 = vpop.permute.xlu0 %4138
        %v4140 = vlaneseq
        %v4141 = vshrl.u32 %v4140, 7
        %v4142 = vsub.s32 4, %v4141
        %v4143 = vrot.slane %v3530, %v4142
        %4145 = vbcast.lane.b32.xlu0 %v4143, 256
        %v4146 = vpop.permute.xlu0 %4145
        %v4147 = vlaneseq
        %v4148 = vshrl.u32 %v4147, 7
        %v4149 = vsub.s32 5, %v4148
        %v4150 = vrot.slane %v3530, %v4149
        %4152 = vbcast.lane.b32.xlu0 %v4150, 256
        %v4153 = vpop.permute.xlu0 %4152
        %v4154 = vlaneseq
        %v4155 = vshrl.u32 %v4154, 7
        %v4156 = vsub.s32 6, %v4155
        %v4157 = vrot.slane %v3530, %v4156
        %4159 = vbcast.lane.b32.xlu0 %v4157, 256
        %v4160 = vpop.permute.xlu0 %4159
        %v4161 = vlaneseq
        %v4162 = vshrl.u32 %v4161, 7
        %v4163 = vsub.s32 7, %v4162
        %v4164 = vrot.slane %v3530, %v4163
        %4166 = vbcast.lane.b32.xlu0 %v4164, 256
        %v4167 = vpop.permute.xlu0 %4166
        %v4168 = vlaneseq
        %v4169 = vshrl.u32 %v4168, 7
        %v4170 = vsub.s32 0, %v4169
        %v4171 = vrot.slane %v3531, %v4170
        %4173 = vbcast.lane.b32.xlu0 %v4171, 256
        %v4174 = vpop.permute.xlu0 %4173
        %v4175 = vlaneseq
        %v4176 = vshrl.u32 %v4175, 7
        %v4177 = vsub.s32 1, %v4176
        %v4178 = vrot.slane %v3531, %v4177
        %4180 = vbcast.lane.b32.xlu0 %v4178, 256
        %v4181 = vpop.permute.xlu0 %4180
        %v4182 = vlaneseq
        %v4183 = vshrl.u32 %v4182, 7
        %v4184 = vsub.s32 2, %v4183
        %v4185 = vrot.slane %v3531, %v4184
        %4187 = vbcast.lane.b32.xlu0 %v4185, 256
        %v4188 = vpop.permute.xlu0 %4187
        %v4189 = vlaneseq
        %v4190 = vshrl.u32 %v4189, 7
        %v4191 = vsub.s32 3, %v4190
        %v4192 = vrot.slane %v3531, %v4191
        %4194 = vbcast.lane.b32.xlu0 %v4192, 256
        %v4195 = vpop.permute.xlu0 %4194
        %v4196 = vlaneseq
        %v4197 = vshrl.u32 %v4196, 7
        %v4198 = vsub.s32 4, %v4197
        %v4199 = vrot.slane %v3531, %v4198
        %4201 = vbcast.lane.b32.xlu0 %v4199, 256
        %v4202 = vpop.permute.xlu0 %4201
        %v4203 = vlaneseq
        %v4204 = vshrl.u32 %v4203, 7
        %v4205 = vsub.s32 5, %v4204
        %v4206 = vrot.slane %v3531, %v4205
        %4208 = vbcast.lane.b32.xlu0 %v4206, 256
        %v4209 = vpop.permute.xlu0 %4208
        %v4210 = vlaneseq
        %v4211 = vshrl.u32 %v4210, 7
        %v4212 = vsub.s32 6, %v4211
        %v4213 = vrot.slane %v3531, %v4212
        %4215 = vbcast.lane.b32.xlu0 %v4213, 256
        %v4216 = vpop.permute.xlu0 %4215
        %v4217 = vlaneseq
        %v4218 = vshrl.u32 %v4217, 7
        %v4219 = vsub.s32 7, %v4218
        %v4220 = vrot.slane %v3531, %v4219
        %4222 = vbcast.lane.b32.xlu0 %v4220, 256
        %v4223 = vpop.permute.xlu0 %4222
        %v4224 = vlaneseq
        %v4225 = vshrl.u32 %v4224, 7
        %v4226 = vsub.s32 0, %v4225
        %v4227 = vrot.slane %v3532, %v4226
        %4229 = vbcast.lane.b32.xlu0 %v4227, 256
        %v4230 = vpop.permute.xlu0 %4229
        %v4231 = vlaneseq
        %v4232 = vshrl.u32 %v4231, 7
        %v4233 = vsub.s32 1, %v4232
        %v4234 = vrot.slane %v3532, %v4233
        %4236 = vbcast.lane.b32.xlu0 %v4234, 256
        %v4237 = vpop.permute.xlu0 %4236
        %v4238 = vlaneseq
        %v4239 = vshrl.u32 %v4238, 7
        %v4240 = vsub.s32 2, %v4239
        %v4241 = vrot.slane %v3532, %v4240
        %4243 = vbcast.lane.b32.xlu0 %v4241, 256
        %v4244 = vpop.permute.xlu0 %4243
        %v4245 = vlaneseq
        %v4246 = vshrl.u32 %v4245, 7
        %v4247 = vsub.s32 3, %v4246
        %v4248 = vrot.slane %v3532, %v4247
        %4250 = vbcast.lane.b32.xlu0 %v4248, 256
        %v4251 = vpop.permute.xlu0 %4250
        %v4252 = vlaneseq
        %v4253 = vshrl.u32 %v4252, 7
        %v4254 = vsub.s32 4, %v4253
        %v4255 = vrot.slane %v3532, %v4254
        %4257 = vbcast.lane.b32.xlu0 %v4255, 256
        %v4258 = vpop.permute.xlu0 %4257
        %v4259 = vlaneseq
        %v4260 = vshrl.u32 %v4259, 7
        %v4261 = vsub.s32 5, %v4260
        %v4262 = vrot.slane %v3532, %v4261
        %4264 = vbcast.lane.b32.xlu0 %v4262, 256
        %v4265 = vpop.permute.xlu0 %4264
        %v4266 = vlaneseq
        %v4267 = vshrl.u32 %v4266, 7
        %v4268 = vsub.s32 6, %v4267
        %v4269 = vrot.slane %v3532, %v4268
        %4271 = vbcast.lane.b32.xlu0 %v4269, 256
        %v4272 = vpop.permute.xlu0 %4271
        %v4273 = vlaneseq
        %v4274 = vshrl.u32 %v4273, 7
        %v4275 = vsub.s32 7, %v4274
        %v4276 = vrot.slane %v3532, %v4275
        %4278 = vbcast.lane.b32.xlu0 %v4276, 256
        %v4279 = vpop.permute.xlu0 %4278
        %v4280 = vlaneseq
        %v4281 = vshrl.u32 %v4280, 7
        %v4282 = vsub.s32 0, %v4281
        %v4283 = vrot.slane %v3533, %v4282
        %4285 = vbcast.lane.b32.xlu0 %v4283, 256
        %v4286 = vpop.permute.xlu0 %4285
        %v4287 = vlaneseq
        %v4288 = vshrl.u32 %v4287, 7
        %v4289 = vsub.s32 1, %v4288
        %v4290 = vrot.slane %v3533, %v4289
        %4292 = vbcast.lane.b32.xlu0 %v4290, 256
        %v4293 = vpop.permute.xlu0 %4292
        %v4294 = vlaneseq
        %v4295 = vshrl.u32 %v4294, 7
        %v4296 = vsub.s32 2, %v4295
        %v4297 = vrot.slane %v3533, %v4296
        %4299 = vbcast.lane.b32.xlu0 %v4297, 256
        %v4300 = vpop.permute.xlu0 %4299
        %v4301 = vlaneseq
        %v4302 = vshrl.u32 %v4301, 7
        %v4303 = vsub.s32 3, %v4302
        %v4304 = vrot.slane %v3533, %v4303
        %4306 = vbcast.lane.b32.xlu0 %v4304, 256
        %v4307 = vpop.permute.xlu0 %4306
        %v4308 = vlaneseq
        %v4309 = vshrl.u32 %v4308, 7
        %v4310 = vsub.s32 4, %v4309
        %v4311 = vrot.slane %v3533, %v4310
        %4313 = vbcast.lane.b32.xlu0 %v4311, 256
        %v4314 = vpop.permute.xlu0 %4313
        %v4315 = vlaneseq
        %v4316 = vshrl.u32 %v4315, 7
        %v4317 = vsub.s32 5, %v4316
        %v4318 = vrot.slane %v3533, %v4317
        %4320 = vbcast.lane.b32.xlu0 %v4318, 256
        %v4321 = vpop.permute.xlu0 %4320
        %v4322 = vlaneseq
        %v4323 = vshrl.u32 %v4322, 7
        %v4324 = vsub.s32 6, %v4323
        %v4325 = vrot.slane %v3533, %v4324
        %4327 = vbcast.lane.b32.xlu0 %v4325, 256
        %v4328 = vpop.permute.xlu0 %4327
        %v4329 = vlaneseq
        %v4330 = vshrl.u32 %v4329, 7
        %v4331 = vsub.s32 7, %v4330
        %v4332 = vrot.slane %v3533, %v4331
        %4334 = vbcast.lane.b32.xlu0 %v4332, 256
        %v4335 = vpop.permute.xlu0 %4334
        %v4336 = vlaneseq
        %v4337 = vshrl.u32 %v4336, 7
        %v4338 = vsub.s32 0, %v4337
        %v4339 = vrot.slane %v3534, %v4338
        %4341 = vbcast.lane.b32.xlu0 %v4339, 256
        %v4342 = vpop.permute.xlu0 %4341
        %v4343 = vlaneseq
        %v4344 = vshrl.u32 %v4343, 7
        %v4345 = vsub.s32 1, %v4344
        %v4346 = vrot.slane %v3534, %v4345
        %4348 = vbcast.lane.b32.xlu0 %v4346, 256
        %v4349 = vpop.permute.xlu0 %4348
        %v4350 = vlaneseq
        %v4351 = vshrl.u32 %v4350, 7
        %v4352 = vsub.s32 2, %v4351
        %v4353 = vrot.slane %v3534, %v4352
        %4355 = vbcast.lane.b32.xlu0 %v4353, 256
        %v4356 = vpop.permute.xlu0 %4355
        %v4357 = vlaneseq
        %v4358 = vshrl.u32 %v4357, 7
        %v4359 = vsub.s32 3, %v4358
        %v4360 = vrot.slane %v3534, %v4359
        %4362 = vbcast.lane.b32.xlu0 %v4360, 256
        %v4363 = vpop.permute.xlu0 %4362
        %v4364 = vlaneseq
        %v4365 = vshrl.u32 %v4364, 7
        %v4366 = vsub.s32 4, %v4365
        %v4367 = vrot.slane %v3534, %v4366
        %4369 = vbcast.lane.b32.xlu0 %v4367, 256
        %v4370 = vpop.permute.xlu0 %4369
        %v4371 = vlaneseq
        %v4372 = vshrl.u32 %v4371, 7
        %v4373 = vsub.s32 5, %v4372
        %v4374 = vrot.slane %v3534, %v4373
        %4376 = vbcast.lane.b32.xlu0 %v4374, 256
        %v4377 = vpop.permute.xlu0 %4376
        %v4378 = vlaneseq
        %v4379 = vshrl.u32 %v4378, 7
        %v4380 = vsub.s32 6, %v4379
        %v4381 = vrot.slane %v3534, %v4380
        %4383 = vbcast.lane.b32.xlu0 %v4381, 256
        %v4384 = vpop.permute.xlu0 %4383
        %v4385 = vlaneseq
        %v4386 = vshrl.u32 %v4385, 7
        %v4387 = vsub.s32 7, %v4386
        %v4388 = vrot.slane %v3534, %v4387
        %4390 = vbcast.lane.b32.xlu0 %v4388, 256
        %v4391 = vpop.permute.xlu0 %4390
        %v4392 = vlaneseq
        %v4393 = vshrl.u32 %v4392, 7
        %v4394 = vsub.s32 0, %v4393
        %v4395 = vrot.slane %v3535, %v4394
        %4397 = vbcast.lane.b32.xlu0 %v4395, 256
        %v4398 = vpop.permute.xlu0 %4397
        %v4399 = vlaneseq
        %v4400 = vshrl.u32 %v4399, 7
        %v4401 = vsub.s32 1, %v4400
        %v4402 = vrot.slane %v3535, %v4401
        %4404 = vbcast.lane.b32.xlu0 %v4402, 256
        %v4405 = vpop.permute.xlu0 %4404
        %v4406 = vlaneseq
        %v4407 = vshrl.u32 %v4406, 7
        %v4408 = vsub.s32 2, %v4407
        %v4409 = vrot.slane %v3535, %v4408
        %4411 = vbcast.lane.b32.xlu0 %v4409, 256
        %v4412 = vpop.permute.xlu0 %4411
        %v4413 = vlaneseq
        %v4414 = vshrl.u32 %v4413, 7
        %v4415 = vsub.s32 3, %v4414
        %v4416 = vrot.slane %v3535, %v4415
        %4418 = vbcast.lane.b32.xlu0 %v4416, 256
        %v4419 = vpop.permute.xlu0 %4418
        %v4420 = vlaneseq
        %v4421 = vshrl.u32 %v4420, 7
        %v4422 = vsub.s32 4, %v4421
        %v4423 = vrot.slane %v3535, %v4422
        %4425 = vbcast.lane.b32.xlu0 %v4423, 256
        %v4426 = vpop.permute.xlu0 %4425
        %v4427 = vlaneseq
        %v4428 = vshrl.u32 %v4427, 7
        %v4429 = vsub.s32 5, %v4428
        %v4430 = vrot.slane %v3535, %v4429
        %4432 = vbcast.lane.b32.xlu0 %v4430, 256
        %v4433 = vpop.permute.xlu0 %4432
        %v4434 = vlaneseq
        %v4435 = vshrl.u32 %v4434, 7
        %v4436 = vsub.s32 6, %v4435
        %v4437 = vrot.slane %v3535, %v4436
        %4439 = vbcast.lane.b32.xlu0 %v4437, 256
        %v4440 = vpop.permute.xlu0 %4439
        %v4441 = vlaneseq
        %v4442 = vshrl.u32 %v4441, 7
        %v4443 = vsub.s32 7, %v4442
        %v4444 = vrot.slane %v3535, %v4443
        %4446 = vbcast.lane.b32.xlu0 %v4444, 256
        %v4447 = vpop.permute.xlu0 %4446
        %v4576 = vadd.f32 %v3392, %v3558
        %v4577 = vadd.f32 %v3393, %v3565
        %v4578 = vadd.f32 %v3394, %v3572
        %v4579 = vadd.f32 %v3395, %v3579
        %v4580 = vadd.f32 %v3396, %v3586
        %v4581 = vadd.f32 %v3397, %v3593
        %v4582 = vadd.f32 %v3398, %v3600
        %v4583 = vadd.f32 %v3399, %v3607
        %v4584 = vadd.f32 %v3400, %v3614
        %v4585 = vadd.f32 %v3401, %v3621
        %v4586 = vadd.f32 %v3402, %v3628
        %v4587 = vadd.f32 %v3403, %v3635
        %v4588 = vadd.f32 %v3404, %v3642
        %v4589 = vadd.f32 %v3405, %v3649
        %v4590 = vadd.f32 %v3406, %v3656
        %v4591 = vadd.f32 %v3407, %v3663
        %v4592 = vadd.f32 %v3408, %v3670
        %v4593 = vadd.f32 %v3409, %v3677
        %v4594 = vadd.f32 %v3410, %v3684
        %v4595 = vadd.f32 %v3411, %v3691
        %v4596 = vadd.f32 %v3412, %v3698
        %v4597 = vadd.f32 %v3413, %v3705
        %v4598 = vadd.f32 %v3414, %v3712
        %v4599 = vadd.f32 %v3415, %v3719
        %v4600 = vadd.f32 %v3416, %v3726
        %v4601 = vadd.f32 %v3417, %v3733
        %v4602 = vadd.f32 %v3418, %v3740
        %v4603 = vadd.f32 %v3419, %v3747
        %v4604 = vadd.f32 %v3420, %v3754
        %v4605 = vadd.f32 %v3421, %v3761
        %v4606 = vadd.f32 %v3422, %v3768
        %v4607 = vadd.f32 %v3423, %v3775
        %v4608 = vadd.f32 %v3424, %v3782
        %v4609 = vadd.f32 %v3425, %v3789
        %v4610 = vadd.f32 %v3426, %v3796
        %v4611 = vadd.f32 %v3427, %v3803
        %v4612 = vadd.f32 %v3428, %v3810
        %v4613 = vadd.f32 %v3429, %v3817
        %v4614 = vadd.f32 %v3430, %v3824
        %v4615 = vadd.f32 %v3431, %v3831
        %v4616 = vadd.f32 %v3432, %v3838
        %v4617 = vadd.f32 %v3433, %v3845
        %v4618 = vadd.f32 %v3434, %v3852
        %v4619 = vadd.f32 %v3435, %v3859
        %v4620 = vadd.f32 %v3436, %v3866
        %v4621 = vadd.f32 %v3437, %v3873
        %v4622 = vadd.f32 %v3438, %v3880
        %v4623 = vadd.f32 %v3439, %v3887
        %v4624 = vadd.f32 %v3440, %v3894
        %v4625 = vadd.f32 %v3441, %v3901
        %v4626 = vadd.f32 %v3442, %v3908
        %v4627 = vadd.f32 %v3443, %v3915
        %v4628 = vadd.f32 %v3444, %v3922
        %v4629 = vadd.f32 %v3445, %v3929
        %v4630 = vadd.f32 %v3446, %v3936
        %v4631 = vadd.f32 %v3447, %v3943
        %v4632 = vadd.f32 %v3448, %v3950
        %v4633 = vadd.f32 %v3449, %v3957
        %v4634 = vadd.f32 %v3450, %v3964
        %v4635 = vadd.f32 %v3451, %v3971
        %v4636 = vadd.f32 %v3452, %v3978
        %v4637 = vadd.f32 %v3453, %v3985
        %v4638 = vadd.f32 %v3454, %v3992
        %v4639 = vadd.f32 %v3455, %v3999
        %v4640 = vadd.f32 %v3456, %v4006
        %v4641 = vadd.f32 %v3457, %v4013
        %v4642 = vadd.f32 %v3458, %v4020
        %v4643 = vadd.f32 %v3459, %v4027
        %v4644 = vadd.f32 %v3460, %v4034
        %v4645 = vadd.f32 %v3461, %v4041
        %v4646 = vadd.f32 %v3462, %v4048
        %v4647 = vadd.f32 %v3463, %v4055
        %v4648 = vadd.f32 %v3464, %v4062
        %v4649 = vadd.f32 %v3465, %v4069
        %v4650 = vadd.f32 %v3466, %v4076
        %v4651 = vadd.f32 %v3467, %v4083
        %v4652 = vadd.f32 %v3468, %v4090
        %v4653 = vadd.f32 %v3469, %v4097
        %v4654 = vadd.f32 %v3470, %v4104
        %v4655 = vadd.f32 %v3471, %v4111
        %v4656 = vadd.f32 %v3472, %v4118
        %v4657 = vadd.f32 %v3473, %v4125
        %v4658 = vadd.f32 %v3474, %v4132
        %v4659 = vadd.f32 %v3475, %v4139
        %v4660 = vadd.f32 %v3476, %v4146
        %v4661 = vadd.f32 %v3477, %v4153
        %v4662 = vadd.f32 %v3478, %v4160
        %v4663 = vadd.f32 %v3479, %v4167
        %v4664 = vadd.f32 %v3480, %v4174
        %v4665 = vadd.f32 %v3481, %v4181
        %v4666 = vadd.f32 %v3482, %v4188
        %v4667 = vadd.f32 %v3483, %v4195
        %v4668 = vadd.f32 %v3484, %v4202
        %v4669 = vadd.f32 %v3485, %v4209
        %v4670 = vadd.f32 %v3486, %v4216
        %v4671 = vadd.f32 %v3487, %v4223
        %v4672 = vadd.f32 %v3488, %v4230
        %v4673 = vadd.f32 %v3489, %v4237
        %v4674 = vadd.f32 %v3490, %v4244
        %v4675 = vadd.f32 %v3491, %v4251
        %v4676 = vadd.f32 %v3492, %v4258
        %v4677 = vadd.f32 %v3493, %v4265
        %v4678 = vadd.f32 %v3494, %v4272
        %v4679 = vadd.f32 %v3495, %v4279
        %v4680 = vadd.f32 %v3496, %v4286
        %v4681 = vadd.f32 %v3497, %v4293
        %v4682 = vadd.f32 %v3498, %v4300
        %v4683 = vadd.f32 %v3499, %v4307
        %v4684 = vadd.f32 %v3500, %v4314
        %v4685 = vadd.f32 %v3501, %v4321
        %v4686 = vadd.f32 %v3502, %v4328
        %v4687 = vadd.f32 %v3503, %v4335
        %v4688 = vadd.f32 %v3504, %v4342
        %v4689 = vadd.f32 %v3505, %v4349
        %v4690 = vadd.f32 %v3506, %v4356
        %v4691 = vadd.f32 %v3507, %v4363
        %v4692 = vadd.f32 %v3508, %v4370
        %v4693 = vadd.f32 %v3509, %v4377
        %v4694 = vadd.f32 %v3510, %v4384
        %v4695 = vadd.f32 %v3511, %v4391
        %v4696 = vadd.f32 %v3512, %v4398
        %v4697 = vadd.f32 %v3513, %v4405
        %v4698 = vadd.f32 %v3514, %v4412
        %v4699 = vadd.f32 %v3515, %v4419
        %v4700 = vadd.f32 %v3516, %v4426
        %v4701 = vadd.f32 %v3517, %v4433
        %v4702 = vadd.f32 %v3518, %v4440
        %v4703 = vadd.f32 %v3519, %v4447
        %v4704 = vsub.f32 0.0, %v4576
        %v4705 = vsub.f32 0.0, %v4577
        %v4706 = vsub.f32 0.0, %v4578
        %v4707 = vsub.f32 0.0, %v4579
        %v4708 = vsub.f32 0.0, %v4580
        %v4709 = vsub.f32 0.0, %v4581
        %v4710 = vsub.f32 0.0, %v4582
        %v4711 = vsub.f32 0.0, %v4583
        %v4712 = vsub.f32 0.0, %v4584
        %v4713 = vsub.f32 0.0, %v4585
        %v4714 = vsub.f32 0.0, %v4586
        %v4715 = vsub.f32 0.0, %v4587
        %v4716 = vsub.f32 0.0, %v4588
        %v4717 = vsub.f32 0.0, %v4589
        %v4718 = vsub.f32 0.0, %v4590
        %v4719 = vsub.f32 0.0, %v4591
        %v4720 = vsub.f32 0.0, %v4592
        %v4721 = vsub.f32 0.0, %v4593
        %v4722 = vsub.f32 0.0, %v4594
        %v4723 = vsub.f32 0.0, %v4595
        %v4724 = vsub.f32 0.0, %v4596
        %v4725 = vsub.f32 0.0, %v4597
        %v4726 = vsub.f32 0.0, %v4598
        %v4727 = vsub.f32 0.0, %v4599
        %v4728 = vsub.f32 0.0, %v4600
        %v4729 = vsub.f32 0.0, %v4601
        %v4730 = vsub.f32 0.0, %v4602
        %v4731 = vsub.f32 0.0, %v4603
        %v4732 = vsub.f32 0.0, %v4604
        %v4733 = vsub.f32 0.0, %v4605
        %v4734 = vsub.f32 0.0, %v4606
        %v4735 = vsub.f32 0.0, %v4607
        %v4736 = vsub.f32 0.0, %v4608
        %v4737 = vsub.f32 0.0, %v4609
        %v4738 = vsub.f32 0.0, %v4610
        %v4739 = vsub.f32 0.0, %v4611
        %v4740 = vsub.f32 0.0, %v4612
        %v4741 = vsub.f32 0.0, %v4613
        %v4742 = vsub.f32 0.0, %v4614
        %v4743 = vsub.f32 0.0, %v4615
        %v4744 = vsub.f32 0.0, %v4616
        %v4745 = vsub.f32 0.0, %v4617
        %v4746 = vsub.f32 0.0, %v4618
        %v4747 = vsub.f32 0.0, %v4619
        %v4748 = vsub.f32 0.0, %v4620
        %v4749 = vsub.f32 0.0, %v4621
        %v4750 = vsub.f32 0.0, %v4622
        %v4751 = vsub.f32 0.0, %v4623
        %v4752 = vsub.f32 0.0, %v4624
        %v4753 = vsub.f32 0.0, %v4625
        %v4754 = vsub.f32 0.0, %v4626
        %v4755 = vsub.f32 0.0, %v4627
        %v4756 = vsub.f32 0.0, %v4628
        %v4757 = vsub.f32 0.0, %v4629
        %v4758 = vsub.f32 0.0, %v4630
        %v4759 = vsub.f32 0.0, %v4631
        %v4760 = vsub.f32 0.0, %v4632
        %v4761 = vsub.f32 0.0, %v4633
        %v4762 = vsub.f32 0.0, %v4634
        %v4763 = vsub.f32 0.0, %v4635
        %v4764 = vsub.f32 0.0, %v4636
        %v4765 = vsub.f32 0.0, %v4637
        %v4766 = vsub.f32 0.0, %v4638
        %v4767 = vsub.f32 0.0, %v4639
        %v4768 = vsub.f32 0.0, %v4640
        %v4769 = vsub.f32 0.0, %v4641
        %v4770 = vsub.f32 0.0, %v4642
        %v4771 = vsub.f32 0.0, %v4643
        %v4772 = vsub.f32 0.0, %v4644
        %v4773 = vsub.f32 0.0, %v4645
        %v4774 = vsub.f32 0.0, %v4646
        %v4775 = vsub.f32 0.0, %v4647
        %v4776 = vsub.f32 0.0, %v4648
        %v4777 = vsub.f32 0.0, %v4649
        %v4778 = vsub.f32 0.0, %v4650
        %v4779 = vsub.f32 0.0, %v4651
        %v4780 = vsub.f32 0.0, %v4652
        %v4781 = vsub.f32 0.0, %v4653
        %v4782 = vsub.f32 0.0, %v4654
        %v4783 = vsub.f32 0.0, %v4655
        %v4784 = vsub.f32 0.0, %v4656
        %v4785 = vsub.f32 0.0, %v4657
        %v4786 = vsub.f32 0.0, %v4658
        %v4787 = vsub.f32 0.0, %v4659
        %v4788 = vsub.f32 0.0, %v4660
        %v4789 = vsub.f32 0.0, %v4661
        %v4790 = vsub.f32 0.0, %v4662
        %v4791 = vsub.f32 0.0, %v4663
        %v4792 = vsub.f32 0.0, %v4664
        %v4793 = vsub.f32 0.0, %v4665
        %v4794 = vsub.f32 0.0, %v4666
        %v4795 = vsub.f32 0.0, %v4667
        %v4796 = vsub.f32 0.0, %v4668
        %v4797 = vsub.f32 0.0, %v4669
        %v4798 = vsub.f32 0.0, %v4670
        %v4799 = vsub.f32 0.0, %v4671
        %v4800 = vsub.f32 0.0, %v4672
        %v4801 = vsub.f32 0.0, %v4673
        %v4802 = vsub.f32 0.0, %v4674
        %v4803 = vsub.f32 0.0, %v4675
        %v4804 = vsub.f32 0.0, %v4676
        %v4805 = vsub.f32 0.0, %v4677
        %v4806 = vsub.f32 0.0, %v4678
        %v4807 = vsub.f32 0.0, %v4679
        %v4808 = vsub.f32 0.0, %v4680
        %v4809 = vsub.f32 0.0, %v4681
        %v4810 = vsub.f32 0.0, %v4682
        %v4811 = vsub.f32 0.0, %v4683
        %v4812 = vsub.f32 0.0, %v4684
        %v4813 = vsub.f32 0.0, %v4685
        %v4814 = vsub.f32 0.0, %v4686
        %v4815 = vsub.f32 0.0, %v4687
        %v4816 = vsub.f32 0.0, %v4688
        %v4817 = vsub.f32 0.0, %v4689
        %v4818 = vsub.f32 0.0, %v4690
        %v4819 = vsub.f32 0.0, %v4691
        %v4820 = vsub.f32 0.0, %v4692
        %v4821 = vsub.f32 0.0, %v4693
        %v4822 = vsub.f32 0.0, %v4694
        %v4823 = vsub.f32 0.0, %v4695
        %v4824 = vsub.f32 0.0, %v4696
        %v4825 = vsub.f32 0.0, %v4697
        %v4826 = vsub.f32 0.0, %v4698
        %v4827 = vsub.f32 0.0, %v4699
        %v4828 = vsub.f32 0.0, %v4700
        %v4829 = vsub.f32 0.0, %v4701
        %v4830 = vsub.f32 0.0, %v4702
        %v4831 = vsub.f32 0.0, %v4703
        %4960 = vset.pattern.permute.xlu0 0
        %4961 = vperm.xlu0 %4960, %v4704
        %v4962 = vpop.permute.xlu0 %4961
        %4963 = vset.pattern.permute.xlu0 0
        %4964 = vperm.xlu0 %4963, %v4705
        %v4965 = vpop.permute.xlu0 %4964
        %4966 = vset.pattern.permute.xlu0 0
        %4967 = vperm.xlu0 %4966, %v4706
        %v4968 = vpop.permute.xlu0 %4967
        %4969 = vset.pattern.permute.xlu0 0
        %4970 = vperm.xlu0 %4969, %v4707
        %v4971 = vpop.permute.xlu0 %4970
        %4972 = vset.pattern.permute.xlu0 0
        %4973 = vperm.xlu0 %4972, %v4708
        %v4974 = vpop.permute.xlu0 %4973
        %4975 = vset.pattern.permute.xlu0 0
        %4976 = vperm.xlu0 %4975, %v4709
        %v4977 = vpop.permute.xlu0 %4976
        %4978 = vset.pattern.permute.xlu0 0
        %4979 = vperm.xlu0 %4978, %v4710
        %v4980 = vpop.permute.xlu0 %4979
        %4981 = vset.pattern.permute.xlu0 0
        %4982 = vperm.xlu0 %4981, %v4711
        %v4983 = vpop.permute.xlu0 %4982
        %4984 = vset.pattern.permute.xlu0 0
        %4985 = vperm.xlu0 %4984, %v4712
        %v4986 = vpop.permute.xlu0 %4985
        %4987 = vset.pattern.permute.xlu0 0
        %4988 = vperm.xlu0 %4987, %v4713
        %v4989 = vpop.permute.xlu0 %4988
        %4990 = vset.pattern.permute.xlu0 0
        %4991 = vperm.xlu0 %4990, %v4714
        %v4992 = vpop.permute.xlu0 %4991
        %4993 = vset.pattern.permute.xlu0 0
        %4994 = vperm.xlu0 %4993, %v4715
        %v4995 = vpop.permute.xlu0 %4994
        %4996 = vset.pattern.permute.xlu0 0
        %4997 = vperm.xlu0 %4996, %v4716
        %v4998 = vpop.permute.xlu0 %4997
        %4999 = vset.pattern.permute.xlu0 0
        %5000 = vperm.xlu0 %4999, %v4717
        %v5001 = vpop.permute.xlu0 %5000
        %5002 = vset.pattern.permute.xlu0 0
        %5003 = vperm.xlu0 %5002, %v4718
        %v5004 = vpop.permute.xlu0 %5003
        %5005 = vset.pattern.permute.xlu0 0
        %5006 = vperm.xlu0 %5005, %v4719
        %v5007 = vpop.permute.xlu0 %5006
        %5008 = vset.pattern.permute.xlu0 0
        %5009 = vperm.xlu0 %5008, %v4720
        %v5010 = vpop.permute.xlu0 %5009
        %5011 = vset.pattern.permute.xlu0 0
        %5012 = vperm.xlu0 %5011, %v4721
        %v5013 = vpop.permute.xlu0 %5012
        %5014 = vset.pattern.permute.xlu0 0
        %5015 = vperm.xlu0 %5014, %v4722
        %v5016 = vpop.permute.xlu0 %5015
        %5017 = vset.pattern.permute.xlu0 0
        %5018 = vperm.xlu0 %5017, %v4723
        %v5019 = vpop.permute.xlu0 %5018
        %5020 = vset.pattern.permute.xlu0 0
        %5021 = vperm.xlu0 %5020, %v4724
        %v5022 = vpop.permute.xlu0 %5021
        %5023 = vset.pattern.permute.xlu0 0
        %5024 = vperm.xlu0 %5023, %v4725
        %v5025 = vpop.permute.xlu0 %5024
        %5026 = vset.pattern.permute.xlu0 0
        %5027 = vperm.xlu0 %5026, %v4726
        %v5028 = vpop.permute.xlu0 %5027
        %5029 = vset.pattern.permute.xlu0 0
        %5030 = vperm.xlu0 %5029, %v4727
        %v5031 = vpop.permute.xlu0 %5030
        %5032 = vset.pattern.permute.xlu0 0
        %5033 = vperm.xlu0 %5032, %v4728
        %v5034 = vpop.permute.xlu0 %5033
        %5035 = vset.pattern.permute.xlu0 0
        %5036 = vperm.xlu0 %5035, %v4729
        %v5037 = vpop.permute.xlu0 %5036
        %5038 = vset.pattern.permute.xlu0 0
        %5039 = vperm.xlu0 %5038, %v4730
        %v5040 = vpop.permute.xlu0 %5039
        %5041 = vset.pattern.permute.xlu0 0
        %5042 = vperm.xlu0 %5041, %v4731
        %v5043 = vpop.permute.xlu0 %5042
        %5044 = vset.pattern.permute.xlu0 0
        %5045 = vperm.xlu0 %5044, %v4732
        %v5046 = vpop.permute.xlu0 %5045
        %5047 = vset.pattern.permute.xlu0 0
        %5048 = vperm.xlu0 %5047, %v4733
        %v5049 = vpop.permute.xlu0 %5048
        %5050 = vset.pattern.permute.xlu0 0
        %5051 = vperm.xlu0 %5050, %v4734
        %v5052 = vpop.permute.xlu0 %5051
        %5053 = vset.pattern.permute.xlu0 0
        %5054 = vperm.xlu0 %5053, %v4735
        %v5055 = vpop.permute.xlu0 %5054
        %5056 = vset.pattern.permute.xlu0 0
        %5057 = vperm.xlu0 %5056, %v4736
        %v5058 = vpop.permute.xlu0 %5057
        %5059 = vset.pattern.permute.xlu0 0
        %5060 = vperm.xlu0 %5059, %v4737
        %v5061 = vpop.permute.xlu0 %5060
        %5062 = vset.pattern.permute.xlu0 0
        %5063 = vperm.xlu0 %5062, %v4738
        %v5064 = vpop.permute.xlu0 %5063
        %5065 = vset.pattern.permute.xlu0 0
        %5066 = vperm.xlu0 %5065, %v4739
        %v5067 = vpop.permute.xlu0 %5066
        %5068 = vset.pattern.permute.xlu0 0
        %5069 = vperm.xlu0 %5068, %v4740
        %v5070 = vpop.permute.xlu0 %5069
        %5071 = vset.pattern.permute.xlu0 0
        %5072 = vperm.xlu0 %5071, %v4741
        %v5073 = vpop.permute.xlu0 %5072
        %5074 = vset.pattern.permute.xlu0 0
        %5075 = vperm.xlu0 %5074, %v4742
        %v5076 = vpop.permute.xlu0 %5075
        %5077 = vset.pattern.permute.xlu0 0
        %5078 = vperm.xlu0 %5077, %v4743
        %v5079 = vpop.permute.xlu0 %5078
        %5080 = vset.pattern.permute.xlu0 0
        %5081 = vperm.xlu0 %5080, %v4744
        %v5082 = vpop.permute.xlu0 %5081
        %5083 = vset.pattern.permute.xlu0 0
        %5084 = vperm.xlu0 %5083, %v4745
        %v5085 = vpop.permute.xlu0 %5084
        %5086 = vset.pattern.permute.xlu0 0
        %5087 = vperm.xlu0 %5086, %v4746
        %v5088 = vpop.permute.xlu0 %5087
        %5089 = vset.pattern.permute.xlu0 0
        %5090 = vperm.xlu0 %5089, %v4747
        %v5091 = vpop.permute.xlu0 %5090
        %5092 = vset.pattern.permute.xlu0 0
        %5093 = vperm.xlu0 %5092, %v4748
        %v5094 = vpop.permute.xlu0 %5093
        %5095 = vset.pattern.permute.xlu0 0
        %5096 = vperm.xlu0 %5095, %v4749
        %v5097 = vpop.permute.xlu0 %5096
        %5098 = vset.pattern.permute.xlu0 0
        %5099 = vperm.xlu0 %5098, %v4750
        %v5100 = vpop.permute.xlu0 %5099
        %5101 = vset.pattern.permute.xlu0 0
        %5102 = vperm.xlu0 %5101, %v4751
        %v5103 = vpop.permute.xlu0 %5102
        %5104 = vset.pattern.permute.xlu0 0
        %5105 = vperm.xlu0 %5104, %v4752
        %v5106 = vpop.permute.xlu0 %5105
        %5107 = vset.pattern.permute.xlu0 0
        %5108 = vperm.xlu0 %5107, %v4753
        %v5109 = vpop.permute.xlu0 %5108
        %5110 = vset.pattern.permute.xlu0 0
        %5111 = vperm.xlu0 %5110, %v4754
        %v5112 = vpop.permute.xlu0 %5111
        %5113 = vset.pattern.permute.xlu0 0
        %5114 = vperm.xlu0 %5113, %v4755
        %v5115 = vpop.permute.xlu0 %5114
        %5116 = vset.pattern.permute.xlu0 0
        %5117 = vperm.xlu0 %5116, %v4756
        %v5118 = vpop.permute.xlu0 %5117
        %5119 = vset.pattern.permute.xlu0 0
        %5120 = vperm.xlu0 %5119, %v4757
        %v5121 = vpop.permute.xlu0 %5120
        %5122 = vset.pattern.permute.xlu0 0
        %5123 = vperm.xlu0 %5122, %v4758
        %v5124 = vpop.permute.xlu0 %5123
        %5125 = vset.pattern.permute.xlu0 0
        %5126 = vperm.xlu0 %5125, %v4759
        %v5127 = vpop.permute.xlu0 %5126
        %5128 = vset.pattern.permute.xlu0 0
        %5129 = vperm.xlu0 %5128, %v4760
        %v5130 = vpop.permute.xlu0 %5129
        %5131 = vset.pattern.permute.xlu0 0
        %5132 = vperm.xlu0 %5131, %v4761
        %v5133 = vpop.permute.xlu0 %5132
        %5134 = vset.pattern.permute.xlu0 0
        %5135 = vperm.xlu0 %5134, %v4762
        %v5136 = vpop.permute.xlu0 %5135
        %5137 = vset.pattern.permute.xlu0 0
        %5138 = vperm.xlu0 %5137, %v4763
        %v5139 = vpop.permute.xlu0 %5138
        %5140 = vset.pattern.permute.xlu0 0
        %5141 = vperm.xlu0 %5140, %v4764
        %v5142 = vpop.permute.xlu0 %5141
        %5143 = vset.pattern.permute.xlu0 0
        %5144 = vperm.xlu0 %5143, %v4765
        %v5145 = vpop.permute.xlu0 %5144
        %5146 = vset.pattern.permute.xlu0 0
        %5147 = vperm.xlu0 %5146, %v4766
        %v5148 = vpop.permute.xlu0 %5147
        %5149 = vset.pattern.permute.xlu0 0
        %5150 = vperm.xlu0 %5149, %v4767
        %v5151 = vpop.permute.xlu0 %5150
        %5152 = vset.pattern.permute.xlu0 0
        %5153 = vperm.xlu0 %5152, %v4768
        %v5154 = vpop.permute.xlu0 %5153
        %5155 = vset.pattern.permute.xlu0 0
        %5156 = vperm.xlu0 %5155, %v4769
        %v5157 = vpop.permute.xlu0 %5156
        %5158 = vset.pattern.permute.xlu0 0
        %5159 = vperm.xlu0 %5158, %v4770
        %v5160 = vpop.permute.xlu0 %5159
        %5161 = vset.pattern.permute.xlu0 0
        %5162 = vperm.xlu0 %5161, %v4771
        %v5163 = vpop.permute.xlu0 %5162
        %5164 = vset.pattern.permute.xlu0 0
        %5165 = vperm.xlu0 %5164, %v4772
        %v5166 = vpop.permute.xlu0 %5165
        %5167 = vset.pattern.permute.xlu0 0
        %5168 = vperm.xlu0 %5167, %v4773
        %v5169 = vpop.permute.xlu0 %5168
        %5170 = vset.pattern.permute.xlu0 0
        %5171 = vperm.xlu0 %5170, %v4774
        %v5172 = vpop.permute.xlu0 %5171
        %5173 = vset.pattern.permute.xlu0 0
        %5174 = vperm.xlu0 %5173, %v4775
        %v5175 = vpop.permute.xlu0 %5174
        %5176 = vset.pattern.permute.xlu0 0
        %5177 = vperm.xlu0 %5176, %v4776
        %v5178 = vpop.permute.xlu0 %5177
        %5179 = vset.pattern.permute.xlu0 0
        %5180 = vperm.xlu0 %5179, %v4777
        %v5181 = vpop.permute.xlu0 %5180
        %5182 = vset.pattern.permute.xlu0 0
        %5183 = vperm.xlu0 %5182, %v4778
        %v5184 = vpop.permute.xlu0 %5183
        %5185 = vset.pattern.permute.xlu0 0
        %5186 = vperm.xlu0 %5185, %v4779
        %v5187 = vpop.permute.xlu0 %5186
        %5188 = vset.pattern.permute.xlu0 0
        %5189 = vperm.xlu0 %5188, %v4780
        %v5190 = vpop.permute.xlu0 %5189
        %5191 = vset.pattern.permute.xlu0 0
        %5192 = vperm.xlu0 %5191, %v4781
        %v5193 = vpop.permute.xlu0 %5192
        %5194 = vset.pattern.permute.xlu0 0
        %5195 = vperm.xlu0 %5194, %v4782
        %v5196 = vpop.permute.xlu0 %5195
        %5197 = vset.pattern.permute.xlu0 0
        %5198 = vperm.xlu0 %5197, %v4783
        %v5199 = vpop.permute.xlu0 %5198
        %5200 = vset.pattern.permute.xlu0 0
        %5201 = vperm.xlu0 %5200, %v4784
        %v5202 = vpop.permute.xlu0 %5201
        %5203 = vset.pattern.permute.xlu0 0
        %5204 = vperm.xlu0 %5203, %v4785
        %v5205 = vpop.permute.xlu0 %5204
        %5206 = vset.pattern.permute.xlu0 0
        %5207 = vperm.xlu0 %5206, %v4786
        %v5208 = vpop.permute.xlu0 %5207
        %5209 = vset.pattern.permute.xlu0 0
        %5210 = vperm.xlu0 %5209, %v4787
        %v5211 = vpop.permute.xlu0 %5210
        %5212 = vset.pattern.permute.xlu0 0
        %5213 = vperm.xlu0 %5212, %v4788
        %v5214 = vpop.permute.xlu0 %5213
        %5215 = vset.pattern.permute.xlu0 0
        %5216 = vperm.xlu0 %5215, %v4789
        %v5217 = vpop.permute.xlu0 %5216
        %5218 = vset.pattern.permute.xlu0 0
        %5219 = vperm.xlu0 %5218, %v4790
        %v5220 = vpop.permute.xlu0 %5219
        %5221 = vset.pattern.permute.xlu0 0
        %5222 = vperm.xlu0 %5221, %v4791
        %v5223 = vpop.permute.xlu0 %5222
        %5224 = vset.pattern.permute.xlu0 0
        %5225 = vperm.xlu0 %5224, %v4792
        %v5226 = vpop.permute.xlu0 %5225
        %5227 = vset.pattern.permute.xlu0 0
        %5228 = vperm.xlu0 %5227, %v4793
        %v5229 = vpop.permute.xlu0 %5228
        %5230 = vset.pattern.permute.xlu0 0
        %5231 = vperm.xlu0 %5230, %v4794
        %v5232 = vpop.permute.xlu0 %5231
        %5233 = vset.pattern.permute.xlu0 0
        %5234 = vperm.xlu0 %5233, %v4795
        %v5235 = vpop.permute.xlu0 %5234
        %5236 = vset.pattern.permute.xlu0 0
        %5237 = vperm.xlu0 %5236, %v4796
        %v5238 = vpop.permute.xlu0 %5237
        %5239 = vset.pattern.permute.xlu0 0
        %5240 = vperm.xlu0 %5239, %v4797
        %v5241 = vpop.permute.xlu0 %5240
        %5242 = vset.pattern.permute.xlu0 0
        %5243 = vperm.xlu0 %5242, %v4798
        %v5244 = vpop.permute.xlu0 %5243
        %5245 = vset.pattern.permute.xlu0 0
        %5246 = vperm.xlu0 %5245, %v4799
        %v5247 = vpop.permute.xlu0 %5246
        %5248 = vset.pattern.permute.xlu0 0
        %5249 = vperm.xlu0 %5248, %v4800
        %v5250 = vpop.permute.xlu0 %5249
        %5251 = vset.pattern.permute.xlu0 0
        %5252 = vperm.xlu0 %5251, %v4801
        %v5253 = vpop.permute.xlu0 %5252
        %5254 = vset.pattern.permute.xlu0 0
        %5255 = vperm.xlu0 %5254, %v4802
        %v5256 = vpop.permute.xlu0 %5255
        %5257 = vset.pattern.permute.xlu0 0
        %5258 = vperm.xlu0 %5257, %v4803
        %v5259 = vpop.permute.xlu0 %5258
        %5260 = vset.pattern.permute.xlu0 0
        %5261 = vperm.xlu0 %5260, %v4804
        %v5262 = vpop.permute.xlu0 %5261
        %5263 = vset.pattern.permute.xlu0 0
        %5264 = vperm.xlu0 %5263, %v4805
        %v5265 = vpop.permute.xlu0 %5264
        %5266 = vset.pattern.permute.xlu0 0
        %5267 = vperm.xlu0 %5266, %v4806
        %v5268 = vpop.permute.xlu0 %5267
        %5269 = vset.pattern.permute.xlu0 0
        %5270 = vperm.xlu0 %5269, %v4807
        %v5271 = vpop.permute.xlu0 %5270
        %5272 = vset.pattern.permute.xlu0 0
        %5273 = vperm.xlu0 %5272, %v4808
        %v5274 = vpop.permute.xlu0 %5273
        %5275 = vset.pattern.permute.xlu0 0
        %5276 = vperm.xlu0 %5275, %v4809
        %v5277 = vpop.permute.xlu0 %5276
        %5278 = vset.pattern.permute.xlu0 0
        %5279 = vperm.xlu0 %5278, %v4810
        %v5280 = vpop.permute.xlu0 %5279
        %5281 = vset.pattern.permute.xlu0 0
        %5282 = vperm.xlu0 %5281, %v4811
        %v5283 = vpop.permute.xlu0 %5282
        %5284 = vset.pattern.permute.xlu0 0
        %5285 = vperm.xlu0 %5284, %v4812
        %v5286 = vpop.permute.xlu0 %5285
        %5287 = vset.pattern.permute.xlu0 0
        %5288 = vperm.xlu0 %5287, %v4813
        %v5289 = vpop.permute.xlu0 %5288
        %5290 = vset.pattern.permute.xlu0 0
        %5291 = vperm.xlu0 %5290, %v4814
        %v5292 = vpop.permute.xlu0 %5291
        %5293 = vset.pattern.permute.xlu0 0
        %5294 = vperm.xlu0 %5293, %v4815
        %v5295 = vpop.permute.xlu0 %5294
        %5296 = vset.pattern.permute.xlu0 0
        %5297 = vperm.xlu0 %5296, %v4816
        %v5298 = vpop.permute.xlu0 %5297
        %5299 = vset.pattern.permute.xlu0 0
        %5300 = vperm.xlu0 %5299, %v4817
        %v5301 = vpop.permute.xlu0 %5300
        %5302 = vset.pattern.permute.xlu0 0
        %5303 = vperm.xlu0 %5302, %v4818
        %v5304 = vpop.permute.xlu0 %5303
        %5305 = vset.pattern.permute.xlu0 0
        %5306 = vperm.xlu0 %5305, %v4819
        %v5307 = vpop.permute.xlu0 %5306
        %5308 = vset.pattern.permute.xlu0 0
        %5309 = vperm.xlu0 %5308, %v4820
        %v5310 = vpop.permute.xlu0 %5309
        %5311 = vset.pattern.permute.xlu0 0
        %5312 = vperm.xlu0 %5311, %v4821
        %v5313 = vpop.permute.xlu0 %5312
        %5314 = vset.pattern.permute.xlu0 0
        %5315 = vperm.xlu0 %5314, %v4822
        %v5316 = vpop.permute.xlu0 %5315
        %5317 = vset.pattern.permute.xlu0 0
        %5318 = vperm.xlu0 %5317, %v4823
        %v5319 = vpop.permute.xlu0 %5318
        %5320 = vset.pattern.permute.xlu0 0
        %5321 = vperm.xlu0 %5320, %v4824
        %v5322 = vpop.permute.xlu0 %5321
        %5323 = vset.pattern.permute.xlu0 0
        %5324 = vperm.xlu0 %5323, %v4825
        %v5325 = vpop.permute.xlu0 %5324
        %5326 = vset.pattern.permute.xlu0 0
        %5327 = vperm.xlu0 %5326, %v4826
        %v5328 = vpop.permute.xlu0 %5327
        %5329 = vset.pattern.permute.xlu0 0
        %5330 = vperm.xlu0 %5329, %v4827
        %v5331 = vpop.permute.xlu0 %5330
        %5332 = vset.pattern.permute.xlu0 0
        %5333 = vperm.xlu0 %5332, %v4828
        %v5334 = vpop.permute.xlu0 %5333
        %5335 = vset.pattern.permute.xlu0 0
        %5336 = vperm.xlu0 %5335, %v4829
        %v5337 = vpop.permute.xlu0 %5336
        %5338 = vset.pattern.permute.xlu0 0
        %5339 = vperm.xlu0 %5338, %v4830
        %v5340 = vpop.permute.xlu0 %5339
        %5341 = vset.pattern.permute.xlu0 0
        %5342 = vperm.xlu0 %5341, %v4831
        %v5343 = vpop.permute.xlu0 %5342
        %v5344 = vlaneseq
        %v5345 = vand.u32 %v5344, 127
        %v5346 = vlaneseq
        %v5347 = vshrl.u32 %v5346, 7
        %v5348 = vsub.s32 %v5345, %v5347
        %v5349 = vrot.slane %v4962, %v5348
        %v5350 = vlaneseq
        %v5351 = vshrl.u32 %v5350, 7
        %v5352 = vsub.s32 %v5345, %v5351
        %v5353 = vrot.slane %v4965, %v5352
        %v5354 = vlaneseq
        %v5355 = vshrl.u32 %v5354, 7
        %v5356 = vsub.s32 %v5345, %v5355
        %v5357 = vrot.slane %v4968, %v5356
        %v5358 = vlaneseq
        %v5359 = vshrl.u32 %v5358, 7
        %v5360 = vsub.s32 %v5345, %v5359
        %v5361 = vrot.slane %v4971, %v5360
        %v5362 = vlaneseq
        %v5363 = vshrl.u32 %v5362, 7
        %v5364 = vsub.s32 %v5345, %v5363
        %v5365 = vrot.slane %v4974, %v5364
        %v5366 = vlaneseq
        %v5367 = vshrl.u32 %v5366, 7
        %v5368 = vsub.s32 %v5345, %v5367
        %v5369 = vrot.slane %v4977, %v5368
        %v5370 = vlaneseq
        %v5371 = vshrl.u32 %v5370, 7
        %v5372 = vsub.s32 %v5345, %v5371
        %v5373 = vrot.slane %v4980, %v5372
        %v5374 = vlaneseq
        %v5375 = vshrl.u32 %v5374, 7
        %v5376 = vsub.s32 %v5345, %v5375
        %v5377 = vrot.slane %v4983, %v5376
        %v5378 = vlaneseq
        %v5379 = vshrl.u32 %v5378, 7
        %v5380 = vsub.s32 %v5345, %v5379
        %v5381 = vrot.slane %v4986, %v5380
        %v5382 = vlaneseq
        %v5383 = vshrl.u32 %v5382, 7
        %v5384 = vsub.s32 %v5345, %v5383
        %v5385 = vrot.slane %v4989, %v5384
        %v5386 = vlaneseq
        %v5387 = vshrl.u32 %v5386, 7
        %v5388 = vsub.s32 %v5345, %v5387
        %v5389 = vrot.slane %v4992, %v5388
        %v5390 = vlaneseq
        %v5391 = vshrl.u32 %v5390, 7
        %v5392 = vsub.s32 %v5345, %v5391
        %v5393 = vrot.slane %v4995, %v5392
        %v5394 = vlaneseq
        %v5395 = vshrl.u32 %v5394, 7
        %v5396 = vsub.s32 %v5345, %v5395
        %v5397 = vrot.slane %v4998, %v5396
        %v5398 = vlaneseq
        %v5399 = vshrl.u32 %v5398, 7
        %v5400 = vsub.s32 %v5345, %v5399
        %v5401 = vrot.slane %v5001, %v5400
        %v5402 = vlaneseq
        %v5403 = vshrl.u32 %v5402, 7
        %v5404 = vsub.s32 %v5345, %v5403
        %v5405 = vrot.slane %v5004, %v5404
        %v5406 = vlaneseq
        %v5407 = vshrl.u32 %v5406, 7
        %v5408 = vsub.s32 %v5345, %v5407
        %v5409 = vrot.slane %v5007, %v5408
        %v5410 = vlaneseq
        %v5411 = vshrl.u32 %v5410, 7
        %v5412 = vsub.s32 %v5345, %v5411
        %v5413 = vrot.slane %v5010, %v5412
        %v5414 = vlaneseq
        %v5415 = vshrl.u32 %v5414, 7
        %v5416 = vsub.s32 %v5345, %v5415
        %v5417 = vrot.slane %v5013, %v5416
        %v5418 = vlaneseq
        %v5419 = vshrl.u32 %v5418, 7
        %v5420 = vsub.s32 %v5345, %v5419
        %v5421 = vrot.slane %v5016, %v5420
        %v5422 = vlaneseq
        %v5423 = vshrl.u32 %v5422, 7
        %v5424 = vsub.s32 %v5345, %v5423
        %v5425 = vrot.slane %v5019, %v5424
        %v5426 = vlaneseq
        %v5427 = vshrl.u32 %v5426, 7
        %v5428 = vsub.s32 %v5345, %v5427
        %v5429 = vrot.slane %v5022, %v5428
        %v5430 = vlaneseq
        %v5431 = vshrl.u32 %v5430, 7
        %v5432 = vsub.s32 %v5345, %v5431
        %v5433 = vrot.slane %v5025, %v5432
        %v5434 = vlaneseq
        %v5435 = vshrl.u32 %v5434, 7
        %v5436 = vsub.s32 %v5345, %v5435
        %v5437 = vrot.slane %v5028, %v5436
        %v5438 = vlaneseq
        %v5439 = vshrl.u32 %v5438, 7
        %v5440 = vsub.s32 %v5345, %v5439
        %v5441 = vrot.slane %v5031, %v5440
        %v5442 = vlaneseq
        %v5443 = vshrl.u32 %v5442, 7
        %v5444 = vsub.s32 %v5345, %v5443
        %v5445 = vrot.slane %v5034, %v5444
        %v5446 = vlaneseq
        %v5447 = vshrl.u32 %v5446, 7
        %v5448 = vsub.s32 %v5345, %v5447
        %v5449 = vrot.slane %v5037, %v5448
        %v5450 = vlaneseq
        %v5451 = vshrl.u32 %v5450, 7
        %v5452 = vsub.s32 %v5345, %v5451
        %v5453 = vrot.slane %v5040, %v5452
        %v5454 = vlaneseq
        %v5455 = vshrl.u32 %v5454, 7
        %v5456 = vsub.s32 %v5345, %v5455
        %v5457 = vrot.slane %v5043, %v5456
        %v5458 = vlaneseq
        %v5459 = vshrl.u32 %v5458, 7
        %v5460 = vsub.s32 %v5345, %v5459
        %v5461 = vrot.slane %v5046, %v5460
        %v5462 = vlaneseq
        %v5463 = vshrl.u32 %v5462, 7
        %v5464 = vsub.s32 %v5345, %v5463
        %v5465 = vrot.slane %v5049, %v5464
        %v5466 = vlaneseq
        %v5467 = vshrl.u32 %v5466, 7
        %v5468 = vsub.s32 %v5345, %v5467
        %v5469 = vrot.slane %v5052, %v5468
        %v5470 = vlaneseq
        %v5471 = vshrl.u32 %v5470, 7
        %v5472 = vsub.s32 %v5345, %v5471
        %v5473 = vrot.slane %v5055, %v5472
        %v5474 = vlaneseq
        %v5475 = vshrl.u32 %v5474, 7
        %v5476 = vsub.s32 %v5345, %v5475
        %v5477 = vrot.slane %v5058, %v5476
        %v5478 = vlaneseq
        %v5479 = vshrl.u32 %v5478, 7
        %v5480 = vsub.s32 %v5345, %v5479
        %v5481 = vrot.slane %v5061, %v5480
        %v5482 = vlaneseq
        %v5483 = vshrl.u32 %v5482, 7
        %v5484 = vsub.s32 %v5345, %v5483
        %v5485 = vrot.slane %v5064, %v5484
        %v5486 = vlaneseq
        %v5487 = vshrl.u32 %v5486, 7
        %v5488 = vsub.s32 %v5345, %v5487
        %v5489 = vrot.slane %v5067, %v5488
        %v5490 = vlaneseq
        %v5491 = vshrl.u32 %v5490, 7
        %v5492 = vsub.s32 %v5345, %v5491
        %v5493 = vrot.slane %v5070, %v5492
        %v5494 = vlaneseq
        %v5495 = vshrl.u32 %v5494, 7
        %v5496 = vsub.s32 %v5345, %v5495
        %v5497 = vrot.slane %v5073, %v5496
        %v5498 = vlaneseq
        %v5499 = vshrl.u32 %v5498, 7
        %v5500 = vsub.s32 %v5345, %v5499
        %v5501 = vrot.slane %v5076, %v5500
        %v5502 = vlaneseq
        %v5503 = vshrl.u32 %v5502, 7
        %v5504 = vsub.s32 %v5345, %v5503
        %v5505 = vrot.slane %v5079, %v5504
        %v5506 = vlaneseq
        %v5507 = vshrl.u32 %v5506, 7
        %v5508 = vsub.s32 %v5345, %v5507
        %v5509 = vrot.slane %v5082, %v5508
        %v5510 = vlaneseq
        %v5511 = vshrl.u32 %v5510, 7
        %v5512 = vsub.s32 %v5345, %v5511
        %v5513 = vrot.slane %v5085, %v5512
        %v5514 = vlaneseq
        %v5515 = vshrl.u32 %v5514, 7
        %v5516 = vsub.s32 %v5345, %v5515
        %v5517 = vrot.slane %v5088, %v5516
        %v5518 = vlaneseq
        %v5519 = vshrl.u32 %v5518, 7
        %v5520 = vsub.s32 %v5345, %v5519
        %v5521 = vrot.slane %v5091, %v5520
        %v5522 = vlaneseq
        %v5523 = vshrl.u32 %v5522, 7
        %v5524 = vsub.s32 %v5345, %v5523
        %v5525 = vrot.slane %v5094, %v5524
        %v5526 = vlaneseq
        %v5527 = vshrl.u32 %v5526, 7
        %v5528 = vsub.s32 %v5345, %v5527
        %v5529 = vrot.slane %v5097, %v5528
        %v5530 = vlaneseq
        %v5531 = vshrl.u32 %v5530, 7
        %v5532 = vsub.s32 %v5345, %v5531
        %v5533 = vrot.slane %v5100, %v5532
        %v5534 = vlaneseq
        %v5535 = vshrl.u32 %v5534, 7
        %v5536 = vsub.s32 %v5345, %v5535
        %v5537 = vrot.slane %v5103, %v5536
        %v5538 = vlaneseq
        %v5539 = vshrl.u32 %v5538, 7
        %v5540 = vsub.s32 %v5345, %v5539
        %v5541 = vrot.slane %v5106, %v5540
        %v5542 = vlaneseq
        %v5543 = vshrl.u32 %v5542, 7
        %v5544 = vsub.s32 %v5345, %v5543
        %v5545 = vrot.slane %v5109, %v5544
        %v5546 = vlaneseq
        %v5547 = vshrl.u32 %v5546, 7
        %v5548 = vsub.s32 %v5345, %v5547
        %v5549 = vrot.slane %v5112, %v5548
        %v5550 = vlaneseq
        %v5551 = vshrl.u32 %v5550, 7
        %v5552 = vsub.s32 %v5345, %v5551
        %v5553 = vrot.slane %v5115, %v5552
        %v5554 = vlaneseq
        %v5555 = vshrl.u32 %v5554, 7
        %v5556 = vsub.s32 %v5345, %v5555
        %v5557 = vrot.slane %v5118, %v5556
        %v5558 = vlaneseq
        %v5559 = vshrl.u32 %v5558, 7
        %v5560 = vsub.s32 %v5345, %v5559
        %v5561 = vrot.slane %v5121, %v5560
        %v5562 = vlaneseq
        %v5563 = vshrl.u32 %v5562, 7
        %v5564 = vsub.s32 %v5345, %v5563
        %v5565 = vrot.slane %v5124, %v5564
        %v5566 = vlaneseq
        %v5567 = vshrl.u32 %v5566, 7
        %v5568 = vsub.s32 %v5345, %v5567
        %v5569 = vrot.slane %v5127, %v5568
        %v5570 = vlaneseq
        %v5571 = vshrl.u32 %v5570, 7
        %v5572 = vsub.s32 %v5345, %v5571
        %v5573 = vrot.slane %v5130, %v5572
        %v5574 = vlaneseq
        %v5575 = vshrl.u32 %v5574, 7
        %v5576 = vsub.s32 %v5345, %v5575
        %v5577 = vrot.slane %v5133, %v5576
        %v5578 = vlaneseq
        %v5579 = vshrl.u32 %v5578, 7
        %v5580 = vsub.s32 %v5345, %v5579
        %v5581 = vrot.slane %v5136, %v5580
        %v5582 = vlaneseq
        %v5583 = vshrl.u32 %v5582, 7
        %v5584 = vsub.s32 %v5345, %v5583
        %v5585 = vrot.slane %v5139, %v5584
        %v5586 = vlaneseq
        %v5587 = vshrl.u32 %v5586, 7
        %v5588 = vsub.s32 %v5345, %v5587
        %v5589 = vrot.slane %v5142, %v5588
        %v5590 = vlaneseq
        %v5591 = vshrl.u32 %v5590, 7
        %v5592 = vsub.s32 %v5345, %v5591
        %v5593 = vrot.slane %v5145, %v5592
        %v5594 = vlaneseq
        %v5595 = vshrl.u32 %v5594, 7
        %v5596 = vsub.s32 %v5345, %v5595
        %v5597 = vrot.slane %v5148, %v5596
        %v5598 = vlaneseq
        %v5599 = vshrl.u32 %v5598, 7
        %v5600 = vsub.s32 %v5345, %v5599
        %v5601 = vrot.slane %v5151, %v5600
        %v5602 = vlaneseq
        %v5603 = vshrl.u32 %v5602, 7
        %v5604 = vsub.s32 %v5345, %v5603
        %v5605 = vrot.slane %v5154, %v5604
        %v5606 = vlaneseq
        %v5607 = vshrl.u32 %v5606, 7
        %v5608 = vsub.s32 %v5345, %v5607
        %v5609 = vrot.slane %v5157, %v5608
        %v5610 = vlaneseq
        %v5611 = vshrl.u32 %v5610, 7
        %v5612 = vsub.s32 %v5345, %v5611
        %v5613 = vrot.slane %v5160, %v5612
        %v5614 = vlaneseq
        %v5615 = vshrl.u32 %v5614, 7
        %v5616 = vsub.s32 %v5345, %v5615
        %v5617 = vrot.slane %v5163, %v5616
        %v5618 = vlaneseq
        %v5619 = vshrl.u32 %v5618, 7
        %v5620 = vsub.s32 %v5345, %v5619
        %v5621 = vrot.slane %v5166, %v5620
        %v5622 = vlaneseq
        %v5623 = vshrl.u32 %v5622, 7
        %v5624 = vsub.s32 %v5345, %v5623
        %v5625 = vrot.slane %v5169, %v5624
        %v5626 = vlaneseq
        %v5627 = vshrl.u32 %v5626, 7
        %v5628 = vsub.s32 %v5345, %v5627
        %v5629 = vrot.slane %v5172, %v5628
        %v5630 = vlaneseq
        %v5631 = vshrl.u32 %v5630, 7
        %v5632 = vsub.s32 %v5345, %v5631
        %v5633 = vrot.slane %v5175, %v5632
        %v5634 = vlaneseq
        %v5635 = vshrl.u32 %v5634, 7
        %v5636 = vsub.s32 %v5345, %v5635
        %v5637 = vrot.slane %v5178, %v5636
        %v5638 = vlaneseq
        %v5639 = vshrl.u32 %v5638, 7
        %v5640 = vsub.s32 %v5345, %v5639
        %v5641 = vrot.slane %v5181, %v5640
        %v5642 = vlaneseq
        %v5643 = vshrl.u32 %v5642, 7
        %v5644 = vsub.s32 %v5345, %v5643
        %v5645 = vrot.slane %v5184, %v5644
        %v5646 = vlaneseq
        %v5647 = vshrl.u32 %v5646, 7
        %v5648 = vsub.s32 %v5345, %v5647
        %v5649 = vrot.slane %v5187, %v5648
        %v5650 = vlaneseq
        %v5651 = vshrl.u32 %v5650, 7
        %v5652 = vsub.s32 %v5345, %v5651
        %v5653 = vrot.slane %v5190, %v5652
        %v5654 = vlaneseq
        %v5655 = vshrl.u32 %v5654, 7
        %v5656 = vsub.s32 %v5345, %v5655
        %v5657 = vrot.slane %v5193, %v5656
        %v5658 = vlaneseq
        %v5659 = vshrl.u32 %v5658, 7
        %v5660 = vsub.s32 %v5345, %v5659
        %v5661 = vrot.slane %v5196, %v5660
        %v5662 = vlaneseq
        %v5663 = vshrl.u32 %v5662, 7
        %v5664 = vsub.s32 %v5345, %v5663
        %v5665 = vrot.slane %v5199, %v5664
        %v5666 = vlaneseq
        %v5667 = vshrl.u32 %v5666, 7
        %v5668 = vsub.s32 %v5345, %v5667
        %v5669 = vrot.slane %v5202, %v5668
        %v5670 = vlaneseq
        %v5671 = vshrl.u32 %v5670, 7
        %v5672 = vsub.s32 %v5345, %v5671
        %v5673 = vrot.slane %v5205, %v5672
        %v5674 = vlaneseq
        %v5675 = vshrl.u32 %v5674, 7
        %v5676 = vsub.s32 %v5345, %v5675
        %v5677 = vrot.slane %v5208, %v5676
        %v5678 = vlaneseq
        %v5679 = vshrl.u32 %v5678, 7
        %v5680 = vsub.s32 %v5345, %v5679
        %v5681 = vrot.slane %v5211, %v5680
        %v5682 = vlaneseq
        %v5683 = vshrl.u32 %v5682, 7
        %v5684 = vsub.s32 %v5345, %v5683
        %v5685 = vrot.slane %v5214, %v5684
        %v5686 = vlaneseq
        %v5687 = vshrl.u32 %v5686, 7
        %v5688 = vsub.s32 %v5345, %v5687
        %v5689 = vrot.slane %v5217, %v5688
        %v5690 = vlaneseq
        %v5691 = vshrl.u32 %v5690, 7
        %v5692 = vsub.s32 %v5345, %v5691
        %v5693 = vrot.slane %v5220, %v5692
        %v5694 = vlaneseq
        %v5695 = vshrl.u32 %v5694, 7
        %v5696 = vsub.s32 %v5345, %v5695
        %v5697 = vrot.slane %v5223, %v5696
        %v5698 = vlaneseq
        %v5699 = vshrl.u32 %v5698, 7
        %v5700 = vsub.s32 %v5345, %v5699
        %v5701 = vrot.slane %v5226, %v5700
        %v5702 = vlaneseq
        %v5703 = vshrl.u32 %v5702, 7
        %v5704 = vsub.s32 %v5345, %v5703
        %v5705 = vrot.slane %v5229, %v5704
        %v5706 = vlaneseq
        %v5707 = vshrl.u32 %v5706, 7
        %v5708 = vsub.s32 %v5345, %v5707
        %v5709 = vrot.slane %v5232, %v5708
        %v5710 = vlaneseq
        %v5711 = vshrl.u32 %v5710, 7
        %v5712 = vsub.s32 %v5345, %v5711
        %v5713 = vrot.slane %v5235, %v5712
        %v5714 = vlaneseq
        %v5715 = vshrl.u32 %v5714, 7
        %v5716 = vsub.s32 %v5345, %v5715
        %v5717 = vrot.slane %v5238, %v5716
        %v5718 = vlaneseq
        %v5719 = vshrl.u32 %v5718, 7
        %v5720 = vsub.s32 %v5345, %v5719
        %v5721 = vrot.slane %v5241, %v5720
        %v5722 = vlaneseq
        %v5723 = vshrl.u32 %v5722, 7
        %v5724 = vsub.s32 %v5345, %v5723
        %v5725 = vrot.slane %v5244, %v5724
        %v5726 = vlaneseq
        %v5727 = vshrl.u32 %v5726, 7
        %v5728 = vsub.s32 %v5345, %v5727
        %v5729 = vrot.slane %v5247, %v5728
        %v5730 = vlaneseq
        %v5731 = vshrl.u32 %v5730, 7
        %v5732 = vsub.s32 %v5345, %v5731
        %v5733 = vrot.slane %v5250, %v5732
        %v5734 = vlaneseq
        %v5735 = vshrl.u32 %v5734, 7
        %v5736 = vsub.s32 %v5345, %v5735
        %v5737 = vrot.slane %v5253, %v5736
        %v5738 = vlaneseq
        %v5739 = vshrl.u32 %v5738, 7
        %v5740 = vsub.s32 %v5345, %v5739
        %v5741 = vrot.slane %v5256, %v5740
        %v5742 = vlaneseq
        %v5743 = vshrl.u32 %v5742, 7
        %v5744 = vsub.s32 %v5345, %v5743
        %v5745 = vrot.slane %v5259, %v5744
        %v5746 = vlaneseq
        %v5747 = vshrl.u32 %v5746, 7
        %v5748 = vsub.s32 %v5345, %v5747
        %v5749 = vrot.slane %v5262, %v5748
        %v5750 = vlaneseq
        %v5751 = vshrl.u32 %v5750, 7
        %v5752 = vsub.s32 %v5345, %v5751
        %v5753 = vrot.slane %v5265, %v5752
        %v5754 = vlaneseq
        %v5755 = vshrl.u32 %v5754, 7
        %v5756 = vsub.s32 %v5345, %v5755
        %v5757 = vrot.slane %v5268, %v5756
        %v5758 = vlaneseq
        %v5759 = vshrl.u32 %v5758, 7
        %v5760 = vsub.s32 %v5345, %v5759
        %v5761 = vrot.slane %v5271, %v5760
        %v5762 = vlaneseq
        %v5763 = vshrl.u32 %v5762, 7
        %v5764 = vsub.s32 %v5345, %v5763
        %v5765 = vrot.slane %v5274, %v5764
        %v5766 = vlaneseq
        %v5767 = vshrl.u32 %v5766, 7
        %v5768 = vsub.s32 %v5345, %v5767
        %v5769 = vrot.slane %v5277, %v5768
        %v5770 = vlaneseq
        %v5771 = vshrl.u32 %v5770, 7
        %v5772 = vsub.s32 %v5345, %v5771
        %v5773 = vrot.slane %v5280, %v5772
        %v5774 = vlaneseq
        %v5775 = vshrl.u32 %v5774, 7
        %v5776 = vsub.s32 %v5345, %v5775
        %v5777 = vrot.slane %v5283, %v5776
        %v5778 = vlaneseq
        %v5779 = vshrl.u32 %v5778, 7
        %v5780 = vsub.s32 %v5345, %v5779
        %v5781 = vrot.slane %v5286, %v5780
        %v5782 = vlaneseq
        %v5783 = vshrl.u32 %v5782, 7
        %v5784 = vsub.s32 %v5345, %v5783
        %v5785 = vrot.slane %v5289, %v5784
        %v5786 = vlaneseq
        %v5787 = vshrl.u32 %v5786, 7
        %v5788 = vsub.s32 %v5345, %v5787
        %v5789 = vrot.slane %v5292, %v5788
        %v5790 = vlaneseq
        %v5791 = vshrl.u32 %v5790, 7
        %v5792 = vsub.s32 %v5345, %v5791
        %v5793 = vrot.slane %v5295, %v5792
        %v5794 = vlaneseq
        %v5795 = vshrl.u32 %v5794, 7
        %v5796 = vsub.s32 %v5345, %v5795
        %v5797 = vrot.slane %v5298, %v5796
        %v5798 = vlaneseq
        %v5799 = vshrl.u32 %v5798, 7
        %v5800 = vsub.s32 %v5345, %v5799
        %v5801 = vrot.slane %v5301, %v5800
        %v5802 = vlaneseq
        %v5803 = vshrl.u32 %v5802, 7
        %v5804 = vsub.s32 %v5345, %v5803
        %v5805 = vrot.slane %v5304, %v5804
        %v5806 = vlaneseq
        %v5807 = vshrl.u32 %v5806, 7
        %v5808 = vsub.s32 %v5345, %v5807
        %v5809 = vrot.slane %v5307, %v5808
        %v5810 = vlaneseq
        %v5811 = vshrl.u32 %v5810, 7
        %v5812 = vsub.s32 %v5345, %v5811
        %v5813 = vrot.slane %v5310, %v5812
        %v5814 = vlaneseq
        %v5815 = vshrl.u32 %v5814, 7
        %v5816 = vsub.s32 %v5345, %v5815
        %v5817 = vrot.slane %v5313, %v5816
        %v5818 = vlaneseq
        %v5819 = vshrl.u32 %v5818, 7
        %v5820 = vsub.s32 %v5345, %v5819
        %v5821 = vrot.slane %v5316, %v5820
        %v5822 = vlaneseq
        %v5823 = vshrl.u32 %v5822, 7
        %v5824 = vsub.s32 %v5345, %v5823
        %v5825 = vrot.slane %v5319, %v5824
        %v5826 = vlaneseq
        %v5827 = vshrl.u32 %v5826, 7
        %v5828 = vsub.s32 %v5345, %v5827
        %v5829 = vrot.slane %v5322, %v5828
        %v5830 = vlaneseq
        %v5831 = vshrl.u32 %v5830, 7
        %v5832 = vsub.s32 %v5345, %v5831
        %v5833 = vrot.slane %v5325, %v5832
        %v5834 = vlaneseq
        %v5835 = vshrl.u32 %v5834, 7
        %v5836 = vsub.s32 %v5345, %v5835
        %v5837 = vrot.slane %v5328, %v5836
        %v5838 = vlaneseq
        %v5839 = vshrl.u32 %v5838, 7
        %v5840 = vsub.s32 %v5345, %v5839
        %v5841 = vrot.slane %v5331, %v5840
        %v5842 = vlaneseq
        %v5843 = vshrl.u32 %v5842, 7
        %v5844 = vsub.s32 %v5345, %v5843
        %v5845 = vrot.slane %v5334, %v5844
        %v5846 = vlaneseq
        %v5847 = vshrl.u32 %v5846, 7
        %v5848 = vsub.s32 %v5345, %v5847
        %v5849 = vrot.slane %v5337, %v5848
        %v5850 = vlaneseq
        %v5851 = vshrl.u32 %v5850, 7
        %v5852 = vsub.s32 %v5345, %v5851
        %v5853 = vrot.slane %v5340, %v5852
        %v5854 = vlaneseq
        %v5855 = vshrl.u32 %v5854, 7
        %v5856 = vsub.s32 %v5345, %v5855
        %v5857 = vrot.slane %v5343, %v5856
        %vm5858 = vcmask 1041409
        %v5859 = vsel %vm5858, %v5353, %v5349
        %vm5860 = vcmask 1042434
        %v5861 = vsel %vm5860, %v5357, %v5859
        %vm5862 = vcmask 1043459
        %v5863 = vsel %vm5862, %v5361, %v5861
        %vm5864 = vcmask 1044484
        %v5865 = vsel %vm5864, %v5365, %v5863
        %vm5866 = vcmask 1045509
        %v5867 = vsel %vm5866, %v5369, %v5865
        %vm5868 = vcmask 1046534
        %v5869 = vsel %vm5868, %v5373, %v5867
        %vm5870 = vcmask 1047559
        %v5871 = vsel %vm5870, %v5377, %v5869
        %v5872 = vsel %vm5858, %v5385, %v5381
        %v5873 = vsel %vm5860, %v5389, %v5872
        %v5874 = vsel %vm5862, %v5393, %v5873
        %v5875 = vsel %vm5864, %v5397, %v5874
        %v5876 = vsel %vm5866, %v5401, %v5875
        %v5877 = vsel %vm5868, %v5405, %v5876
        %v5878 = vsel %vm5870, %v5409, %v5877
        %v5879 = vsel %vm5858, %v5417, %v5413
        %v5880 = vsel %vm5860, %v5421, %v5879
        %v5881 = vsel %vm5862, %v5425, %v5880
        %v5882 = vsel %vm5864, %v5429, %v5881
        %v5883 = vsel %vm5866, %v5433, %v5882
        %v5884 = vsel %vm5868, %v5437, %v5883
        %v5885 = vsel %vm5870, %v5441, %v5884
        %v5886 = vsel %vm5858, %v5449, %v5445
        %v5887 = vsel %vm5860, %v5453, %v5886
        %v5888 = vsel %vm5862, %v5457, %v5887
        %v5889 = vsel %vm5864, %v5461, %v5888
        %v5890 = vsel %vm5866, %v5465, %v5889
        %v5891 = vsel %vm5868, %v5469, %v5890
        %v5892 = vsel %vm5870, %v5473, %v5891
        %v5893 = vsel %vm5858, %v5481, %v5477
        %v5894 = vsel %vm5860, %v5485, %v5893
        %v5895 = vsel %vm5862, %v5489, %v5894
        %v5896 = vsel %vm5864, %v5493, %v5895
        %v5897 = vsel %vm5866, %v5497, %v5896
        %v5898 = vsel %vm5868, %v5501, %v5897
        %v5899 = vsel %vm5870, %v5505, %v5898
        %v5900 = vsel %vm5858, %v5513, %v5509
        %v5901 = vsel %vm5860, %v5517, %v5900
        %v5902 = vsel %vm5862, %v5521, %v5901
        %v5903 = vsel %vm5864, %v5525, %v5902
        %v5904 = vsel %vm5866, %v5529, %v5903
        %v5905 = vsel %vm5868, %v5533, %v5904
        %v5906 = vsel %vm5870, %v5537, %v5905
        %v5907 = vsel %vm5858, %v5545, %v5541
        %v5908 = vsel %vm5860, %v5549, %v5907
        %v5909 = vsel %vm5862, %v5553, %v5908
        %v5910 = vsel %vm5864, %v5557, %v5909
        %v5911 = vsel %vm5866, %v5561, %v5910
        %v5912 = vsel %vm5868, %v5565, %v5911
        %v5913 = vsel %vm5870, %v5569, %v5912
        %v5914 = vsel %vm5858, %v5577, %v5573
        %v5915 = vsel %vm5860, %v5581, %v5914
        %v5916 = vsel %vm5862, %v5585, %v5915
        %v5917 = vsel %vm5864, %v5589, %v5916
        %v5918 = vsel %vm5866, %v5593, %v5917
        %v5919 = vsel %vm5868, %v5597, %v5918
        %v5920 = vsel %vm5870, %v5601, %v5919
        %v5921 = vsel %vm5858, %v5609, %v5605
        %v5922 = vsel %vm5860, %v5613, %v5921
        %v5923 = vsel %vm5862, %v5617, %v5922
        %v5924 = vsel %vm5864, %v5621, %v5923
        %v5925 = vsel %vm5866, %v5625, %v5924
        %v5926 = vsel %vm5868, %v5629, %v5925
        %v5927 = vsel %vm5870, %v5633, %v5926
        %v5928 = vsel %vm5858, %v5641, %v5637
        %v5929 = vsel %vm5860, %v5645, %v5928
        %v5930 = vsel %vm5862, %v5649, %v5929
        %v5931 = vsel %vm5864, %v5653, %v5930
        %v5932 = vsel %vm5866, %v5657, %v5931
        %v5933 = vsel %vm5868, %v5661, %v5932
        %v5934 = vsel %vm5870, %v5665, %v5933
        %v5935 = vsel %vm5858, %v5673, %v5669
        %v5936 = vsel %vm5860, %v5677, %v5935
        %v5937 = vsel %vm5862, %v5681, %v5936
        %v5938 = vsel %vm5864, %v5685, %v5937
        %v5939 = vsel %vm5866, %v5689, %v5938
        %v5940 = vsel %vm5868, %v5693, %v5939
        %v5941 = vsel %vm5870, %v5697, %v5940
        %v5942 = vsel %vm5858, %v5705, %v5701
        %v5943 = vsel %vm5860, %v5709, %v5942
        %v5944 = vsel %vm5862, %v5713, %v5943
        %v5945 = vsel %vm5864, %v5717, %v5944
        %v5946 = vsel %vm5866, %v5721, %v5945
        %v5947 = vsel %vm5868, %v5725, %v5946
        %v5948 = vsel %vm5870, %v5729, %v5947
        %v5949 = vsel %vm5858, %v5737, %v5733
        %v5950 = vsel %vm5860, %v5741, %v5949
        %v5951 = vsel %vm5862, %v5745, %v5950
        %v5952 = vsel %vm5864, %v5749, %v5951
        %v5953 = vsel %vm5866, %v5753, %v5952
        %v5954 = vsel %vm5868, %v5757, %v5953
        %v5955 = vsel %vm5870, %v5761, %v5954
        %v5956 = vsel %vm5858, %v5769, %v5765
        %v5957 = vsel %vm5860, %v5773, %v5956
        %v5958 = vsel %vm5862, %v5777, %v5957
        %v5959 = vsel %vm5864, %v5781, %v5958
        %v5960 = vsel %vm5866, %v5785, %v5959
        %v5961 = vsel %vm5868, %v5789, %v5960
        %v5962 = vsel %vm5870, %v5793, %v5961
        %v5963 = vsel %vm5858, %v5801, %v5797
        %v5964 = vsel %vm5860, %v5805, %v5963
        %v5965 = vsel %vm5862, %v5809, %v5964
        %v5966 = vsel %vm5864, %v5813, %v5965
        %v5967 = vsel %vm5866, %v5817, %v5966
        %v5968 = vsel %vm5868, %v5821, %v5967
        %v5969 = vsel %vm5870, %v5825, %v5968
        %v5970 = vsel %vm5858, %v5833, %v5829
        %v5971 = vsel %vm5860, %v5837, %v5970
        %v5972 = vsel %vm5862, %v5841, %v5971
        %v5973 = vsel %vm5864, %v5845, %v5972
        %v5974 = vsel %vm5866, %v5849, %v5973
        %v5975 = vsel %vm5868, %v5853, %v5974
        %v5976 = vsel %vm5870, %v5857, %v5975
        %vm5993 = vcmask 64512
        %5994 = vst.msk [vmem:[%s371] sm:$0xff] %vm5993, %v5871
        %5995 = vst.msk [vmem:[%s371 + $0x8] sm:$0xff] %vm5993, %v5878
        %5996 = vst.msk [vmem:[%s371 + $0x10] sm:$0xff] %vm5993, %v5885
        %5997 = vst.msk [vmem:[%s371 + $0x18] sm:$0xff] %vm5993, %v5892
        %5998 = vst.msk [vmem:[%s371 + $0x20] sm:$0xff] %vm5993, %v5899
        %5999 = vst.msk [vmem:[%s371 + $0x28] sm:$0xff] %vm5993, %v5906
        %6000 = vst.msk [vmem:[%s371 + $0x30] sm:$0xff] %vm5993, %v5913
        %6001 = vst.msk [vmem:[%s371 + $0x38] sm:$0xff] %vm5993, %v5920
        %6002 = vst.msk [vmem:[%s371 + $0x40] sm:$0xff] %vm5993, %v5927
        %6003 = vst.msk [vmem:[%s371 + $0x48] sm:$0xff] %vm5993, %v5934
        %6004 = vst.msk [vmem:[%s371 + $0x50] sm:$0xff] %vm5993, %v5941
        %6005 = vst.msk [vmem:[%s371 + $0x58] sm:$0xff] %vm5993, %v5948
        %6006 = vst.msk [vmem:[%s371 + $0x60] sm:$0xff] %vm5993, %v5955
        %6007 = vst.msk [vmem:[%s371 + $0x68] sm:$0xff] %vm5993, %v5962
        %6008 = vst.msk [vmem:[%s371 + $0x70] sm:$0xff] %vm5993, %v5969
        %6009 = vst.msk [vmem:[%s371 + $0x78] sm:$0xff] %vm5993, %v5976
        %s6010 = sand.u32 %s190, 1
        %s6011 = scalar_lea.sflag [#allocation8], %s6010
        %s6012 = sand.u32 %s190, 1
        %s6013 = scalar_lea.vmem [#allocation7], %s6012
        %s6014 = smul.u32 16, %s31
        %p6015 = scmp.lt.s32.totalorder %s6014, 31
        %s6016 = scalar_select %p6015, %s6014, 31
        %s6017 = smul.addr %s6016, 8
        %s6018 = scalar_lea.vmem %s9, %s6017
        // Predicated region
        $region89: #{tpu_custom_call.1} parent=43 // pred_check
          %p6019 = pneg %p200
        $region90: #{tpu_custom_call.1} parent=43 // pred_check_branch
          %6021 = sbr.rel (%p6019) target = $region92
        $region91: #{tpu_custom_call.1} parent=43 // pred_region
          %s6023 = ssub.s32 16, 16
          %6024 = vsyncadd %s6011, %s6023
          %s6025 = smul.addr %s31, 16
          %s6026 = scalar_lea.hbm %s8, %s6025
          %s6028 = sshll.u32 %s6013, 4
          %s6029 = int_to_ptr.vmem [resolvable:$true] %s6028
          %6031 = dma.vmem_to_hbm [thread:$0]  %s6029, 16, %s6026, %s6011
        $region92: #{tpu_custom_call.1} parent=43 // pred_fallthru
          _
        // Predicated region
        $region93: #{tpu_custom_call.1} parent=43 // pred_check
          %p6032 = pneg %p226
        $region94: #{tpu_custom_call.1} parent=43 // pred_check_branch
          %6034 = sbr.rel (%p6032) target = $region96
        $region95: #{tpu_custom_call.1} parent=43 // pred_region
          %s6035 = smul.u32 16, %s31
        $region96: #{tpu_custom_call.1} parent=43 // pred_fallthru
          _
      $region44: #{tpu_custom_call.1} parent=5 // pred_fallthru
        _
      %p6036 = scmp.le.s32.totalorder 2, %s26
      // Predicated region
      $region97: #{tpu_custom_call.1} parent=5 // pred_check
        %p6037 = pneg %p6036
      $region98: #{tpu_custom_call.1} parent=5 // pred_check_branch
        %6039 = sbr.rel (%p6037) target = $region100
      $region99: #{tpu_custom_call.1} parent=5 // pred_region
        %s6040 = ssub.s32 %s26, 2
        // Predicated region
        $region101: #{tpu_custom_call.1} parent=99 // pred_check
          %p6041 = pneg %p206
        $region102: #{tpu_custom_call.1} parent=99 // pred_check_branch
          %6043 = sbr.rel (%p6041) target = $region104
        $region103: #{tpu_custom_call.1} parent=99 // pred_region
          %s6044 = sand.u32 %s191, 1
          %s6045 = scalar_lea.sflag [#allocation8], %s6044
          %s6046 = sand.u32 %s191, 1
          %s6047 = scalar_lea.vmem [#allocation7], %s6046
          %6048 = dma.done %s6045, 16
        $region104: #{tpu_custom_call.1} parent=99 // pred_fallthru
          _
        // Predicated region
        $region105: #{tpu_custom_call.1} parent=99 // pred_check
          %p6049 = pneg %p232
        $region106: #{tpu_custom_call.1} parent=99 // pred_check_branch
          %6051 = sbr.rel (%p6049) target = $region108
        $region107: #{tpu_custom_call.1} parent=99 // pred_region
          %s6052 = smul.u32 16, %s32
          %p6053 = scmp.lt.s32.totalorder %s6052, 31
          %s6054 = scalar_select %p6053, %s6052, 31
          %s6055 = smul.addr %s6054, 8
          %s6056 = scalar_lea.vmem %s9, %s6055
        $region108: #{tpu_custom_call.1} parent=99 // pred_fallthru
          _
      $region100: #{tpu_custom_call.1} parent=5 // pred_fallthru
        _
    $region6: #{tpu_custom_call.1} parent=1 // loop_footer
      %s30 = sadd.s32 1, %s26
    $region7: #{tpu_custom_call.1} parent=1 // loop_footer_branch
      %25 = sbr.rel target = $region3
    $region8: #{tpu_custom_call.1} parent=1 // loop_exit
      _
    %6057 = vsyncpa [#allocation8], 1
    %s6058 = scalar_lea.sflag [#allocation8], 1
    %6059 = vsyncpa %s6058, 1
  %6060 = vsyncmov [#allocation3]
  %s6061 = vpop.sfrf %6060
  %p6062 = scmp.eq.s32.totalorder %s6061, 0
  %p6063 = pneg %p6062
  %6065 = shalt.err (%p6063)

</llo_original>
